<compile_context>
chip_gen: v6e
topology: v6e:2x2x1
jax: 0.10.0
libtpu: 0.0.40
codegen_flags: <defaults>
</compile_context>

<pallas_src>
import jax
import jax.numpy as jnp
import numpy as np
from jax.experimental import pallas as pl
from jax.experimental.pallas import tpu as pltpu


def _selective_loss_kernel(x_ref, w1t_ref, b1_ref, embWt_ref, embB_ref,
                           ids_ref, vals_ref, mask_ref,
                           loss_ref, prob_ref):
    # Hidden Linear + ReLU (Dropout(p=0) is the identity). K=D contraction.
    h = jnp.dot(x_ref[...], w1t_ref[...],
                preferred_element_type=jnp.float32) + b1_ref[...]
    h = jnp.maximum(h, 0.0)                                    # (bt, H) f32

    # Scores over the lane-padded vocab; the hstacked ones-column of the
    # reference is folded into embB so the contraction stays K=H.
    scores = jnp.dot(h.astype(embWt_ref.dtype), embWt_ref[...],
                     preferred_element_type=jnp.float32) + embB_ref[...]

    ids = ids_ref[...]                                         # (bt, T) int32
    T = ids.shape[1]
    Vp = scores.shape[1]

    # Selective logits: logits[b, t] = scores[b, ids[b, t]].
    # Select + lane-reduce instead of an fp32 one-hot matmul.  Rows >= V are
    # zero-padded embeddings (never selected by valid ids) and padding_idx=0
    # rows give exactly 0, matching nn.Embedding(padding_idx=0).
    iota_v = jax.lax.broadcasted_iota(jnp.int32, (ids.shape[0], T, Vp), 2)
    sel = jnp.where(ids[:, :, None] == iota_v, scores[:, None, :], 0.0)
    logits = jnp.sum(sel, axis=-1)                             # (bt, T)

    y = vals_ref[...]                                          # targets
    w = mask_ref[...]                                          # weights (mask)

    # F.binary_cross_entropy_with_logits(logits, y, weight=w), per element:
    #   max(z,0) - z*y + log(1 + exp(-|z|))
    # (log(1+exp(.)) vs log1p differs by < 6e-8 absolute for large |z|, far
    #  below the f32 reduction noise; plain log keeps the Mosaic lowering safe)
    per_elem = (jnp.maximum(logits, 0.0) - logits * y
                + jnp.log(1.0 + jnp.exp(-jnp.abs(logits))))

    # Per-block partial sum; the mean (sum / (B*T)) is finished in the wrapper
    # so the batch grid axis stays "parallel" (megacore-friendly on v7x).
    loss_ref[...] = jnp.reshape(jnp.sum(w * per_elem), (1, 1, 1))

    # output_nonlin = sigmoid
    prob_ref[...] = jax.nn.sigmoid(logits)


def _dense_output_kernel(x_ref, w1t_ref, b1_ref, embWt_ref, embB_ref, out_ref):
    """_predict_output path (no targets): sigmoid over the full (padded) vocab."""
    h = jnp.maximum(
        jnp.dot(x_ref[...], w1t_ref[...],
                preferred_element_type=jnp.float32) + b1_ref[...], 0.0)
    scores = jnp.dot(h.astype(embWt_ref.dtype), embWt_ref[...],
                     preferred_element_type=jnp.float32) + embB_ref[...]
    out_ref[...] = jax.nn.sigmoid(scores)     # (bt, Vp) lane-dense store


def _prep_params(w1, b1, emb, compute_dtype):
    """Host-side layout plumbing: transpose weights, fold bias col, pad vocab."""
    H, D = w1.shape
    V, E = emb.shape
    assert E == H + 1, "embed_size must equal hidden + 1 (bias=True)"
    Vp = ((V + 127) // 128) * 128                     # lane-dense vocab (65 -> 128)
    emb_p = jnp.pad(jnp.asarray(emb, jnp.float32), ((0, Vp - V), (0, 0)))
    embW_t = emb_p[:, :H].T                           # (H, Vp)
    embB = emb_p[:, H].reshape(1, Vp)                 # (1, Vp) folded bias column
    w1_t = jnp.asarray(w1, jnp.float32).T             # (D, H)
    b1_r = jnp.asarray(b1, jnp.float32).reshape(1, H)
    if compute_dtype != jnp.float32:
        w1_t = w1_t.astype(compute_dtype)
        embW_t = embW_t.astype(compute_dtype)
    return w1_t, b1_r, embW_t, embB, Vp


def selective_loss_output_forward(x, w1, b1, emb,
                                  target_ids=None, target_values=None,
                                  target_mask=None, *,
                                  block_batch=1024,
                                  compute_dtype=jnp.float32):
    """JAX wrapper mirroring SelectiveLossOutput.forward."""
    x = jnp.asarray(x, jnp.float32)
    B, D = x.shape
    H = w1.shape[0]
    V = emb.shape[0]
    w1_t, b1_r, embW_t, embB, Vp = _prep_params(w1, b1, emb, compute_dtype)

    # Batch tile: multiple of 8 sublanes; pad B up to a whole number of tiles.
    bt = max(8, (min(int(block_batch), max(B, 8)) // 8) * 8)
    B_pad = ((B + bt - 1) // bt) * bt
    nb = B_pad // bt

    x_in = x.astype(compute_dtype) if compute_dtype != jnp.float32 else x
    if B_pad != B:
        x_in = jnp.pad(x_in, ((0, B_pad - B), (0, 0)))

    row2 = lambda i: (i, 0)
    const2 = lambda i: (0, 0)
    weight_specs = [pl.BlockSpec((D, H), const2),     # w1_t
                    pl.BlockSpec((1, H), const2),     # b1
                    pl.BlockSpec((H, Vp), const2),    # embW_t
                    pl.BlockSpec((1, Vp), const2)]    # embB
    cparams = pltpu.CompilerParams(dimension_semantics=("parallel",))

    has_targets = (target_ids is not None and target_values is not None
                   and target_mask is not None)
    if has_targets:
        # NOTE: target_ids are assumed to lie in [0, output_size], as PyTorch's
        # nn.Embedding would error otherwise; padded vocab rows are all zero.
        ids = jnp.asarray(target_ids, jnp.int32)
        vals = jnp.asarray(target_values, jnp.float32)
        mask = jnp.asarray(target_mask, jnp.float32)
        T = ids.shape[1]
        if B_pad != B:
            pad = B_pad - B
            ids = jnp.pad(ids, ((0, pad), (0, 0)))    # pad with padding_idx=0
            vals = jnp.pad(vals, ((0, pad), (0, 0)))
            mask = jnp.pad(mask, ((0, pad), (0, 0)))  # zero weight -> no loss

        partial, prob = pl.pallas_call(
            _selective_loss_kernel,
            grid=(nb,),
            in_specs=[pl.BlockSpec((bt, D), row2)] + weight_specs
                     + [pl.BlockSpec((bt, T), row2)] * 3,
            out_specs=(pl.BlockSpec((1, 1, 1), lambda i: (i, 0, 0)),
                       pl.BlockSpec((bt, T), row2)),
            out_shape=(jax.ShapeDtypeStruct((nb, 1, 1), jnp.float32),
                       jax.ShapeDtypeStruct((B_pad, T), jnp.float32)),
            compiler_params=cparams,
        )(x_in, w1_t, b1_r, embW_t, embB, ids, vals, mask)

        # reduction='mean' over the ORIGINAL B*T elements (padded rows carry a
        # zero mask, so they contribute nothing to the partial sums).
        loss = jnp.sum(partial) / (B * T)
        return loss, prob[:B]
    else:
        out = pl.pallas_call(
            _dense_output_kernel,
            grid=(nb,),
            in_specs=[pl.BlockSpec((bt, D), row2)] + weight_specs,
            out_specs=pl.BlockSpec((bt, Vp), row2),
            out_shape=jax.ShapeDtypeStruct((B_pad, Vp), jnp.float32),
            compiler_params=cparams,
        )(x_in, w1_t, b1_r, embW_t, embB)
        return out[:B, :V]


def _reference_forward(x, w1, b1, emb, ids=None, vals=None, mask=None):
    """Pure-JAX reference reproducing the PyTorch forward."""
    h = jnp.maximum(x @ w1.T + b1.reshape(1, -1), 0.0)
    xh = jnp.concatenate([h, jnp.ones((x.shape[0], 1), jnp.float32)], axis=1)
    if ids is None:
        return jax.nn.sigmoid(xh @ emb.T)
    tgt_emb = emb[ids]                                        # (B, T, E)
    logits = jnp.einsum('bte,be->bt', tgt_emb, xh)
    per_elem = (jnp.maximum(logits, 0.0) - logits * vals
                + jnp.log1p(jnp.exp(-jnp.abs(logits))))
    return jnp.mean(mask * per_elem), jax.nn.sigmoid(logits)


if __name__ == "__main__":
    # Small deterministic config (module: input=32, hidden=(16,), output=64).
    B, input_size, hidden, output_size, T = 100, 32, 16, 64, 8
    V = output_size + 1                 # embedding rows
    E = hidden + 1                      # embed_size = layer_units[-1] + 1 (bias)

    key = jax.random.PRNGKey(0)
    k_x, k_w1, k_b1, k_emb, k_ids, k_val, k_msk = jax.random.split(key, 7)

    x = jax.random.normal(k_x, (B, input_size), dtype=jnp.float32)

    bound = 1.0 / np.sqrt(input_size)
    w1 = jax.random.uniform(k_w1, (hidden, input_size), jnp.float32, -bound, bound)
    b1 = jax.random.uniform(k_b1, (1, hidden), jnp.float32, -bound, bound)

    # nn.Embedding(V, E, padding_idx=0): random weights, padding row zeroed.
    emb = jax.random.normal(k_emb, (V, E), dtype=jnp.float32) * 0.1
    emb = emb.at[0].set(0.0)

    target_ids = jax.random.randint(k_ids, (B, T), 0, V, dtype=jnp.int32)
    target_values = jax.random.bernoulli(k_val, 0.5, (B, T)).astype(jnp.float32)
    target_mask = jax.random.bernoulli(k_msk, 0.75, (B, T)).astype(jnp.float32)

    # Training path: 2 grid steps of 64 rows + a remainder pad (100 -> 128).
    loss, prob = selective_loss_output_forward(
        x, w1, b1, emb, target_ids, target_values, target_mask, block_batch=64)
    loss = jax.block_until_ready(loss)
    prob = jax.block_until_ready(prob)

    # Dense inference path (_predict_output)
    dense_prob = jax.block_until_ready(
        selective_loss_output_forward(x, w1, b1, emb, block_batch=64))

    # Correctness checks against a pure-JAX reference
    ref_loss, ref_prob = _reference_forward(
        x, w1, b1, emb, target_ids, target_values, target_mask)
    ref_dense = _reference_forward(x, w1, b1, emb)
    np.testing.assert_allclose(np.asarray(loss), np.asarray(ref_loss),
                               rtol=1e-5, atol=1e-5)
    np.testing.assert_allclose(np.asarray(prob), np.asarray(ref_prob),
                               rtol=1e-5, atol=1e-5)
    np.testing.assert_allclose(np.asarray(dense_prob), np.asarray(ref_dense),
                               rtol=1e-5, atol=1e-5)
    assert dense_prob.shape == (B, V)

    print("KERNEL_OK")
</pallas_src>

<mosaic_0001>
module attributes {stable_mosaic.version = 11 : i64} {
  func.func @_selective_loss_kernel(%arg0: i32, %arg1: memref<64x32xf32, #tpu.memory_space<vmem>>, %arg2: memref<32x16xf32, #tpu.memory_space<vmem>>, %arg3: memref<1x16xf32, #tpu.memory_space<vmem>>, %arg4: memref<16x128xf32, #tpu.memory_space<vmem>>, %arg5: memref<1x128xf32, #tpu.memory_space<vmem>>, %arg6: memref<64x8xi32, #tpu.memory_space<vmem>>, %arg7: memref<64x8xf32, #tpu.memory_space<vmem>>, %arg8: memref<64x8xf32, #tpu.memory_space<vmem>>, %arg9: memref<1x1x1xf32, #tpu.memory_space<vmem>>, %arg10: memref<64x8xf32, #tpu.memory_space<vmem>>) attributes {dimension_semantics = [#tpu.dimension_semantics<parallel>], iteration_bounds = array<i64: 2>, scalar_prefetch = 0 : i64, scratch_operands = 0 : i64, tpu.core_type = #tpu.core_type<tc>, window_params = [{transform_indices = @transform_0, window_bounds = array<i64: 64, 32>}, {pipeline_mode = #tpu.pipeline_mode<synchronous>, transform_indices = @transform_1, window_bounds = array<i64: 32, 16>}, {pipeline_mode = #tpu.pipeline_mode<synchronous>, transform_indices = @transform_2, window_bounds = array<i64: 1, 16>}, {pipeline_mode = #tpu.pipeline_mode<synchronous>, transform_indices = @transform_3, window_bounds = array<i64: 16, 128>}, {pipeline_mode = #tpu.pipeline_mode<synchronous>, transform_indices = @transform_4, window_bounds = array<i64: 1, 128>}, {transform_indices = @transform_5, window_bounds = array<i64: 64, 8>}, {transform_indices = @transform_6, window_bounds = array<i64: 64, 8>}, {transform_indices = @transform_7, window_bounds = array<i64: 64, 8>}, {transform_indices = @transform_8, window_bounds = array<i64: 1, 1, 1>}, {transform_indices = @transform_9, window_bounds = array<i64: 64, 8>}]} {
    %c0 = arith.constant 0 : index
    %c0_0 = arith.constant 0 : index
    %0 = vector.load %arg1[%c0, %c0_0] : memref<64x32xf32, #tpu.memory_space<vmem>>, vector<64x32xf32>
    %c0_1 = arith.constant 0 : index
    %c0_2 = arith.constant 0 : index
    %1 = vector.load %arg2[%c0_1, %c0_2] : memref<32x16xf32, #tpu.memory_space<vmem>>, vector<32x16xf32>
    %cst = arith.constant dense<0.000000e+00> : vector<64x16xf32>
    %2 = tpu.matmul %0, %1, %cst {dimension_numbers = #tpu.dot_dimension_numbers<[1], [0], [0], [1], [0, 0, 1, 1], [], []>} : vector<64x32xf32>, vector<32x16xf32>, vector<64x16xf32> -> vector<64x16xf32>
    %c0_3 = arith.constant 0 : index
    %c0_4 = arith.constant 0 : index
    %3 = vector.load %arg3[%c0_3, %c0_4] : memref<1x16xf32, #tpu.memory_space<vmem>>, vector<1x16xf32>
    %4 = vector.broadcast %3 : vector<1x16xf32> to vector<64x16xf32>
    %5 = arith.addf %2, %4 : vector<64x16xf32>
    %cst_5 = arith.constant 0.000000e+00 : f32
    %6 = vector.broadcast %cst_5 : f32 to vector<64x16xf32>
    %7 = arith.maximumf %5, %6 : vector<64x16xf32>
    %c0_6 = arith.constant 0 : index
    %c0_7 = arith.constant 0 : index
    %8 = vector.load %arg4[%c0_6, %c0_7] : memref<16x128xf32, #tpu.memory_space<vmem>>, vector<16x128xf32>
    %cst_8 = arith.constant dense<0.000000e+00> : vector<64x128xf32>
    %9 = tpu.matmul %7, %8, %cst_8 {dimension_numbers = #tpu.dot_dimension_numbers<[1], [0], [0], [1], [0, 0, 1, 1], [], []>} : vector<64x16xf32>, vector<16x128xf32>, vector<64x128xf32> -> vector<64x128xf32>
    %c0_9 = arith.constant 0 : index
    %c0_10 = arith.constant 0 : index
    %10 = vector.load %arg5[%c0_9, %c0_10] : memref<1x128xf32, #tpu.memory_space<vmem>>, vector<1x128xf32>
    %11 = vector.broadcast %10 : vector<1x128xf32> to vector<64x128xf32>
    %12 = arith.addf %9, %11 : vector<64x128xf32>
    %c0_11 = arith.constant 0 : index
    %c0_12 = arith.constant 0 : index
    %13 = vector.load %arg6[%c0_11, %c0_12] : memref<64x8xi32, #tpu.memory_space<vmem>>, vector<64x8xi32>
    %14 = tpu.iota {dimensions = array<i32: 2>} : vector<64x8x128xi32>
    %15 = vector.shape_cast %13 : vector<64x8xi32> to vector<64x8x1xi32>
    %16 = vector.broadcast %15 : vector<64x8x1xi32> to vector<64x8x128xi32>
    %17 = arith.cmpi eq, %16, %14 : vector<64x8x128xi32>
    %18 = vector.shape_cast %12 : vector<64x128xf32> to vector<64x1x128xf32>
    %cst_13 = arith.constant 0.000000e+00 : f32
    %19 = vector.shape_cast %18 : vector<64x1x128xf32> to vector<64x1x128xf32>
    %20 = vector.broadcast %19 : vector<64x1x128xf32> to vector<64x8x128xf32>
    %21 = vector.broadcast %cst_13 : f32 to vector<64x8x128xf32>
    %22 = arith.select %17, %20, %21 : vector<64x8x128xi1>, vector<64x8x128xf32>
    %cst_14 = arith.constant dense<0.000000e+00> : vector<64x8xf32>
    %23 = vector.multi_reduction <add>, %22, %cst_14 [2] : vector<64x8x128xf32> to vector<64x8xf32>
    %c0_15 = arith.constant 0 : index
    %c0_16 = arith.constant 0 : index
    %24 = vector.load %arg7[%c0_15, %c0_16] : memref<64x8xf32, #tpu.memory_space<vmem>>, vector<64x8xf32>
    %c0_17 = arith.constant 0 : index
    %c0_18 = arith.constant 0 : index
    %25 = vector.load %arg8[%c0_17, %c0_18] : memref<64x8xf32, #tpu.memory_space<vmem>>, vector<64x8xf32>
    %cst_19 = arith.constant 0.000000e+00 : f32
    %26 = vector.broadcast %cst_19 : f32 to vector<64x8xf32>
    %27 = arith.maximumf %23, %26 : vector<64x8xf32>
    %28 = arith.mulf %23, %24 : vector<64x8xf32>
    %29 = arith.subf %27, %28 : vector<64x8xf32>
    %30 = math.absf %23 : vector<64x8xf32>
    %cst_20 = arith.constant 0.000000e+00 : f32
    %31 = vector.broadcast %cst_20 : f32 to vector<64x8xf32>
    %32 = arith.subf %31, %30 : vector<64x8xf32>
    %33 = math.exp %32 : vector<64x8xf32>
    %cst_21 = arith.constant 1.000000e+00 : f32
    %34 = vector.broadcast %cst_21 : f32 to vector<64x8xf32>
    %35 = arith.addf %34, %33 : vector<64x8xf32>
    %36 = math.log %35 : vector<64x8xf32>
    %37 = arith.addf %29, %36 : vector<64x8xf32>
    %38 = arith.mulf %25, %37 : vector<64x8xf32>
    %39 = vector.shape_cast %38 : vector<64x8xf32> to vector<1x64x8xf32>
    %cst_22 = arith.constant dense<0.000000e+00> : vector<1xf32>
    %40 = vector.multi_reduction <add>, %39, %cst_22 [1, 2] : vector<1x64x8xf32> to vector<1xf32>
    %41 = vector.shape_cast %40 : vector<1xf32> to vector<1x1x1xf32>
    %42 = vector.extract %41[0, 0, 0] : f32 from vector<1x1x1xf32>
    %43 = vector.broadcast %42 : f32 to vector<1x1x1xf32>
    %c0_23 = arith.constant 0 : index
    %c0_24 = arith.constant 0 : index
    %c0_25 = arith.constant 0 : index
    %44 = vector.load %arg9[%c0_23, %c0_24, %c0_25] : memref<1x1x1xf32, #tpu.memory_space<vmem>>, vector<1x1x1xf32>
    tpu.vector_store %arg9[%c0_23, %c0_24, %c0_25], %43 {strides = array<i32>} : memref<1x1x1xf32, #tpu.memory_space<vmem>>, vector<1x1x1xf32>,
    %45 = arith.negf %23 : vector<64x8xf32>
    %46 = math.exp %45 : vector<64x8xf32>
    %cst_26 = arith.constant 1.000000e+00 : f32
    %47 = vector.broadcast %cst_26 : f32 to vector<64x8xf32>
    %48 = arith.addf %47, %46 : vector<64x8xf32>
    %49 = arith.divf %47, %48 : vector<64x8xf32>
    %c0_27 = arith.constant 0 : index
    %c0_28 = arith.constant 0 : index
    %50 = vector.load %arg10[%c0_27, %c0_28] : memref<64x8xf32, #tpu.memory_space<vmem>>, vector<64x8xf32>
    tpu.vector_store %arg10[%c0_27, %c0_28], %49 {strides = array<i32>} : memref<64x8xf32, #tpu.memory_space<vmem>>, vector<64x8xf32>,
    return
  }
  func.func @transform_0(%arg0: i32) -> (i32, i32) {
    %c0_i32 = arith.constant 0 : i32
    %c0_i32_0 = arith.constant 0 : i32
    return %arg0, %c0_i32 : i32, i32
  }
  func.func @transform_1(%arg0: i32) -> (i32, i32) {
    %c0_i32 = arith.constant 0 : i32
    %c0_i32_0 = arith.constant 0 : i32
    %c0_i32_1 = arith.constant 0 : i32
    return %c0_i32, %c0_i32_0 : i32, i32
  }
  func.func @transform_2(%arg0: i32) -> (i32, i32) {
    %c0_i32 = arith.constant 0 : i32
    %c0_i32_0 = arith.constant 0 : i32
    %c0_i32_1 = arith.constant 0 : i32
    return %c0_i32, %c0_i32_0 : i32, i32
  }
  func.func @transform_3(%arg0: i32) -> (i32, i32) {
    %c0_i32 = arith.constant 0 : i32
    %c0_i32_0 = arith.constant 0 : i32
    %c0_i32_1 = arith.constant 0 : i32
    return %c0_i32, %c0_i32_0 : i32, i32
  }
  func.func @transform_4(%arg0: i32) -> (i32, i32) {
    %c0_i32 = arith.constant 0 : i32
    %c0_i32_0 = arith.constant 0 : i32
    %c0_i32_1 = arith.constant 0 : i32
    return %c0_i32, %c0_i32_0 : i32, i32
  }
  func.func @transform_5(%arg0: i32) -> (i32, i32) {
    %c0_i32 = arith.constant 0 : i32
    %c0_i32_0 = arith.constant 0 : i32
    return %arg0, %c0_i32 : i32, i32
  }
  func.func @transform_6(%arg0: i32) -> (i32, i32) {
    %c0_i32 = arith.constant 0 : i32
    %c0_i32_0 = arith.constant 0 : i32
    return %arg0, %c0_i32 : i32, i32
  }
  func.func @transform_7(%arg0: i32) -> (i32, i32) {
    %c0_i32 = arith.constant 0 : i32
    %c0_i32_0 = arith.constant 0 : i32
    return %arg0, %c0_i32 : i32, i32
  }
  func.func @transform_8(%arg0: i32) -> (i32, i32, i32) {
    %c0_i32 = arith.constant 0 : i32
    %c0_i32_0 = arith.constant 0 : i32
    %c0_i32_1 = arith.constant 0 : i32
    return %arg0, %c0_i32, %c0_i32_0 : i32, i32, i32
  }
  func.func @transform_9(%arg0: i32) -> (i32, i32) {
    %c0_i32 = arith.constant 0 : i32
    %c0_i32_0 = arith.constant 0 : i32
    return %arg0, %c0_i32 : i32, i32
  }
}

</mosaic_0001>

<llo_original>
// kernel: tpu_custom_call.1
$region0: #{tpu_custom_call.1}
  #allocation0 [shape = 'u32[]', space=smem, size = 0x4, offset = 0x4, fixed_abs, tag = 'smem constant byte address 0x4 - core index']
  #allocation1 [shape = 'u32[144,128]{1,0:T(1,128)}', space=vmem, size = 0x12000, scoped, tag = 'internal scratch']
  %s0 = inlined_call_operand.vmem [shape: f32[128,32], index: 0, kind: input, shape index: {}]
  %s1 = inlined_call_operand.vmem [shape: f32[32,16], index: 1, kind: input, shape index: {}]
  %s2 = inlined_call_operand.vmem [shape: f32[1,16], index: 2, kind: input, shape index: {}]
  %s3 = inlined_call_operand.vmem [shape: f32[16,128], index: 3, kind: input, shape index: {}]
  %s4 = inlined_call_operand.vmem [shape: f32[1,128], index: 4, kind: input, shape index: {}]
  %s5 = inlined_call_operand.vmem [shape: s32[128,8], index: 5, kind: input, shape index: {}]
  %s6 = inlined_call_operand.vmem [shape: f32[128,8], index: 6, kind: input, shape index: {}]
  %s7 = inlined_call_operand.vmem [shape: f32[128,8], index: 7, kind: input, shape index: {}]
  %s8 = inlined_call_operand.vmem [shape: f32[2,1,1], index: 8, kind: output, shape index: {0}]
  %s9 = inlined_call_operand.vmem [shape: f32[128,8], index: 9, kind: output, shape index: {1}]
  %10 = xla_tuple %s8, %s9
  %s11 = sld [smem:[#allocation0]]
  $region73: #{tpu_custom_call.1} parent=0
    _
  %s13 = ssub.s32 1, %s11
  %s14 = scalar_select 0, %s13, %s11
  loop: start=0, step=1, limit=4
  $region2: #{tpu_custom_call.1} parent=0 // loop_pre_header
    _
  $region3: #{tpu_custom_call.1} parent=0 // loop_header
    %s16 = sphi 0, %s20
    %p17 = scmp.ge.s32.totalorder %s16, 4
    %s26 = sphi 0, %s28
    %s29 = sphi 0, %s26
    %s30 = sphi 0, %s29
    %s46 = sphi 0, %s30
    %s50 = sphi 0, %s50
    %s52 = sphi 0, %s50
    %s53 = sphi 0, %s52
    %s67 = sphi 0, %s53
    %s71 = sphi 0, %s71
    %s73 = sphi 0, %s71
    %s74 = sphi 0, %s73
    %s88 = sphi 0, %s74
    %s92 = sphi 0, %s92
    %s94 = sphi 0, %s92
    %s95 = sphi 0, %s94
    %s109 = sphi 0, %s95
    %s113 = sphi 0, %s113
    %s115 = sphi 0, %s113
    %s116 = sphi 0, %s115
    %s130 = sphi 0, %s116
    %s136 = sphi 0, %s138
    %s139 = sphi 0, %s136
    %s140 = sphi 0, %s139
    %s156 = sphi 0, %s140
    %s162 = sphi 0, %s164
    %s165 = sphi 0, %s162
    %s166 = sphi 0, %s165
    %s182 = sphi 0, %s166
    %s188 = sphi 0, %s190
    %s191 = sphi 0, %s188
    %s192 = sphi 0, %s191
    %s208 = sphi 0, %s192
    %s214 = sphi 0, %s216
    %s217 = sphi 0, %s214
    %s218 = sphi 0, %s217
    %s234 = sphi 0, %s218
    %s240 = sphi 0, %s242
    %s243 = sphi 0, %s240
    %s244 = sphi 0, %s243
    %s260 = sphi 0, %s244
  $region4: #{tpu_custom_call.1} parent=0 // loop_header_branch
    %19 = sbr.rel (%p17) target = $region8
  $region5: #{tpu_custom_call.1} parent=0 // loop_body
    %s21 = ssub.s32 %s16, 1
    %s22 = ssub.s32 %s16, 2
    %s23 = sadd.s32 %s16, 1
    %s24 = ssub.s32 %s16, %s23
    %p25 = scmp.eq.s32.totalorder %s24, 0
    %s27 = sadd.s32 %s26, 1
    %s28 = scalar_select %p25, %s26, %s27
    %p31 = pneg %p25
    %p32 = scmp.eq.s32.totalorder %s16, 1
    %p33 = por %p31, %p32
    %p34 = scmp.ne.s32.totalorder %s26, %s29
    %p35 = scmp.eq.s32.totalorder %s16, 0
    %p36 = por %p34, %p35
    %p37 = scmp.ne.s32.totalorder %s26, %s29
    %p38 = scmp.eq.s32.totalorder %s21, 1
    %p39 = por %p37, %p38
    %p40 = scmp.ne.s32.totalorder %s29, %s30
    %p41 = scmp.eq.s32.totalorder %s21, 0
    %p42 = por %p40, %p41
    %p43 = scmp.ne.s32.totalorder %s29, %s30
    %p44 = scmp.eq.s32.totalorder %s22, 1
    %p45 = por %p43, %p44
    %p47 = scmp.ne.s32.totalorder %s30, %s46
    %p48 = scmp.eq.s32.totalorder %s22, 0
    %p49 = por %p47, %p48
    %s51 = sadd.s32 %s50, 1
    %p54 = scmp.eq.s32.totalorder %s16, 1
    %p55 = scmp.ne.s32.totalorder %s50, %s52
    %p56 = scmp.eq.s32.totalorder %s16, 0
    %p57 = por %p55, %p56
    %p58 = scmp.ne.s32.totalorder %s50, %s52
    %p59 = scmp.eq.s32.totalorder %s21, 1
    %p60 = por %p58, %p59
    %p61 = scmp.ne.s32.totalorder %s52, %s53
    %p62 = scmp.eq.s32.totalorder %s21, 0
    %p63 = por %p61, %p62
    %p64 = scmp.ne.s32.totalorder %s52, %s53
    %p65 = scmp.eq.s32.totalorder %s22, 1
    %p66 = por %p64, %p65
    %p68 = scmp.ne.s32.totalorder %s53, %s67
    %p69 = scmp.eq.s32.totalorder %s22, 0
    %p70 = por %p68, %p69
    %s72 = sadd.s32 %s71, 1
    %p75 = scmp.eq.s32.totalorder %s16, 1
    %p76 = scmp.ne.s32.totalorder %s71, %s73
    %p77 = scmp.eq.s32.totalorder %s16, 0
    %p78 = por %p76, %p77
    %p79 = scmp.ne.s32.totalorder %s71, %s73
    %p80 = scmp.eq.s32.totalorder %s21, 1
    %p81 = por %p79, %p80
    %p82 = scmp.ne.s32.totalorder %s73, %s74
    %p83 = scmp.eq.s32.totalorder %s21, 0
    %p84 = por %p82, %p83
    %p85 = scmp.ne.s32.totalorder %s73, %s74
    %p86 = scmp.eq.s32.totalorder %s22, 1
    %p87 = por %p85, %p86
    %p89 = scmp.ne.s32.totalorder %s74, %s88
    %p90 = scmp.eq.s32.totalorder %s22, 0
    %p91 = por %p89, %p90
    %s93 = sadd.s32 %s92, 1
    %p96 = scmp.eq.s32.totalorder %s16, 1
    %p97 = scmp.ne.s32.totalorder %s92, %s94
    %p98 = scmp.eq.s32.totalorder %s16, 0
    %p99 = por %p97, %p98
    %p100 = scmp.ne.s32.totalorder %s92, %s94
    %p101 = scmp.eq.s32.totalorder %s21, 1
    %p102 = por %p100, %p101
    %p103 = scmp.ne.s32.totalorder %s94, %s95
    %p104 = scmp.eq.s32.totalorder %s21, 0
    %p105 = por %p103, %p104
    %p106 = scmp.ne.s32.totalorder %s94, %s95
    %p107 = scmp.eq.s32.totalorder %s22, 1
    %p108 = por %p106, %p107
    %p110 = scmp.ne.s32.totalorder %s95, %s109
    %p111 = scmp.eq.s32.totalorder %s22, 0
    %p112 = por %p110, %p111
    %s114 = sadd.s32 %s113, 1
    %p117 = scmp.eq.s32.totalorder %s16, 1
    %p118 = scmp.ne.s32.totalorder %s113, %s115
    %p119 = scmp.eq.s32.totalorder %s16, 0
    %p120 = por %p118, %p119
    %p121 = scmp.ne.s32.totalorder %s113, %s115
    %p122 = scmp.eq.s32.totalorder %s21, 1
    %p123 = por %p121, %p122
    %p124 = scmp.ne.s32.totalorder %s115, %s116
    %p125 = scmp.eq.s32.totalorder %s21, 0
    %p126 = por %p124, %p125
    %p127 = scmp.ne.s32.totalorder %s115, %s116
    %p128 = scmp.eq.s32.totalorder %s22, 1
    %p129 = por %p127, %p128
    %p131 = scmp.ne.s32.totalorder %s116, %s130
    %p132 = scmp.eq.s32.totalorder %s22, 0
    %p133 = por %p131, %p132
    %s134 = ssub.s32 %s16, %s23
    %p135 = scmp.eq.s32.totalorder %s134, 0
    %s137 = sadd.s32 %s136, 1
    %s138 = scalar_select %p135, %s136, %s137
    %p141 = pneg %p135
    %p142 = scmp.eq.s32.totalorder %s16, 1
    %p143 = por %p141, %p142
    %p144 = scmp.ne.s32.totalorder %s136, %s139
    %p145 = scmp.eq.s32.totalorder %s16, 0
    %p146 = por %p144, %p145
    %p147 = scmp.ne.s32.totalorder %s136, %s139
    %p148 = scmp.eq.s32.totalorder %s21, 1
    %p149 = por %p147, %p148
    %p150 = scmp.ne.s32.totalorder %s139, %s140
    %p151 = scmp.eq.s32.totalorder %s21, 0
    %p152 = por %p150, %p151
    %p153 = scmp.ne.s32.totalorder %s139, %s140
    %p154 = scmp.eq.s32.totalorder %s22, 1
    %p155 = por %p153, %p154
    %p157 = scmp.ne.s32.totalorder %s140, %s156
    %p158 = scmp.eq.s32.totalorder %s22, 0
    %p159 = por %p157, %p158
    %s160 = ssub.s32 %s16, %s23
    %p161 = scmp.eq.s32.totalorder %s160, 0
    %s163 = sadd.s32 %s162, 1
    %s164 = scalar_select %p161, %s162, %s163
    %p167 = pneg %p161
    %p168 = scmp.eq.s32.totalorder %s16, 1
    %p169 = por %p167, %p168
    %p170 = scmp.ne.s32.totalorder %s162, %s165
    %p171 = scmp.eq.s32.totalorder %s16, 0
    %p172 = por %p170, %p171
    %p173 = scmp.ne.s32.totalorder %s162, %s165
    %p174 = scmp.eq.s32.totalorder %s21, 1
    %p175 = por %p173, %p174
    %p176 = scmp.ne.s32.totalorder %s165, %s166
    %p177 = scmp.eq.s32.totalorder %s21, 0
    %p178 = por %p176, %p177
    %p179 = scmp.ne.s32.totalorder %s165, %s166
    %p180 = scmp.eq.s32.totalorder %s22, 1
    %p181 = por %p179, %p180
    %p183 = scmp.ne.s32.totalorder %s166, %s182
    %p184 = scmp.eq.s32.totalorder %s22, 0
    %p185 = por %p183, %p184
    %s186 = ssub.s32 %s16, %s23
    %p187 = scmp.eq.s32.totalorder %s186, 0
    %s189 = sadd.s32 %s188, 1
    %s190 = scalar_select %p187, %s188, %s189
    %p193 = pneg %p187
    %p194 = scmp.eq.s32.totalorder %s16, 1
    %p195 = por %p193, %p194
    %p196 = scmp.ne.s32.totalorder %s188, %s191
    %p197 = scmp.eq.s32.totalorder %s16, 0
    %p198 = por %p196, %p197
    %p199 = scmp.ne.s32.totalorder %s188, %s191
    %p200 = scmp.eq.s32.totalorder %s21, 1
    %p201 = por %p199, %p200
    %p202 = scmp.ne.s32.totalorder %s191, %s192
    %p203 = scmp.eq.s32.totalorder %s21, 0
    %p204 = por %p202, %p203
    %p205 = scmp.ne.s32.totalorder %s191, %s192
    %p206 = scmp.eq.s32.totalorder %s22, 1
    %p207 = por %p205, %p206
    %p209 = scmp.ne.s32.totalorder %s192, %s208
    %p210 = scmp.eq.s32.totalorder %s22, 0
    %p211 = por %p209, %p210
    %s212 = ssub.s32 %s16, %s23
    %p213 = scmp.eq.s32.totalorder %s212, 0
    %s215 = sadd.s32 %s214, 1
    %s216 = scalar_select %p213, %s214, %s215
    %p219 = pneg %p213
    %p220 = scmp.eq.s32.totalorder %s16, 1
    %p221 = por %p219, %p220
    %p222 = scmp.ne.s32.totalorder %s214, %s217
    %p223 = scmp.eq.s32.totalorder %s16, 0
    %p224 = por %p222, %p223
    %p225 = scmp.ne.s32.totalorder %s214, %s217
    %p226 = scmp.eq.s32.totalorder %s21, 1
    %p227 = por %p225, %p226
    %p228 = scmp.ne.s32.totalorder %s217, %s218
    %p229 = scmp.eq.s32.totalorder %s21, 0
    %p230 = por %p228, %p229
    %p231 = scmp.ne.s32.totalorder %s217, %s218
    %p232 = scmp.eq.s32.totalorder %s22, 1
    %p233 = por %p231, %p232
    %p235 = scmp.ne.s32.totalorder %s218, %s234
    %p236 = scmp.eq.s32.totalorder %s22, 0
    %p237 = por %p235, %p236
    %s238 = ssub.s32 %s16, %s23
    %p239 = scmp.eq.s32.totalorder %s238, 0
    %s241 = sadd.s32 %s240, 1
    %s242 = scalar_select %p239, %s240, %s241
    %p245 = pneg %p239
    %p246 = scmp.eq.s32.totalorder %s16, 1
    %p247 = por %p245, %p246
    %p248 = scmp.ne.s32.totalorder %s240, %s243
    %p249 = scmp.eq.s32.totalorder %s16, 0
    %p250 = por %p248, %p249
    %p251 = scmp.ne.s32.totalorder %s240, %s243
    %p252 = scmp.eq.s32.totalorder %s21, 1
    %p253 = por %p251, %p252
    %p254 = scmp.ne.s32.totalorder %s243, %s244
    %p255 = scmp.eq.s32.totalorder %s21, 0
    %p256 = por %p254, %p255
    %p257 = scmp.ne.s32.totalorder %s243, %s244
    %p258 = scmp.eq.s32.totalorder %s22, 1
    %p259 = por %p257, %p258
    %p261 = scmp.ne.s32.totalorder %s244, %s260
    %p262 = scmp.eq.s32.totalorder %s22, 0
    %p263 = por %p261, %p262
    %p264 = scmp.le.s32.totalorder 1, %s16
    %p265 = scmp.lt.s32.totalorder %s16, 3
    %p266 = pnand %p264, %p265
    %p267 = pneg %p266
    // Predicated region
    $region9: #{tpu_custom_call.1} parent=5 // pred_check
      _
    $region10: #{tpu_custom_call.1} parent=5 // pred_check_branch
      %269 = sbr.rel (%p266) target = $region12
    $region11: #{tpu_custom_call.1} parent=5 // pred_region
      %s270 = ssub.s32 %s16, 1
      // Predicated region
      $region13: #{tpu_custom_call.1} parent=11 // pred_check
        %p271 = pneg %p63
      $region14: #{tpu_custom_call.1} parent=11 // pred_check_branch
        %273 = sbr.rel (%p271) target = $region16
      $region15: #{tpu_custom_call.1} parent=11 // pred_region
        _
      $region16: #{tpu_custom_call.1} parent=11 // pred_fallthru
        _
      // Predicated region
      $region17: #{tpu_custom_call.1} parent=11 // pred_check
        %p274 = pneg %p84
      $region18: #{tpu_custom_call.1} parent=11 // pred_check_branch
        %276 = sbr.rel (%p274) target = $region20
      $region19: #{tpu_custom_call.1} parent=11 // pred_region
        _
      $region20: #{tpu_custom_call.1} parent=11 // pred_fallthru
        _
      // Predicated region
      $region21: #{tpu_custom_call.1} parent=11 // pred_check
        %p277 = pneg %p105
      $region22: #{tpu_custom_call.1} parent=11 // pred_check_branch
        %279 = sbr.rel (%p277) target = $region24
      $region23: #{tpu_custom_call.1} parent=11 // pred_region
        _
      $region24: #{tpu_custom_call.1} parent=11 // pred_fallthru
        _
      // Predicated region
      $region25: #{tpu_custom_call.1} parent=11 // pred_check
        %p280 = pneg %p126
      $region26: #{tpu_custom_call.1} parent=11 // pred_check_branch
        %282 = sbr.rel (%p280) target = $region28
      $region27: #{tpu_custom_call.1} parent=11 // pred_region
        _
      $region28: #{tpu_custom_call.1} parent=11 // pred_fallthru
        _
    $region12: #{tpu_custom_call.1} parent=5 // pred_fallthru
      _
    %p283 = scmp.lt.s32.totalorder %s16, 2
    // Predicated region
    $region29: #{tpu_custom_call.1} parent=5 // pred_check
      %p284 = pneg %p283
    $region30: #{tpu_custom_call.1} parent=5 // pred_check_branch
      %286 = sbr.rel (%p284) target = $region32
    $region31: #{tpu_custom_call.1} parent=5 // pred_region
      // Predicated region
      $region33: #{tpu_custom_call.1} parent=31 // pred_check
        %p287 = pneg %p36
      $region34: #{tpu_custom_call.1} parent=31 // pred_check_branch
        %289 = sbr.rel (%p287) target = $region36
      $region35: #{tpu_custom_call.1} parent=31 // pred_region
        %s290 = smul.u32 8, %s16
        %p291 = scmp.lt.s32.totalorder %s290, 15
        %s292 = scalar_select %p291, %s290, 15
        %s293 = smul.addr %s292, 8
        %s294 = scalar_lea.vmem %s0, %s293
        %s295 = smul.u32 8, %s16
      $region36: #{tpu_custom_call.1} parent=31 // pred_fallthru
        _
      // Predicated region
      $region37: #{tpu_custom_call.1} parent=31 // pred_check
        %p296 = pneg %p146
      $region38: #{tpu_custom_call.1} parent=31 // pred_check_branch
        %298 = sbr.rel (%p296) target = $region40
      $region39: #{tpu_custom_call.1} parent=31 // pred_region
        %s299 = smul.u32 8, %s16
        %p300 = scmp.lt.s32.totalorder %s299, 15
        %s301 = scalar_select %p300, %s299, 15
        %s302 = smul.addr %s301, 8
        %s303 = scalar_lea.vmem %s5, %s302
        %s304 = smul.u32 8, %s16
      $region40: #{tpu_custom_call.1} parent=31 // pred_fallthru
        _
      // Predicated region
      $region41: #{tpu_custom_call.1} parent=31 // pred_check
        %p305 = pneg %p172
      $region42: #{tpu_custom_call.1} parent=31 // pred_check_branch
        %307 = sbr.rel (%p305) target = $region44
      $region43: #{tpu_custom_call.1} parent=31 // pred_region
        %s308 = smul.u32 8, %s16
        %p309 = scmp.lt.s32.totalorder %s308, 15
        %s310 = scalar_select %p309, %s308, 15
        %s311 = smul.addr %s310, 8
        %s312 = scalar_lea.vmem %s6, %s311
        %s313 = smul.u32 8, %s16
      $region44: #{tpu_custom_call.1} parent=31 // pred_fallthru
        _
      // Predicated region
      $region45: #{tpu_custom_call.1} parent=31 // pred_check
        %p314 = pneg %p198
      $region46: #{tpu_custom_call.1} parent=31 // pred_check_branch
        %316 = sbr.rel (%p314) target = $region48
      $region47: #{tpu_custom_call.1} parent=31 // pred_region
        %s317 = smul.u32 8, %s16
        %p318 = scmp.lt.s32.totalorder %s317, 15
        %s319 = scalar_select %p318, %s317, 15
        %s320 = smul.addr %s319, 8
        %s321 = scalar_lea.vmem %s7, %s320
        %s322 = smul.u32 8, %s16
      $region48: #{tpu_custom_call.1} parent=31 // pred_fallthru
        _
    $region32: #{tpu_custom_call.1} parent=5 // pred_fallthru
      _
    %p323 = scmp.le.s32.totalorder 1, %s16
    %p324 = scmp.lt.s32.totalorder %s16, 3
    %p325 = pnand %p323, %p324
    %p326 = pneg %p325
    // Predicated region
    $region49: #{tpu_custom_call.1} parent=5 // pred_check
      _
    $region50: #{tpu_custom_call.1} parent=5 // pred_check_branch
      %328 = sbr.rel (%p325) target = $region52
    $region51: #{tpu_custom_call.1} parent=5 // pred_region
      %s329 = ssub.s32 %s16, 1
      %s330 = smul.u32 8, %s21
      %p331 = scmp.lt.s32.totalorder %s330, 15
      %s332 = scalar_select %p331, %s330, 15
      %s333 = smul.addr %s332, 8
      %s334 = scalar_lea.vmem %s0, %s333
      %p335 = pneg %p42
      %p336 = pneg %p39
      %p337 = pneg %p63
      %p338 = pneg %p60
      %p339 = pneg %p84
      %p340 = pneg %p81
      %p341 = pneg %p105
      %p342 = pneg %p102
      %p343 = pneg %p126
      %p344 = pneg %p123
      %s345 = smul.u32 8, %s21
      %p346 = scmp.lt.s32.totalorder %s345, 15
      %s347 = scalar_select %p346, %s345, 15
      %s348 = smul.addr %s347, 8
      %s349 = scalar_lea.vmem %s5, %s348
      %p350 = pneg %p152
      %p351 = pneg %p149
      %s352 = smul.u32 8, %s21
      %p353 = scmp.lt.s32.totalorder %s352, 15
      %s354 = scalar_select %p353, %s352, 15
      %s355 = smul.addr %s354, 8
      %s356 = scalar_lea.vmem %s6, %s355
      %p357 = pneg %p178
      %p358 = pneg %p175
      %s359 = smul.u32 8, %s21
      %p360 = scmp.lt.s32.totalorder %s359, 15
      %s361 = scalar_select %p360, %s359, 15
      %s362 = smul.addr %s361, 8
      %s363 = scalar_lea.vmem %s7, %s362
      %p364 = pneg %p204
      %p365 = pneg %p201
      %p366 = pneg %p230
      %p367 = pneg %p227
      %p368 = scmp.lt.s32.totalorder %s21, 1
      %s369 = scalar_select %p368, %s21, 1
      %s370 = scalar_lea.vmem %s8, %s369
      %p371 = pneg %p256
      %p372 = pneg %p253
      %s373 = smul.u32 8, %s21
      %p374 = scmp.lt.s32.totalorder %s373, 15
      %s375 = scalar_select %p374, %s373, 15
      %s376 = smul.addr %s375, 8
      %s377 = scalar_lea.vmem %s9, %s376
      %s378 = smul.u32 8, %s21
      %p379 = scmp.lt.s32.totalorder %s378, 15
      %s380 = scalar_select %p379, %s378, 15
      %s381 = smul.addr %s380, 8
      %s382 = scalar_lea.vmem %s0, %s381
      %s383 = smul.u32 8, %s21
      %s384 = smul.u32 8, %s21
      %p385 = scmp.lt.s32.totalorder %s384, 15
      %s386 = scalar_select %p385, %s384, 15
      %s387 = smul.addr %s386, 8
      %s388 = scalar_lea.vmem %s5, %s387
      %s389 = smul.u32 8, %s21
      %s390 = smul.u32 8, %s21
      %p391 = scmp.lt.s32.totalorder %s390, 15
      %s392 = scalar_select %p391, %s390, 15
      %s393 = smul.addr %s392, 8
      %s394 = scalar_lea.vmem %s6, %s393
      %s395 = smul.u32 8, %s21
      %s396 = smul.u32 8, %s21
      %p397 = scmp.lt.s32.totalorder %s396, 15
      %s398 = scalar_select %p397, %s396, 15
      %s399 = smul.addr %s398, 8
      %s400 = scalar_lea.vmem %s7, %s399
      %s401 = smul.u32 8, %s21
      %p402 = scmp.lt.s32.totalorder %s21, 1
      %s403 = scalar_select %p402, %s21, 1
      %s404 = scalar_lea.vmem %s8, %s403
      %s405 = smul.u32 8, %s21
      %p406 = scmp.lt.s32.totalorder %s405, 15
      %s407 = scalar_select %p406, %s405, 15
      %s408 = smul.addr %s407, 8
      %s409 = scalar_lea.vmem %s9, %s408
      %s410 = smul.u32 8, %s21
      %v411 = vld [vmem:[%s382] sm:$0xff]
      %v412 = vld [vmem:[%s382 + $0x8] sm:$0xff]
      %v413 = vld [vmem:[%s382 + $0x10] sm:$0xff]
      %v414 = vld [vmem:[%s382 + $0x18] sm:$0xff]
      %v415 = vld [vmem:[%s382 + $0x20] sm:$0xff]
      %v416 = vld [vmem:[%s382 + $0x28] sm:$0xff]
      %v417 = vld [vmem:[%s382 + $0x30] sm:$0xff]
      %v418 = vld [vmem:[%s382 + $0x38] sm:$0xff]
      %v419 = vld [vmem:[%s1] sm:$0xff]
      %v420 = vld [vmem:[%s1 + $0x8] sm:$0xff]
      %v421 = vld [vmem:[%s1 + $0x10] sm:$0xff]
      %v422 = vld [vmem:[%s1 + $0x18] sm:$0xff]
      %v423 = vld [vmem:[%s2] sm:$0x1]
      %v425 = vlaneseq
      %v426 = vshrl.u32 %v425, 7
      %v427 = vsub.s32 0, %v426
      %v428 = vrot.slane %v423, %v427
      %vm430 = vcmask 261120
      %v432 = vsel %vm430, %v411, 0
      %v435 = vsel %vm430, %v412, 0
      %v438 = vsel %vm430, %v413, 0
      %v441 = vsel %vm430, %v414, 0
      %v444 = vsel %vm430, %v415, 0
      %v447 = vsel %vm430, %v416, 0
      %v450 = vsel %vm430, %v417, 0
      %v453 = vsel %vm430, %v418, 0
      %455 = vmatprep.subr.mxu0 0.0
      %456 = vmatpush1.msra.mxu0 0.0
      %457 = vmatprep.subr.mxu0 0.0
      %458 = vmatpush1.msra.mxu0 0.0
      %459 = vmatprep.subr.mxu0 0.0
      %460 = vmatpush1.msra.mxu0 0.0
      %461 = vmatprep.subr.mxu0 0.0
      %462 = vmatpush1.msra.mxu0 0.0
      %463 = vmatprep.subr.mxu0 0.0
      %464 = vmatpush1.msra.mxu0 0.0
      %465 = vmatprep.subr.mxu0 0.0
      %466 = vmatpush1.msra.mxu0 0.0
      %467 = vmatprep.subr.mxu0 0.0
      %468 = vmatpush1.msra.mxu0 0.0
      %469 = vmatprep.subr.mxu0 0.0
      %470 = vmatpush1.msra.mxu0 0.0
      %471 = vmatprep.subr.mxu0 0.0
      %472 = vmatpush1.msra.mxu0 0.0
      %473 = vmatprep.subr.mxu0 0.0
      %474 = vmatpush1.msra.mxu0 0.0
      %475 = vmatprep.subr.mxu0 0.0
      %476 = vmatpush1.msra.mxu0 0.0
      %477 = vmatprep.subr.mxu0 0.0
      %478 = vmatpush1.msra.mxu0 0.0
      %479 = vmatprep.subr.mxu0 0.0
      %480 = vmatpush1.msra.mxu0 %v422
      %481 = vmatprep.subr.mxu0 0.0
      %482 = vmatpush1.msra.mxu0 %v421
      %483 = vmatprep.subr.mxu0 0.0
      %484 = vmatpush1.msra.mxu0 %v420
      %485 = vmatprep.subr.mxu0 0.0
      %486 = vmatpush1.msra.mxu0 %v419
      %487 = vmatprep.subr.mxu0 0.0
      %488 = vmatpush2.msra.mxu0 0.0
      %489 = vmatprep.subr.mxu0 0.0
      %490 = vmatpush2.msra.mxu0 0.0
      %491 = vmatprep.subr.mxu0 0.0
      %492 = vmatpush2.msra.mxu0 0.0
      %493 = vmatprep.subr.mxu0 0.0
      %494 = vmatpush2.msra.mxu0 0.0
      %495 = vmatprep.subr.mxu0 0.0
      %496 = vmatpush2.msra.mxu0 0.0
      %497 = vmatprep.subr.mxu0 0.0
      %498 = vmatpush2.msra.mxu0 0.0
      %499 = vmatprep.subr.mxu0 0.0
      %500 = vmatpush2.msra.mxu0 0.0
      %501 = vmatprep.subr.mxu0 0.0
      %502 = vmatpush2.msra.mxu0 0.0
      %503 = vmatprep.subr.mxu0 0.0
      %504 = vmatpush2.msra.mxu0 0.0
      %505 = vmatprep.subr.mxu0 0.0
      %506 = vmatpush2.msra.mxu0 0.0
      %507 = vmatprep.subr.mxu0 0.0
      %508 = vmatpush2.msra.mxu0 0.0
      %509 = vmatprep.subr.mxu0 0.0
      %510 = vmatpush2.msra.mxu0 0.0
      %511 = vmatprep.subr.mxu0 0.0
      %512 = vmatpush2.msra.mxu0 0.0
      %513 = vmatprep.subr.mxu0 0.0
      %514 = vmatpush2.msra.mxu0 0.0
      %515 = vmatprep.subr.mxu0 0.0
      %516 = vmatpush2.msra.mxu0 0.0
      %517 = vmatprep.subr.mxu0 0.0
      %518 = vmatpush2.msra.mxu0 0.0
      %519 = vmatprep.mubr.f32.mxu0 0.0
      %520 = vmatmul.mubr.f32.gmra.mxu0 %v432
      %v521 = vpop.f32.mrf.mxu0
      %v522 = vadd.f32 %v428, %v521
      %v523 = vpop.f32.mrf.mxu0
      %524 = vmatprep.mubr.f32.mxu0 0.0
      %525 = vmatmul.mubr.f32.gmra.mxu0 %v435
      %v526 = vpop.f32.mrf.mxu0
      %v527 = vadd.f32 %v428, %v526
      %v528 = vpop.f32.mrf.mxu0
      %529 = vmatprep.mubr.f32.mxu0 0.0
      %530 = vmatmul.mubr.f32.gmra.mxu0 %v438
      %v531 = vpop.f32.mrf.mxu0
      %v532 = vadd.f32 %v428, %v531
      %v533 = vpop.f32.mrf.mxu0
      %534 = vmatprep.mubr.f32.mxu0 0.0
      %535 = vmatmul.mubr.f32.gmra.mxu0 %v441
      %v536 = vpop.f32.mrf.mxu0
      %v537 = vadd.f32 %v428, %v536
      %v538 = vpop.f32.mrf.mxu0
      %539 = vmatprep.mubr.f32.mxu0 0.0
      %540 = vmatmul.mubr.f32.gmra.mxu0 %v444
      %v541 = vpop.f32.mrf.mxu0
      %v542 = vadd.f32 %v428, %v541
      %v543 = vpop.f32.mrf.mxu0
      %544 = vmatprep.mubr.f32.mxu0 0.0
      %545 = vmatmul.mubr.f32.gmra.mxu0 %v447
      %v546 = vpop.f32.mrf.mxu0
      %v547 = vadd.f32 %v428, %v546
      %v548 = vpop.f32.mrf.mxu0
      %549 = vmatprep.mubr.f32.mxu0 0.0
      %550 = vmatmul.mubr.f32.gmra.mxu0 %v450
      %v551 = vpop.f32.mrf.mxu0
      %v552 = vadd.f32 %v428, %v551
      %v553 = vpop.f32.mrf.mxu0
      %554 = vmatprep.mubr.f32.mxu0 0.0
      %555 = vmatmul.mubr.f32.gmra.mxu0 %v453
      %v556 = vpop.f32.mrf.mxu0
      %v557 = vadd.f32 %v428, %v556
      %v558 = vpop.f32.mrf.mxu0
      %559 = vdwg.mxu0
      %v560 = vmax.f32 %v522, 0.0
      %v561 = vmax.f32 %v527, 0.0
      %v562 = vmax.f32 %v532, 0.0
      %v563 = vmax.f32 %v537, 0.0
      %v564 = vmax.f32 %v542, 0.0
      %v565 = vmax.f32 %v547, 0.0
      %v566 = vmax.f32 %v552, 0.0
      %v567 = vmax.f32 %v557, 0.0
      %v568 = vld [vmem:[%s3] sm:$0xff]
      %v569 = vld [vmem:[%s3 + $0x8] sm:$0xff]
      %v570 = vld [vmem:[%s4] sm:$0x1]
      %v572 = vlaneseq
      %v573 = vshrl.u32 %v572, 7
      %v574 = vsub.s32 0, %v573
      %v575 = vrot.slane %v570, %v574
      %vm577 = vcmask 130048
      %v579 = vsel %vm577, %v560, 0
      %v582 = vsel %vm577, %v561, 0
      %v585 = vsel %vm577, %v562, 0
      %v588 = vsel %vm577, %v563, 0
      %v591 = vsel %vm577, %v564, 0
      %v594 = vsel %vm577, %v565, 0
      %v597 = vsel %vm577, %v566, 0
      %v600 = vsel %vm577, %v567, 0
      %602 = vmatprep.subr.mxu0 0.0
      %603 = vmatpush1.msra.mxu0 0.0
      %604 = vmatprep.subr.mxu0 0.0
      %605 = vmatpush1.msra.mxu0 0.0
      %606 = vmatprep.subr.mxu0 0.0
      %607 = vmatpush1.msra.mxu0 0.0
      %608 = vmatprep.subr.mxu0 0.0
      %609 = vmatpush1.msra.mxu0 0.0
      %610 = vmatprep.subr.mxu0 0.0
      %611 = vmatpush1.msra.mxu0 0.0
      %612 = vmatprep.subr.mxu0 0.0
      %613 = vmatpush1.msra.mxu0 0.0
      %614 = vmatprep.subr.mxu0 0.0
      %615 = vmatpush1.msra.mxu0 0.0
      %616 = vmatprep.subr.mxu0 0.0
      %617 = vmatpush1.msra.mxu0 0.0
      %618 = vmatprep.subr.mxu0 0.0
      %619 = vmatpush1.msra.mxu0 0.0
      %620 = vmatprep.subr.mxu0 0.0
      %621 = vmatpush1.msra.mxu0 0.0
      %622 = vmatprep.subr.mxu0 0.0
      %623 = vmatpush1.msra.mxu0 0.0
      %624 = vmatprep.subr.mxu0 0.0
      %625 = vmatpush1.msra.mxu0 0.0
      %626 = vmatprep.subr.mxu0 0.0
      %627 = vmatpush1.msra.mxu0 0.0
      %628 = vmatprep.subr.mxu0 0.0
      %629 = vmatpush1.msra.mxu0 0.0
      %630 = vmatprep.subr.mxu0 0.0
      %631 = vmatpush1.msra.mxu0 %v569
      %632 = vmatprep.subr.mxu0 0.0
      %633 = vmatpush1.msra.mxu0 %v568
      %634 = vmatprep.subr.mxu0 0.0
      %635 = vmatpush2.msra.mxu0 0.0
      %636 = vmatprep.subr.mxu0 0.0
      %637 = vmatpush2.msra.mxu0 0.0
      %638 = vmatprep.subr.mxu0 0.0
      %639 = vmatpush2.msra.mxu0 0.0
      %640 = vmatprep.subr.mxu0 0.0
      %641 = vmatpush2.msra.mxu0 0.0
      %642 = vmatprep.subr.mxu0 0.0
      %643 = vmatpush2.msra.mxu0 0.0
      %644 = vmatprep.subr.mxu0 0.0
      %645 = vmatpush2.msra.mxu0 0.0
      %646 = vmatprep.subr.mxu0 0.0
      %647 = vmatpush2.msra.mxu0 0.0
      %648 = vmatprep.subr.mxu0 0.0
      %649 = vmatpush2.msra.mxu0 0.0
      %650 = vmatprep.subr.mxu0 0.0
      %651 = vmatpush2.msra.mxu0 0.0
      %652 = vmatprep.subr.mxu0 0.0
      %653 = vmatpush2.msra.mxu0 0.0
      %654 = vmatprep.subr.mxu0 0.0
      %655 = vmatpush2.msra.mxu0 0.0
      %656 = vmatprep.subr.mxu0 0.0
      %657 = vmatpush2.msra.mxu0 0.0
      %658 = vmatprep.subr.mxu0 0.0
      %659 = vmatpush2.msra.mxu0 0.0
      %660 = vmatprep.subr.mxu0 0.0
      %661 = vmatpush2.msra.mxu0 0.0
      %662 = vmatprep.subr.mxu0 0.0
      %663 = vmatpush2.msra.mxu0 0.0
      %664 = vmatprep.subr.mxu0 0.0
      %665 = vmatpush2.msra.mxu0 0.0
      %666 = vmatprep.mubr.f32.mxu0 0.0
      %667 = vmatmul.mubr.f32.gmra.mxu0 %v579
      %v668 = vpop.f32.mrf.mxu0
      %v669 = vadd.f32 %v575, %v668
      %v670 = vpop.f32.mrf.mxu0
      %671 = vmatprep.mubr.f32.mxu0 0.0
      %672 = vmatmul.mubr.f32.gmra.mxu0 %v582
      %v673 = vpop.f32.mrf.mxu0
      %v674 = vadd.f32 %v575, %v673
      %v675 = vpop.f32.mrf.mxu0
      %676 = vmatprep.mubr.f32.mxu0 0.0
      %677 = vmatmul.mubr.f32.gmra.mxu0 %v585
      %v678 = vpop.f32.mrf.mxu0
      %v679 = vadd.f32 %v575, %v678
      %v680 = vpop.f32.mrf.mxu0
      %681 = vmatprep.mubr.f32.mxu0 0.0
      %682 = vmatmul.mubr.f32.gmra.mxu0 %v588
      %v683 = vpop.f32.mrf.mxu0
      %v684 = vadd.f32 %v575, %v683
      %v685 = vpop.f32.mrf.mxu0
      %686 = vmatprep.mubr.f32.mxu0 0.0
      %687 = vmatmul.mubr.f32.gmra.mxu0 %v591
      %v688 = vpop.f32.mrf.mxu0
      %v689 = vadd.f32 %v575, %v688
      %v690 = vpop.f32.mrf.mxu0
      %691 = vmatprep.mubr.f32.mxu0 0.0
      %692 = vmatmul.mubr.f32.gmra.mxu0 %v594
      %v693 = vpop.f32.mrf.mxu0
      %v694 = vadd.f32 %v575, %v693
      %v695 = vpop.f32.mrf.mxu0
      %696 = vmatprep.mubr.f32.mxu0 0.0
      %697 = vmatmul.mubr.f32.gmra.mxu0 %v597
      %v698 = vpop.f32.mrf.mxu0
      %v699 = vadd.f32 %v575, %v698
      %v700 = vpop.f32.mrf.mxu0
      %701 = vmatprep.mubr.f32.mxu0 0.0
      %702 = vmatmul.mubr.f32.gmra.mxu0 %v600
      %v703 = vpop.f32.mrf.mxu0
      %v704 = vadd.f32 %v575, %v703
      %v705 = vpop.f32.mrf.mxu0
      %706 = vdwg.mxu0
      %v707 = vld [vmem:[%s388] sm:$0xff]
      %v708 = vld [vmem:[%s388 + $0x8] sm:$0xff]
      %v709 = vld [vmem:[%s388 + $0x10] sm:$0xff]
      %v710 = vld [vmem:[%s388 + $0x18] sm:$0xff]
      %v711 = vld [vmem:[%s388 + $0x20] sm:$0xff]
      %v712 = vld [vmem:[%s388 + $0x28] sm:$0xff]
      %v713 = vld [vmem:[%s388 + $0x30] sm:$0xff]
      %v714 = vld [vmem:[%s388 + $0x38] sm:$0xff]
      %v715 = vlaneseq
      %v716 = vand.u32 %v715, 127
      %v717 = vlaneseq
      %v718 = vshrl.u32 %v717, 7
      %v719 = vsub.s32 0, %v718
      %v720 = vrot.slane %v707, %v719
      %722 = vbcast.lane.b32.xlu0 %v720, 256
      %v723 = vpop.permute.xlu0 %722
      %v724 = vlaneseq
      %v725 = vshrl.u32 %v724, 7
      %v726 = vsub.s32 1, %v725
      %v727 = vrot.slane %v707, %v726
      %729 = vbcast.lane.b32.xlu0 %v727, 256
      %v730 = vpop.permute.xlu0 %729
      %v731 = vlaneseq
      %v732 = vshrl.u32 %v731, 7
      %v733 = vsub.s32 2, %v732
      %v734 = vrot.slane %v707, %v733
      %736 = vbcast.lane.b32.xlu0 %v734, 256
      %v737 = vpop.permute.xlu0 %736
      %v738 = vlaneseq
      %v739 = vshrl.u32 %v738, 7
      %v740 = vsub.s32 3, %v739
      %v741 = vrot.slane %v707, %v740
      %743 = vbcast.lane.b32.xlu0 %v741, 256
      %v744 = vpop.permute.xlu0 %743
      %v745 = vlaneseq
      %v746 = vshrl.u32 %v745, 7
      %v747 = vsub.s32 4, %v746
      %v748 = vrot.slane %v707, %v747
      %750 = vbcast.lane.b32.xlu0 %v748, 256
      %v751 = vpop.permute.xlu0 %750
      %v752 = vlaneseq
      %v753 = vshrl.u32 %v752, 7
      %v754 = vsub.s32 5, %v753
      %v755 = vrot.slane %v707, %v754
      %757 = vbcast.lane.b32.xlu0 %v755, 256
      %v758 = vpop.permute.xlu0 %757
      %v759 = vlaneseq
      %v760 = vshrl.u32 %v759, 7
      %v761 = vsub.s32 6, %v760
      %v762 = vrot.slane %v707, %v761
      %764 = vbcast.lane.b32.xlu0 %v762, 256
      %v765 = vpop.permute.xlu0 %764
      %v766 = vlaneseq
      %v767 = vshrl.u32 %v766, 7
      %v768 = vsub.s32 7, %v767
      %v769 = vrot.slane %v707, %v768
      %771 = vbcast.lane.b32.xlu0 %v769, 256
      %v772 = vpop.permute.xlu0 %771
      %v773 = vlaneseq
      %v774 = vshrl.u32 %v773, 7
      %v775 = vsub.s32 0, %v774
      %v776 = vrot.slane %v708, %v775
      %778 = vbcast.lane.b32.xlu0 %v776, 256
      %v779 = vpop.permute.xlu0 %778
      %v780 = vlaneseq
      %v781 = vshrl.u32 %v780, 7
      %v782 = vsub.s32 1, %v781
      %v783 = vrot.slane %v708, %v782
      %785 = vbcast.lane.b32.xlu0 %v783, 256
      %v786 = vpop.permute.xlu0 %785
      %v787 = vlaneseq
      %v788 = vshrl.u32 %v787, 7
      %v789 = vsub.s32 2, %v788
      %v790 = vrot.slane %v708, %v789
      %792 = vbcast.lane.b32.xlu0 %v790, 256
      %v793 = vpop.permute.xlu0 %792
      %v794 = vlaneseq
      %v795 = vshrl.u32 %v794, 7
      %v796 = vsub.s32 3, %v795
      %v797 = vrot.slane %v708, %v796
      %799 = vbcast.lane.b32.xlu0 %v797, 256
      %v800 = vpop.permute.xlu0 %799
      %v801 = vlaneseq
      %v802 = vshrl.u32 %v801, 7
      %v803 = vsub.s32 4, %v802
      %v804 = vrot.slane %v708, %v803
      %806 = vbcast.lane.b32.xlu0 %v804, 256
      %v807 = vpop.permute.xlu0 %806
      %v808 = vlaneseq
      %v809 = vshrl.u32 %v808, 7
      %v810 = vsub.s32 5, %v809
      %v811 = vrot.slane %v708, %v810
      %813 = vbcast.lane.b32.xlu0 %v811, 256
      %v814 = vpop.permute.xlu0 %813
      %v815 = vlaneseq
      %v816 = vshrl.u32 %v815, 7
      %v817 = vsub.s32 6, %v816
      %v818 = vrot.slane %v708, %v817
      %820 = vbcast.lane.b32.xlu0 %v818, 256
      %v821 = vpop.permute.xlu0 %820
      %v822 = vlaneseq
      %v823 = vshrl.u32 %v822, 7
      %v824 = vsub.s32 7, %v823
      %v825 = vrot.slane %v708, %v824
      %827 = vbcast.lane.b32.xlu0 %v825, 256
      %v828 = vpop.permute.xlu0 %827
      %v829 = vlaneseq
      %v830 = vshrl.u32 %v829, 7
      %v831 = vsub.s32 0, %v830
      %v832 = vrot.slane %v709, %v831
      %834 = vbcast.lane.b32.xlu0 %v832, 256
      %v835 = vpop.permute.xlu0 %834
      %v836 = vlaneseq
      %v837 = vshrl.u32 %v836, 7
      %v838 = vsub.s32 1, %v837
      %v839 = vrot.slane %v709, %v838
      %841 = vbcast.lane.b32.xlu0 %v839, 256
      %v842 = vpop.permute.xlu0 %841
      %v843 = vlaneseq
      %v844 = vshrl.u32 %v843, 7
      %v845 = vsub.s32 2, %v844
      %v846 = vrot.slane %v709, %v845
      %848 = vbcast.lane.b32.xlu0 %v846, 256
      %v849 = vpop.permute.xlu0 %848
      %v850 = vlaneseq
      %v851 = vshrl.u32 %v850, 7
      %v852 = vsub.s32 3, %v851
      %v853 = vrot.slane %v709, %v852
      %855 = vbcast.lane.b32.xlu0 %v853, 256
      %v856 = vpop.permute.xlu0 %855
      %v857 = vlaneseq
      %v858 = vshrl.u32 %v857, 7
      %v859 = vsub.s32 4, %v858
      %v860 = vrot.slane %v709, %v859
      %862 = vbcast.lane.b32.xlu0 %v860, 256
      %v863 = vpop.permute.xlu0 %862
      %v864 = vlaneseq
      %v865 = vshrl.u32 %v864, 7
      %v866 = vsub.s32 5, %v865
      %v867 = vrot.slane %v709, %v866
      %869 = vbcast.lane.b32.xlu0 %v867, 256
      %v870 = vpop.permute.xlu0 %869
      %v871 = vlaneseq
      %v872 = vshrl.u32 %v871, 7
      %v873 = vsub.s32 6, %v872
      %v874 = vrot.slane %v709, %v873
      %876 = vbcast.lane.b32.xlu0 %v874, 256
      %v877 = vpop.permute.xlu0 %876
      %v878 = vlaneseq
      %v879 = vshrl.u32 %v878, 7
      %v880 = vsub.s32 7, %v879
      %v881 = vrot.slane %v709, %v880
      %883 = vbcast.lane.b32.xlu0 %v881, 256
      %v884 = vpop.permute.xlu0 %883
      %v885 = vlaneseq
      %v886 = vshrl.u32 %v885, 7
      %v887 = vsub.s32 0, %v886
      %v888 = vrot.slane %v710, %v887
      %890 = vbcast.lane.b32.xlu0 %v888, 256
      %v891 = vpop.permute.xlu0 %890
      %v892 = vlaneseq
      %v893 = vshrl.u32 %v892, 7
      %v894 = vsub.s32 1, %v893
      %v895 = vrot.slane %v710, %v894
      %897 = vbcast.lane.b32.xlu0 %v895, 256
      %v898 = vpop.permute.xlu0 %897
      %v899 = vlaneseq
      %v900 = vshrl.u32 %v899, 7
      %v901 = vsub.s32 2, %v900
      %v902 = vrot.slane %v710, %v901
      %904 = vbcast.lane.b32.xlu0 %v902, 256
      %v905 = vpop.permute.xlu0 %904
      %v906 = vlaneseq
      %v907 = vshrl.u32 %v906, 7
      %v908 = vsub.s32 3, %v907
      %v909 = vrot.slane %v710, %v908
      %911 = vbcast.lane.b32.xlu0 %v909, 256
      %v912 = vpop.permute.xlu0 %911
      %v913 = vlaneseq
      %v914 = vshrl.u32 %v913, 7
      %v915 = vsub.s32 4, %v914
      %v916 = vrot.slane %v710, %v915
      %918 = vbcast.lane.b32.xlu0 %v916, 256
      %v919 = vpop.permute.xlu0 %918
      %v920 = vlaneseq
      %v921 = vshrl.u32 %v920, 7
      %v922 = vsub.s32 5, %v921
      %v923 = vrot.slane %v710, %v922
      %925 = vbcast.lane.b32.xlu0 %v923, 256
      %v926 = vpop.permute.xlu0 %925
      %v927 = vlaneseq
      %v928 = vshrl.u32 %v927, 7
      %v929 = vsub.s32 6, %v928
      %v930 = vrot.slane %v710, %v929
      %932 = vbcast.lane.b32.xlu0 %v930, 256
      %v933 = vpop.permute.xlu0 %932
      %v934 = vlaneseq
      %v935 = vshrl.u32 %v934, 7
      %v936 = vsub.s32 7, %v935
      %v937 = vrot.slane %v710, %v936
      %939 = vbcast.lane.b32.xlu0 %v937, 256
      %v940 = vpop.permute.xlu0 %939
      %v941 = vlaneseq
      %v942 = vshrl.u32 %v941, 7
      %v943 = vsub.s32 0, %v942
      %v944 = vrot.slane %v711, %v943
      %946 = vbcast.lane.b32.xlu0 %v944, 256
      %v947 = vpop.permute.xlu0 %946
      %v948 = vlaneseq
      %v949 = vshrl.u32 %v948, 7
      %v950 = vsub.s32 1, %v949
      %v951 = vrot.slane %v711, %v950
      %953 = vbcast.lane.b32.xlu0 %v951, 256
      %v954 = vpop.permute.xlu0 %953
      %v955 = vlaneseq
      %v956 = vshrl.u32 %v955, 7
      %v957 = vsub.s32 2, %v956
      %v958 = vrot.slane %v711, %v957
      %960 = vbcast.lane.b32.xlu0 %v958, 256
      %v961 = vpop.permute.xlu0 %960
      %v962 = vlaneseq
      %v963 = vshrl.u32 %v962, 7
      %v964 = vsub.s32 3, %v963
      %v965 = vrot.slane %v711, %v964
      %967 = vbcast.lane.b32.xlu0 %v965, 256
      %v968 = vpop.permute.xlu0 %967
      %v969 = vlaneseq
      %v970 = vshrl.u32 %v969, 7
      %v971 = vsub.s32 4, %v970
      %v972 = vrot.slane %v711, %v971
      %974 = vbcast.lane.b32.xlu0 %v972, 256
      %v975 = vpop.permute.xlu0 %974
      %v976 = vlaneseq
      %v977 = vshrl.u32 %v976, 7
      %v978 = vsub.s32 5, %v977
      %v979 = vrot.slane %v711, %v978
      %981 = vbcast.lane.b32.xlu0 %v979, 256
      %v982 = vpop.permute.xlu0 %981
      %v983 = vlaneseq
      %v984 = vshrl.u32 %v983, 7
      %v985 = vsub.s32 6, %v984
      %v986 = vrot.slane %v711, %v985
      %988 = vbcast.lane.b32.xlu0 %v986, 256
      %v989 = vpop.permute.xlu0 %988
      %v990 = vlaneseq
      %v991 = vshrl.u32 %v990, 7
      %v992 = vsub.s32 7, %v991
      %v993 = vrot.slane %v711, %v992
      %995 = vbcast.lane.b32.xlu0 %v993, 256
      %v996 = vpop.permute.xlu0 %995
      %v997 = vlaneseq
      %v998 = vshrl.u32 %v997, 7
      %v999 = vsub.s32 0, %v998
      %v1000 = vrot.slane %v712, %v999
      %1002 = vbcast.lane.b32.xlu0 %v1000, 256
      %v1003 = vpop.permute.xlu0 %1002
      %v1004 = vlaneseq
      %v1005 = vshrl.u32 %v1004, 7
      %v1006 = vsub.s32 1, %v1005
      %v1007 = vrot.slane %v712, %v1006
      %1009 = vbcast.lane.b32.xlu0 %v1007, 256
      %v1010 = vpop.permute.xlu0 %1009
      %v1011 = vlaneseq
      %v1012 = vshrl.u32 %v1011, 7
      %v1013 = vsub.s32 2, %v1012
      %v1014 = vrot.slane %v712, %v1013
      %1016 = vbcast.lane.b32.xlu0 %v1014, 256
      %v1017 = vpop.permute.xlu0 %1016
      %v1018 = vlaneseq
      %v1019 = vshrl.u32 %v1018, 7
      %v1020 = vsub.s32 3, %v1019
      %v1021 = vrot.slane %v712, %v1020
      %1023 = vbcast.lane.b32.xlu0 %v1021, 256
      %v1024 = vpop.permute.xlu0 %1023
      %v1025 = vlaneseq
      %v1026 = vshrl.u32 %v1025, 7
      %v1027 = vsub.s32 4, %v1026
      %v1028 = vrot.slane %v712, %v1027
      %1030 = vbcast.lane.b32.xlu0 %v1028, 256
      %v1031 = vpop.permute.xlu0 %1030
      %v1032 = vlaneseq
      %v1033 = vshrl.u32 %v1032, 7
      %v1034 = vsub.s32 5, %v1033
      %v1035 = vrot.slane %v712, %v1034
      %1037 = vbcast.lane.b32.xlu0 %v1035, 256
      %v1038 = vpop.permute.xlu0 %1037
      %v1039 = vlaneseq
      %v1040 = vshrl.u32 %v1039, 7
      %v1041 = vsub.s32 6, %v1040
      %v1042 = vrot.slane %v712, %v1041
      %1044 = vbcast.lane.b32.xlu0 %v1042, 256
      %v1045 = vpop.permute.xlu0 %1044
      %v1046 = vlaneseq
      %v1047 = vshrl.u32 %v1046, 7
      %v1048 = vsub.s32 7, %v1047
      %v1049 = vrot.slane %v712, %v1048
      %1051 = vbcast.lane.b32.xlu0 %v1049, 256
      %v1052 = vpop.permute.xlu0 %1051
      %v1053 = vlaneseq
      %v1054 = vshrl.u32 %v1053, 7
      %v1055 = vsub.s32 0, %v1054
      %v1056 = vrot.slane %v713, %v1055
      %1058 = vbcast.lane.b32.xlu0 %v1056, 256
      %v1059 = vpop.permute.xlu0 %1058
      %v1060 = vlaneseq
      %v1061 = vshrl.u32 %v1060, 7
      %v1062 = vsub.s32 1, %v1061
      %v1063 = vrot.slane %v713, %v1062
      %1065 = vbcast.lane.b32.xlu0 %v1063, 256
      %v1066 = vpop.permute.xlu0 %1065
      %v1067 = vlaneseq
      %v1068 = vshrl.u32 %v1067, 7
      %v1069 = vsub.s32 2, %v1068
      %v1070 = vrot.slane %v713, %v1069
      %1072 = vbcast.lane.b32.xlu0 %v1070, 256
      %v1073 = vpop.permute.xlu0 %1072
      %v1074 = vlaneseq
      %v1075 = vshrl.u32 %v1074, 7
      %v1076 = vsub.s32 3, %v1075
      %v1077 = vrot.slane %v713, %v1076
      %1079 = vbcast.lane.b32.xlu0 %v1077, 256
      %v1080 = vpop.permute.xlu0 %1079
      %v1081 = vlaneseq
      %v1082 = vshrl.u32 %v1081, 7
      %v1083 = vsub.s32 4, %v1082
      %v1084 = vrot.slane %v713, %v1083
      %1086 = vbcast.lane.b32.xlu0 %v1084, 256
      %v1087 = vpop.permute.xlu0 %1086
      %v1088 = vlaneseq
      %v1089 = vshrl.u32 %v1088, 7
      %v1090 = vsub.s32 5, %v1089
      %v1091 = vrot.slane %v713, %v1090
      %1093 = vbcast.lane.b32.xlu0 %v1091, 256
      %v1094 = vpop.permute.xlu0 %1093
      %v1095 = vlaneseq
      %v1096 = vshrl.u32 %v1095, 7
      %v1097 = vsub.s32 6, %v1096
      %v1098 = vrot.slane %v713, %v1097
      %1100 = vbcast.lane.b32.xlu0 %v1098, 256
      %v1101 = vpop.permute.xlu0 %1100
      %v1102 = vlaneseq
      %v1103 = vshrl.u32 %v1102, 7
      %v1104 = vsub.s32 7, %v1103
      %v1105 = vrot.slane %v713, %v1104
      %1107 = vbcast.lane.b32.xlu0 %v1105, 256
      %v1108 = vpop.permute.xlu0 %1107
      %v1109 = vlaneseq
      %v1110 = vshrl.u32 %v1109, 7
      %v1111 = vsub.s32 0, %v1110
      %v1112 = vrot.slane %v714, %v1111
      %1114 = vbcast.lane.b32.xlu0 %v1112, 256
      %v1115 = vpop.permute.xlu0 %1114
      %v1116 = vlaneseq
      %v1117 = vshrl.u32 %v1116, 7
      %v1118 = vsub.s32 1, %v1117
      %v1119 = vrot.slane %v714, %v1118
      %1121 = vbcast.lane.b32.xlu0 %v1119, 256
      %v1122 = vpop.permute.xlu0 %1121
      %v1123 = vlaneseq
      %v1124 = vshrl.u32 %v1123, 7
      %v1125 = vsub.s32 2, %v1124
      %v1126 = vrot.slane %v714, %v1125
      %1128 = vbcast.lane.b32.xlu0 %v1126, 256
      %v1129 = vpop.permute.xlu0 %1128
      %v1130 = vlaneseq
      %v1131 = vshrl.u32 %v1130, 7
      %v1132 = vsub.s32 3, %v1131
      %v1133 = vrot.slane %v714, %v1132
      %1135 = vbcast.lane.b32.xlu0 %v1133, 256
      %v1136 = vpop.permute.xlu0 %1135
      %v1137 = vlaneseq
      %v1138 = vshrl.u32 %v1137, 7
      %v1139 = vsub.s32 4, %v1138
      %v1140 = vrot.slane %v714, %v1139
      %1142 = vbcast.lane.b32.xlu0 %v1140, 256
      %v1143 = vpop.permute.xlu0 %1142
      %v1144 = vlaneseq
      %v1145 = vshrl.u32 %v1144, 7
      %v1146 = vsub.s32 5, %v1145
      %v1147 = vrot.slane %v714, %v1146
      %1149 = vbcast.lane.b32.xlu0 %v1147, 256
      %v1150 = vpop.permute.xlu0 %1149
      %v1151 = vlaneseq
      %v1152 = vshrl.u32 %v1151, 7
      %v1153 = vsub.s32 6, %v1152
      %v1154 = vrot.slane %v714, %v1153
      %1156 = vbcast.lane.b32.xlu0 %v1154, 256
      %v1157 = vpop.permute.xlu0 %1156
      %v1158 = vlaneseq
      %v1159 = vshrl.u32 %v1158, 7
      %v1160 = vsub.s32 7, %v1159
      %v1161 = vrot.slane %v714, %v1160
      %1163 = vbcast.lane.b32.xlu0 %v1161, 256
      %v1164 = vpop.permute.xlu0 %1163
      %vm1165 = vcmp.eq.s32.totalorder %v723, %v716
      %vm1166 = vcmp.eq.s32.totalorder %v730, %v716
      %vm1167 = vcmp.eq.s32.totalorder %v737, %v716
      %vm1168 = vcmp.eq.s32.totalorder %v744, %v716
      %vm1169 = vcmp.eq.s32.totalorder %v751, %v716
      %vm1170 = vcmp.eq.s32.totalorder %v758, %v716
      %vm1171 = vcmp.eq.s32.totalorder %v765, %v716
      %vm1172 = vcmp.eq.s32.totalorder %v772, %v716
      %vm1173 = vcmp.eq.s32.totalorder %v779, %v716
      %vm1174 = vcmp.eq.s32.totalorder %v786, %v716
      %vm1175 = vcmp.eq.s32.totalorder %v793, %v716
      %vm1176 = vcmp.eq.s32.totalorder %v800, %v716
      %vm1177 = vcmp.eq.s32.totalorder %v807, %v716
      %vm1178 = vcmp.eq.s32.totalorder %v814, %v716
      %vm1179 = vcmp.eq.s32.totalorder %v821, %v716
      %vm1180 = vcmp.eq.s32.totalorder %v828, %v716
      %vm1181 = vcmp.eq.s32.totalorder %v835, %v716
      %vm1182 = vcmp.eq.s32.totalorder %v842, %v716
      %vm1183 = vcmp.eq.s32.totalorder %v849, %v716
      %vm1184 = vcmp.eq.s32.totalorder %v856, %v716
      %vm1185 = vcmp.eq.s32.totalorder %v863, %v716
      %vm1186 = vcmp.eq.s32.totalorder %v870, %v716
      %vm1187 = vcmp.eq.s32.totalorder %v877, %v716
      %vm1188 = vcmp.eq.s32.totalorder %v884, %v716
      %vm1189 = vcmp.eq.s32.totalorder %v891, %v716
      %vm1190 = vcmp.eq.s32.totalorder %v898, %v716
      %vm1191 = vcmp.eq.s32.totalorder %v905, %v716
      %vm1192 = vcmp.eq.s32.totalorder %v912, %v716
      %vm1193 = vcmp.eq.s32.totalorder %v919, %v716
      %vm1194 = vcmp.eq.s32.totalorder %v926, %v716
      %vm1195 = vcmp.eq.s32.totalorder %v933, %v716
      %vm1196 = vcmp.eq.s32.totalorder %v940, %v716
      %vm1197 = vcmp.eq.s32.totalorder %v947, %v716
      %vm1198 = vcmp.eq.s32.totalorder %v954, %v716
      %vm1199 = vcmp.eq.s32.totalorder %v961, %v716
      %vm1200 = vcmp.eq.s32.totalorder %v968, %v716
      %vm1201 = vcmp.eq.s32.totalorder %v975, %v716
      %vm1202 = vcmp.eq.s32.totalorder %v982, %v716
      %vm1203 = vcmp.eq.s32.totalorder %v989, %v716
      %vm1204 = vcmp.eq.s32.totalorder %v996, %v716
      %vm1205 = vcmp.eq.s32.totalorder %v1003, %v716
      %vm1206 = vcmp.eq.s32.totalorder %v1010, %v716
      %vm1207 = vcmp.eq.s32.totalorder %v1017, %v716
      %vm1208 = vcmp.eq.s32.totalorder %v1024, %v716
      %vm1209 = vcmp.eq.s32.totalorder %v1031, %v716
      %vm1210 = vcmp.eq.s32.totalorder %v1038, %v716
      %vm1211 = vcmp.eq.s32.totalorder %v1045, %v716
      %vm1212 = vcmp.eq.s32.totalorder %v1052, %v716
      %vm1213 = vcmp.eq.s32.totalorder %v1059, %v716
      %vm1214 = vcmp.eq.s32.totalorder %v1066, %v716
      %vm1215 = vcmp.eq.s32.totalorder %v1073, %v716
      %vm1216 = vcmp.eq.s32.totalorder %v1080, %v716
      %vm1217 = vcmp.eq.s32.totalorder %v1087, %v716
      %vm1218 = vcmp.eq.s32.totalorder %v1094, %v716
      %vm1219 = vcmp.eq.s32.totalorder %v1101, %v716
      %vm1220 = vcmp.eq.s32.totalorder %v1108, %v716
      %vm1221 = vcmp.eq.s32.totalorder %v1115, %v716
      %vm1222 = vcmp.eq.s32.totalorder %v1122, %v716
      %vm1223 = vcmp.eq.s32.totalorder %v1129, %v716
      %vm1224 = vcmp.eq.s32.totalorder %v1136, %v716
      %vm1225 = vcmp.eq.s32.totalorder %v1143, %v716
      %vm1226 = vcmp.eq.s32.totalorder %v1150, %v716
      %vm1227 = vcmp.eq.s32.totalorder %v1157, %v716
      %vm1228 = vcmp.eq.s32.totalorder %v1164, %v716
      %v1237 = vcombine.high %v669, %v669
      %v1239 = vunpack.c.l.s4 1966171168
      %v1240 = vunpack.c.0.s8 %v1239
      %v1241 = vlaneseq
      %v1242 = vshrl.u32 %v1241, 7
      %v1243 = vsub.s32 %v1240, %v1242
      %v1244 = vrot.slane %v669, %v1243
      %v1246 = vunpack.c.l.s4 1966171168
      %v1247 = vunpack.c.0.s8 %v1246
      %v1248 = vlaneseq
      %v1249 = vshrl.u32 %v1248, 7
      %v1250 = vsub.s32 %v1247, %v1249
      %v1251 = vrot.slane %v1237, %v1250
      %v1252 = vcombine.high %v1244, %v1244
      %v1253 = vcombine.high %v1251, %v1251
      %v1255 = vunpack.c.l.s4 1966171168
      %v1256 = vunpack.c.0.s8 %v1255
      %v1257 = vlaneseq
      %v1258 = vshrl.u32 %v1257, 7
      %v1259 = vsub.s32 %v1256, %v1258
      %v1260 = vrot.slane %v1244, %v1259
      %v1262 = vunpack.c.l.s4 1966171168
      %v1263 = vunpack.c.0.s8 %v1262
      %v1264 = vlaneseq
      %v1265 = vshrl.u32 %v1264, 7
      %v1266 = vsub.s32 %v1263, %v1265
      %v1267 = vrot.slane %v1251, %v1266
      %v1269 = vunpack.c.l.s4 1966171168
      %v1270 = vunpack.c.0.s8 %v1269
      %v1271 = vlaneseq
      %v1272 = vshrl.u32 %v1271, 7
      %v1273 = vsub.s32 %v1270, %v1272
      %v1274 = vrot.slane %v1252, %v1273
      %v1276 = vunpack.c.l.s4 1966171168
      %v1277 = vunpack.c.0.s8 %v1276
      %v1278 = vlaneseq
      %v1279 = vshrl.u32 %v1278, 7
      %v1280 = vsub.s32 %v1277, %v1279
      %v1281 = vrot.slane %v1253, %v1280
      %v1282 = vcombine.high %v1260, %v1260
      %v1283 = vcombine.high %v1267, %v1267
      %v1284 = vcombine.high %v1274, %v1274
      %v1285 = vcombine.high %v1281, %v1281
      %v1286 = vcombine.high %v674, %v674
      %v1288 = vunpack.c.l.s4 1966171168
      %v1289 = vunpack.c.0.s8 %v1288
      %v1290 = vlaneseq
      %v1291 = vshrl.u32 %v1290, 7
      %v1292 = vsub.s32 %v1289, %v1291
      %v1293 = vrot.slane %v674, %v1292
      %v1295 = vunpack.c.l.s4 1966171168
      %v1296 = vunpack.c.0.s8 %v1295
      %v1297 = vlaneseq
      %v1298 = vshrl.u32 %v1297, 7
      %v1299 = vsub.s32 %v1296, %v1298
      %v1300 = vrot.slane %v1286, %v1299
      %v1301 = vcombine.high %v1293, %v1293
      %v1302 = vcombine.high %v1300, %v1300
      %v1304 = vunpack.c.l.s4 1966171168
      %v1305 = vunpack.c.0.s8 %v1304
      %v1306 = vlaneseq
      %v1307 = vshrl.u32 %v1306, 7
      %v1308 = vsub.s32 %v1305, %v1307
      %v1309 = vrot.slane %v1293, %v1308
      %v1311 = vunpack.c.l.s4 1966171168
      %v1312 = vunpack.c.0.s8 %v1311
      %v1313 = vlaneseq
      %v1314 = vshrl.u32 %v1313, 7
      %v1315 = vsub.s32 %v1312, %v1314
      %v1316 = vrot.slane %v1300, %v1315
      %v1318 = vunpack.c.l.s4 1966171168
      %v1319 = vunpack.c.0.s8 %v1318
      %v1320 = vlaneseq
      %v1321 = vshrl.u32 %v1320, 7
      %v1322 = vsub.s32 %v1319, %v1321
      %v1323 = vrot.slane %v1301, %v1322
      %v1325 = vunpack.c.l.s4 1966171168
      %v1326 = vunpack.c.0.s8 %v1325
      %v1327 = vlaneseq
      %v1328 = vshrl.u32 %v1327, 7
      %v1329 = vsub.s32 %v1326, %v1328
      %v1330 = vrot.slane %v1302, %v1329
      %v1331 = vcombine.high %v1309, %v1309
      %v1332 = vcombine.high %v1316, %v1316
      %v1333 = vcombine.high %v1323, %v1323
      %v1334 = vcombine.high %v1330, %v1330
      %v1335 = vcombine.high %v679, %v679
      %v1337 = vunpack.c.l.s4 1966171168
      %v1338 = vunpack.c.0.s8 %v1337
      %v1339 = vlaneseq
      %v1340 = vshrl.u32 %v1339, 7
      %v1341 = vsub.s32 %v1338, %v1340
      %v1342 = vrot.slane %v679, %v1341
      %v1344 = vunpack.c.l.s4 1966171168
      %v1345 = vunpack.c.0.s8 %v1344
      %v1346 = vlaneseq
      %v1347 = vshrl.u32 %v1346, 7
      %v1348 = vsub.s32 %v1345, %v1347
      %v1349 = vrot.slane %v1335, %v1348
      %v1350 = vcombine.high %v1342, %v1342
      %v1351 = vcombine.high %v1349, %v1349
      %v1353 = vunpack.c.l.s4 1966171168
      %v1354 = vunpack.c.0.s8 %v1353
      %v1355 = vlaneseq
      %v1356 = vshrl.u32 %v1355, 7
      %v1357 = vsub.s32 %v1354, %v1356
      %v1358 = vrot.slane %v1342, %v1357
      %v1360 = vunpack.c.l.s4 1966171168
      %v1361 = vunpack.c.0.s8 %v1360
      %v1362 = vlaneseq
      %v1363 = vshrl.u32 %v1362, 7
      %v1364 = vsub.s32 %v1361, %v1363
      %v1365 = vrot.slane %v1349, %v1364
      %v1367 = vunpack.c.l.s4 1966171168
      %v1368 = vunpack.c.0.s8 %v1367
      %v1369 = vlaneseq
      %v1370 = vshrl.u32 %v1369, 7
      %v1371 = vsub.s32 %v1368, %v1370
      %v1372 = vrot.slane %v1350, %v1371
      %v1374 = vunpack.c.l.s4 1966171168
      %v1375 = vunpack.c.0.s8 %v1374
      %v1376 = vlaneseq
      %v1377 = vshrl.u32 %v1376, 7
      %v1378 = vsub.s32 %v1375, %v1377
      %v1379 = vrot.slane %v1351, %v1378
      %v1380 = vcombine.high %v1358, %v1358
      %v1381 = vcombine.high %v1365, %v1365
      %v1382 = vcombine.high %v1372, %v1372
      %v1383 = vcombine.high %v1379, %v1379
      %v1384 = vcombine.high %v684, %v684
      %v1386 = vunpack.c.l.s4 1966171168
      %v1387 = vunpack.c.0.s8 %v1386
      %v1388 = vlaneseq
      %v1389 = vshrl.u32 %v1388, 7
      %v1390 = vsub.s32 %v1387, %v1389
      %v1391 = vrot.slane %v684, %v1390
      %v1393 = vunpack.c.l.s4 1966171168
      %v1394 = vunpack.c.0.s8 %v1393
      %v1395 = vlaneseq
      %v1396 = vshrl.u32 %v1395, 7
      %v1397 = vsub.s32 %v1394, %v1396
      %v1398 = vrot.slane %v1384, %v1397
      %v1399 = vcombine.high %v1391, %v1391
      %v1400 = vcombine.high %v1398, %v1398
      %v1402 = vunpack.c.l.s4 1966171168
      %v1403 = vunpack.c.0.s8 %v1402
      %v1404 = vlaneseq
      %v1405 = vshrl.u32 %v1404, 7
      %v1406 = vsub.s32 %v1403, %v1405
      %v1407 = vrot.slane %v1391, %v1406
      %v1409 = vunpack.c.l.s4 1966171168
      %v1410 = vunpack.c.0.s8 %v1409
      %v1411 = vlaneseq
      %v1412 = vshrl.u32 %v1411, 7
      %v1413 = vsub.s32 %v1410, %v1412
      %v1414 = vrot.slane %v1398, %v1413
      %v1416 = vunpack.c.l.s4 1966171168
      %v1417 = vunpack.c.0.s8 %v1416
      %v1418 = vlaneseq
      %v1419 = vshrl.u32 %v1418, 7
      %v1420 = vsub.s32 %v1417, %v1419
      %v1421 = vrot.slane %v1399, %v1420
      %v1423 = vunpack.c.l.s4 1966171168
      %v1424 = vunpack.c.0.s8 %v1423
      %v1425 = vlaneseq
      %v1426 = vshrl.u32 %v1425, 7
      %v1427 = vsub.s32 %v1424, %v1426
      %v1428 = vrot.slane %v1400, %v1427
      %v1429 = vcombine.high %v1407, %v1407
      %v1430 = vcombine.high %v1414, %v1414
      %v1431 = vcombine.high %v1421, %v1421
      %v1432 = vcombine.high %v1428, %v1428
      %v1433 = vcombine.high %v689, %v689
      %v1435 = vunpack.c.l.s4 1966171168
      %v1436 = vunpack.c.0.s8 %v1435
      %v1437 = vlaneseq
      %v1438 = vshrl.u32 %v1437, 7
      %v1439 = vsub.s32 %v1436, %v1438
      %v1440 = vrot.slane %v689, %v1439
      %v1442 = vunpack.c.l.s4 1966171168
      %v1443 = vunpack.c.0.s8 %v1442
      %v1444 = vlaneseq
      %v1445 = vshrl.u32 %v1444, 7
      %v1446 = vsub.s32 %v1443, %v1445
      %v1447 = vrot.slane %v1433, %v1446
      %v1448 = vcombine.high %v1440, %v1440
      %v1449 = vcombine.high %v1447, %v1447
      %v1451 = vunpack.c.l.s4 1966171168
      %v1452 = vunpack.c.0.s8 %v1451
      %v1453 = vlaneseq
      %v1454 = vshrl.u32 %v1453, 7
      %v1455 = vsub.s32 %v1452, %v1454
      %v1456 = vrot.slane %v1440, %v1455
      %v1458 = vunpack.c.l.s4 1966171168
      %v1459 = vunpack.c.0.s8 %v1458
      %v1460 = vlaneseq
      %v1461 = vshrl.u32 %v1460, 7
      %v1462 = vsub.s32 %v1459, %v1461
      %v1463 = vrot.slane %v1447, %v1462
      %v1465 = vunpack.c.l.s4 1966171168
      %v1466 = vunpack.c.0.s8 %v1465
      %v1467 = vlaneseq
      %v1468 = vshrl.u32 %v1467, 7
      %v1469 = vsub.s32 %v1466, %v1468
      %v1470 = vrot.slane %v1448, %v1469
      %v1472 = vunpack.c.l.s4 1966171168
      %v1473 = vunpack.c.0.s8 %v1472
      %v1474 = vlaneseq
      %v1475 = vshrl.u32 %v1474, 7
      %v1476 = vsub.s32 %v1473, %v1475
      %v1477 = vrot.slane %v1449, %v1476
      %v1478 = vcombine.high %v1456, %v1456
      %v1479 = vcombine.high %v1463, %v1463
      %v1480 = vcombine.high %v1470, %v1470
      %v1481 = vcombine.high %v1477, %v1477
      %v1482 = vcombine.high %v694, %v694
      %v1484 = vunpack.c.l.s4 1966171168
      %v1485 = vunpack.c.0.s8 %v1484
      %v1486 = vlaneseq
      %v1487 = vshrl.u32 %v1486, 7
      %v1488 = vsub.s32 %v1485, %v1487
      %v1489 = vrot.slane %v694, %v1488
      %v1491 = vunpack.c.l.s4 1966171168
      %v1492 = vunpack.c.0.s8 %v1491
      %v1493 = vlaneseq
      %v1494 = vshrl.u32 %v1493, 7
      %v1495 = vsub.s32 %v1492, %v1494
      %v1496 = vrot.slane %v1482, %v1495
      %v1497 = vcombine.high %v1489, %v1489
      %v1498 = vcombine.high %v1496, %v1496
      %v1500 = vunpack.c.l.s4 1966171168
      %v1501 = vunpack.c.0.s8 %v1500
      %v1502 = vlaneseq
      %v1503 = vshrl.u32 %v1502, 7
      %v1504 = vsub.s32 %v1501, %v1503
      %v1505 = vrot.slane %v1489, %v1504
      %v1507 = vunpack.c.l.s4 1966171168
      %v1508 = vunpack.c.0.s8 %v1507
      %v1509 = vlaneseq
      %v1510 = vshrl.u32 %v1509, 7
      %v1511 = vsub.s32 %v1508, %v1510
      %v1512 = vrot.slane %v1496, %v1511
      %v1514 = vunpack.c.l.s4 1966171168
      %v1515 = vunpack.c.0.s8 %v1514
      %v1516 = vlaneseq
      %v1517 = vshrl.u32 %v1516, 7
      %v1518 = vsub.s32 %v1515, %v1517
      %v1519 = vrot.slane %v1497, %v1518
      %v1521 = vunpack.c.l.s4 1966171168
      %v1522 = vunpack.c.0.s8 %v1521
      %v1523 = vlaneseq
      %v1524 = vshrl.u32 %v1523, 7
      %v1525 = vsub.s32 %v1522, %v1524
      %v1526 = vrot.slane %v1498, %v1525
      %v1527 = vcombine.high %v1505, %v1505
      %v1528 = vcombine.high %v1512, %v1512
      %v1529 = vcombine.high %v1519, %v1519
      %v1530 = vcombine.high %v1526, %v1526
      %v1531 = vcombine.high %v699, %v699
      %v1533 = vunpack.c.l.s4 1966171168
      %v1534 = vunpack.c.0.s8 %v1533
      %v1535 = vlaneseq
      %v1536 = vshrl.u32 %v1535, 7
      %v1537 = vsub.s32 %v1534, %v1536
      %v1538 = vrot.slane %v699, %v1537
      %v1540 = vunpack.c.l.s4 1966171168
      %v1541 = vunpack.c.0.s8 %v1540
      %v1542 = vlaneseq
      %v1543 = vshrl.u32 %v1542, 7
      %v1544 = vsub.s32 %v1541, %v1543
      %v1545 = vrot.slane %v1531, %v1544
      %v1546 = vcombine.high %v1538, %v1538
      %v1547 = vcombine.high %v1545, %v1545
      %v1549 = vunpack.c.l.s4 1966171168
      %v1550 = vunpack.c.0.s8 %v1549
      %v1551 = vlaneseq
      %v1552 = vshrl.u32 %v1551, 7
      %v1553 = vsub.s32 %v1550, %v1552
      %v1554 = vrot.slane %v1538, %v1553
      %v1556 = vunpack.c.l.s4 1966171168
      %v1557 = vunpack.c.0.s8 %v1556
      %v1558 = vlaneseq
      %v1559 = vshrl.u32 %v1558, 7
      %v1560 = vsub.s32 %v1557, %v1559
      %v1561 = vrot.slane %v1545, %v1560
      %v1563 = vunpack.c.l.s4 1966171168
      %v1564 = vunpack.c.0.s8 %v1563
      %v1565 = vlaneseq
      %v1566 = vshrl.u32 %v1565, 7
      %v1567 = vsub.s32 %v1564, %v1566
      %v1568 = vrot.slane %v1546, %v1567
      %v1570 = vunpack.c.l.s4 1966171168
      %v1571 = vunpack.c.0.s8 %v1570
      %v1572 = vlaneseq
      %v1573 = vshrl.u32 %v1572, 7
      %v1574 = vsub.s32 %v1571, %v1573
      %v1575 = vrot.slane %v1547, %v1574
      %v1576 = vcombine.high %v1554, %v1554
      %v1577 = vcombine.high %v1561, %v1561
      %v1578 = vcombine.high %v1568, %v1568
      %v1579 = vcombine.high %v1575, %v1575
      %v1580 = vcombine.high %v704, %v704
      %v1582 = vunpack.c.l.s4 1966171168
      %v1583 = vunpack.c.0.s8 %v1582
      %v1584 = vlaneseq
      %v1585 = vshrl.u32 %v1584, 7
      %v1586 = vsub.s32 %v1583, %v1585
      %v1587 = vrot.slane %v704, %v1586
      %v1589 = vunpack.c.l.s4 1966171168
      %v1590 = vunpack.c.0.s8 %v1589
      %v1591 = vlaneseq
      %v1592 = vshrl.u32 %v1591, 7
      %v1593 = vsub.s32 %v1590, %v1592
      %v1594 = vrot.slane %v1580, %v1593
      %v1595 = vcombine.high %v1587, %v1587
      %v1596 = vcombine.high %v1594, %v1594
      %v1598 = vunpack.c.l.s4 1966171168
      %v1599 = vunpack.c.0.s8 %v1598
      %v1600 = vlaneseq
      %v1601 = vshrl.u32 %v1600, 7
      %v1602 = vsub.s32 %v1599, %v1601
      %v1603 = vrot.slane %v1587, %v1602
      %v1605 = vunpack.c.l.s4 1966171168
      %v1606 = vunpack.c.0.s8 %v1605
      %v1607 = vlaneseq
      %v1608 = vshrl.u32 %v1607, 7
      %v1609 = vsub.s32 %v1606, %v1608
      %v1610 = vrot.slane %v1594, %v1609
      %v1612 = vunpack.c.l.s4 1966171168
      %v1613 = vunpack.c.0.s8 %v1612
      %v1614 = vlaneseq
      %v1615 = vshrl.u32 %v1614, 7
      %v1616 = vsub.s32 %v1613, %v1615
      %v1617 = vrot.slane %v1595, %v1616
      %v1619 = vunpack.c.l.s4 1966171168
      %v1620 = vunpack.c.0.s8 %v1619
      %v1621 = vlaneseq
      %v1622 = vshrl.u32 %v1621, 7
      %v1623 = vsub.s32 %v1620, %v1622
      %v1624 = vrot.slane %v1596, %v1623
      %v1625 = vcombine.high %v1603, %v1603
      %v1626 = vcombine.high %v1610, %v1610
      %v1627 = vcombine.high %v1617, %v1617
      %v1628 = vcombine.high %v1624, %v1624
      %v1629 = vlaneseq
      %v1630 = vshrl.u32 %v1629, 7
      %v1631 = vsub.s32 0, %v1630
      %v1632 = vrot.slane %v1260, %v1631
      %v1633 = vlaneseq
      %v1634 = vshrl.u32 %v1633, 7
      %v1635 = vsub.s32 0, %v1634
      %v1636 = vrot.slane %v1274, %v1635
      %v1637 = vlaneseq
      %v1638 = vshrl.u32 %v1637, 7
      %v1639 = vsub.s32 0, %v1638
      %v1640 = vrot.slane %v1282, %v1639
      %v1641 = vlaneseq
      %v1642 = vshrl.u32 %v1641, 7
      %v1643 = vsub.s32 0, %v1642
      %v1644 = vrot.slane %v1284, %v1643
      %v1645 = vlaneseq
      %v1646 = vshrl.u32 %v1645, 7
      %v1647 = vsub.s32 0, %v1646
      %v1648 = vrot.slane %v1267, %v1647
      %v1649 = vlaneseq
      %v1650 = vshrl.u32 %v1649, 7
      %v1651 = vsub.s32 0, %v1650
      %v1652 = vrot.slane %v1281, %v1651
      %v1653 = vlaneseq
      %v1654 = vshrl.u32 %v1653, 7
      %v1655 = vsub.s32 0, %v1654
      %v1656 = vrot.slane %v1283, %v1655
      %v1657 = vlaneseq
      %v1658 = vshrl.u32 %v1657, 7
      %v1659 = vsub.s32 0, %v1658
      %v1660 = vrot.slane %v1285, %v1659
      %v1661 = vlaneseq
      %v1662 = vshrl.u32 %v1661, 7
      %v1663 = vsub.s32 0, %v1662
      %v1664 = vrot.slane %v1309, %v1663
      %v1665 = vlaneseq
      %v1666 = vshrl.u32 %v1665, 7
      %v1667 = vsub.s32 0, %v1666
      %v1668 = vrot.slane %v1323, %v1667
      %v1669 = vlaneseq
      %v1670 = vshrl.u32 %v1669, 7
      %v1671 = vsub.s32 0, %v1670
      %v1672 = vrot.slane %v1331, %v1671
      %v1673 = vlaneseq
      %v1674 = vshrl.u32 %v1673, 7
      %v1675 = vsub.s32 0, %v1674
      %v1676 = vrot.slane %v1333, %v1675
      %v1677 = vlaneseq
      %v1678 = vshrl.u32 %v1677, 7
      %v1679 = vsub.s32 0, %v1678
      %v1680 = vrot.slane %v1316, %v1679
      %v1681 = vlaneseq
      %v1682 = vshrl.u32 %v1681, 7
      %v1683 = vsub.s32 0, %v1682
      %v1684 = vrot.slane %v1330, %v1683
      %v1685 = vlaneseq
      %v1686 = vshrl.u32 %v1685, 7
      %v1687 = vsub.s32 0, %v1686
      %v1688 = vrot.slane %v1332, %v1687
      %v1689 = vlaneseq
      %v1690 = vshrl.u32 %v1689, 7
      %v1691 = vsub.s32 0, %v1690
      %v1692 = vrot.slane %v1334, %v1691
      %v1693 = vlaneseq
      %v1694 = vshrl.u32 %v1693, 7
      %v1695 = vsub.s32 0, %v1694
      %v1696 = vrot.slane %v1358, %v1695
      %v1697 = vlaneseq
      %v1698 = vshrl.u32 %v1697, 7
      %v1699 = vsub.s32 0, %v1698
      %v1700 = vrot.slane %v1372, %v1699
      %v1701 = vlaneseq
      %v1702 = vshrl.u32 %v1701, 7
      %v1703 = vsub.s32 0, %v1702
      %v1704 = vrot.slane %v1380, %v1703
      %v1705 = vlaneseq
      %v1706 = vshrl.u32 %v1705, 7
      %v1707 = vsub.s32 0, %v1706
      %v1708 = vrot.slane %v1382, %v1707
      %v1709 = vlaneseq
      %v1710 = vshrl.u32 %v1709, 7
      %v1711 = vsub.s32 0, %v1710
      %v1712 = vrot.slane %v1365, %v1711
      %v1713 = vlaneseq
      %v1714 = vshrl.u32 %v1713, 7
      %v1715 = vsub.s32 0, %v1714
      %v1716 = vrot.slane %v1379, %v1715
      %v1717 = vlaneseq
      %v1718 = vshrl.u32 %v1717, 7
      %v1719 = vsub.s32 0, %v1718
      %v1720 = vrot.slane %v1381, %v1719
      %v1721 = vlaneseq
      %v1722 = vshrl.u32 %v1721, 7
      %v1723 = vsub.s32 0, %v1722
      %v1724 = vrot.slane %v1383, %v1723
      %v1725 = vlaneseq
      %v1726 = vshrl.u32 %v1725, 7
      %v1727 = vsub.s32 0, %v1726
      %v1728 = vrot.slane %v1407, %v1727
      %v1729 = vlaneseq
      %v1730 = vshrl.u32 %v1729, 7
      %v1731 = vsub.s32 0, %v1730
      %v1732 = vrot.slane %v1421, %v1731
      %v1733 = vlaneseq
      %v1734 = vshrl.u32 %v1733, 7
      %v1735 = vsub.s32 0, %v1734
      %v1736 = vrot.slane %v1429, %v1735
      %v1737 = vlaneseq
      %v1738 = vshrl.u32 %v1737, 7
      %v1739 = vsub.s32 0, %v1738
      %v1740 = vrot.slane %v1431, %v1739
      %v1741 = vlaneseq
      %v1742 = vshrl.u32 %v1741, 7
      %v1743 = vsub.s32 0, %v1742
      %v1744 = vrot.slane %v1414, %v1743
      %v1745 = vlaneseq
      %v1746 = vshrl.u32 %v1745, 7
      %v1747 = vsub.s32 0, %v1746
      %v1748 = vrot.slane %v1428, %v1747
      %v1749 = vlaneseq
      %v1750 = vshrl.u32 %v1749, 7
      %v1751 = vsub.s32 0, %v1750
      %v1752 = vrot.slane %v1430, %v1751
      %v1753 = vlaneseq
      %v1754 = vshrl.u32 %v1753, 7
      %v1755 = vsub.s32 0, %v1754
      %v1756 = vrot.slane %v1432, %v1755
      %v1757 = vlaneseq
      %v1758 = vshrl.u32 %v1757, 7
      %v1759 = vsub.s32 0, %v1758
      %v1760 = vrot.slane %v1456, %v1759
      %v1761 = vlaneseq
      %v1762 = vshrl.u32 %v1761, 7
      %v1763 = vsub.s32 0, %v1762
      %v1764 = vrot.slane %v1470, %v1763
      %v1765 = vlaneseq
      %v1766 = vshrl.u32 %v1765, 7
      %v1767 = vsub.s32 0, %v1766
      %v1768 = vrot.slane %v1478, %v1767
      %v1769 = vlaneseq
      %v1770 = vshrl.u32 %v1769, 7
      %v1771 = vsub.s32 0, %v1770
      %v1772 = vrot.slane %v1480, %v1771
      %v1773 = vlaneseq
      %v1774 = vshrl.u32 %v1773, 7
      %v1775 = vsub.s32 0, %v1774
      %v1776 = vrot.slane %v1463, %v1775
      %v1777 = vlaneseq
      %v1778 = vshrl.u32 %v1777, 7
      %v1779 = vsub.s32 0, %v1778
      %v1780 = vrot.slane %v1477, %v1779
      %v1781 = vlaneseq
      %v1782 = vshrl.u32 %v1781, 7
      %v1783 = vsub.s32 0, %v1782
      %v1784 = vrot.slane %v1479, %v1783
      %v1785 = vlaneseq
      %v1786 = vshrl.u32 %v1785, 7
      %v1787 = vsub.s32 0, %v1786
      %v1788 = vrot.slane %v1481, %v1787
      %v1789 = vlaneseq
      %v1790 = vshrl.u32 %v1789, 7
      %v1791 = vsub.s32 0, %v1790
      %v1792 = vrot.slane %v1505, %v1791
      %v1793 = vlaneseq
      %v1794 = vshrl.u32 %v1793, 7
      %v1795 = vsub.s32 0, %v1794
      %v1796 = vrot.slane %v1519, %v1795
      %v1797 = vlaneseq
      %v1798 = vshrl.u32 %v1797, 7
      %v1799 = vsub.s32 0, %v1798
      %v1800 = vrot.slane %v1527, %v1799
      %v1801 = vlaneseq
      %v1802 = vshrl.u32 %v1801, 7
      %v1803 = vsub.s32 0, %v1802
      %v1804 = vrot.slane %v1529, %v1803
      %v1805 = vlaneseq
      %v1806 = vshrl.u32 %v1805, 7
      %v1807 = vsub.s32 0, %v1806
      %v1808 = vrot.slane %v1512, %v1807
      %v1809 = vlaneseq
      %v1810 = vshrl.u32 %v1809, 7
      %v1811 = vsub.s32 0, %v1810
      %v1812 = vrot.slane %v1526, %v1811
      %v1813 = vlaneseq
      %v1814 = vshrl.u32 %v1813, 7
      %v1815 = vsub.s32 0, %v1814
      %v1816 = vrot.slane %v1528, %v1815
      %v1817 = vlaneseq
      %v1818 = vshrl.u32 %v1817, 7
      %v1819 = vsub.s32 0, %v1818
      %v1820 = vrot.slane %v1530, %v1819
      %v1821 = vlaneseq
      %v1822 = vshrl.u32 %v1821, 7
      %v1823 = vsub.s32 0, %v1822
      %v1824 = vrot.slane %v1554, %v1823
      %v1825 = vlaneseq
      %v1826 = vshrl.u32 %v1825, 7
      %v1827 = vsub.s32 0, %v1826
      %v1828 = vrot.slane %v1568, %v1827
      %v1829 = vlaneseq
      %v1830 = vshrl.u32 %v1829, 7
      %v1831 = vsub.s32 0, %v1830
      %v1832 = vrot.slane %v1576, %v1831
      %v1833 = vlaneseq
      %v1834 = vshrl.u32 %v1833, 7
      %v1835 = vsub.s32 0, %v1834
      %v1836 = vrot.slane %v1578, %v1835
      %v1837 = vlaneseq
      %v1838 = vshrl.u32 %v1837, 7
      %v1839 = vsub.s32 0, %v1838
      %v1840 = vrot.slane %v1561, %v1839
      %v1841 = vlaneseq
      %v1842 = vshrl.u32 %v1841, 7
      %v1843 = vsub.s32 0, %v1842
      %v1844 = vrot.slane %v1575, %v1843
      %v1845 = vlaneseq
      %v1846 = vshrl.u32 %v1845, 7
      %v1847 = vsub.s32 0, %v1846
      %v1848 = vrot.slane %v1577, %v1847
      %v1849 = vlaneseq
      %v1850 = vshrl.u32 %v1849, 7
      %v1851 = vsub.s32 0, %v1850
      %v1852 = vrot.slane %v1579, %v1851
      %v1853 = vlaneseq
      %v1854 = vshrl.u32 %v1853, 7
      %v1855 = vsub.s32 0, %v1854
      %v1856 = vrot.slane %v1603, %v1855
      %v1857 = vlaneseq
      %v1858 = vshrl.u32 %v1857, 7
      %v1859 = vsub.s32 0, %v1858
      %v1860 = vrot.slane %v1617, %v1859
      %v1861 = vlaneseq
      %v1862 = vshrl.u32 %v1861, 7
      %v1863 = vsub.s32 0, %v1862
      %v1864 = vrot.slane %v1625, %v1863
      %v1865 = vlaneseq
      %v1866 = vshrl.u32 %v1865, 7
      %v1867 = vsub.s32 0, %v1866
      %v1868 = vrot.slane %v1627, %v1867
      %v1869 = vlaneseq
      %v1870 = vshrl.u32 %v1869, 7
      %v1871 = vsub.s32 0, %v1870
      %v1872 = vrot.slane %v1610, %v1871
      %v1873 = vlaneseq
      %v1874 = vshrl.u32 %v1873, 7
      %v1875 = vsub.s32 0, %v1874
      %v1876 = vrot.slane %v1624, %v1875
      %v1877 = vlaneseq
      %v1878 = vshrl.u32 %v1877, 7
      %v1879 = vsub.s32 0, %v1878
      %v1880 = vrot.slane %v1626, %v1879
      %v1881 = vlaneseq
      %v1882 = vshrl.u32 %v1881, 7
      %v1883 = vsub.s32 0, %v1882
      %v1884 = vrot.slane %v1628, %v1883
      %v1949 = vsel %vm1165, %v1632, 0.0
      %v1950 = vsel %vm1166, %v1636, 0.0
      %v1951 = vsel %vm1167, %v1640, 0.0
      %v1952 = vsel %vm1168, %v1644, 0.0
      %v1953 = vsel %vm1169, %v1648, 0.0
      %v1954 = vsel %vm1170, %v1652, 0.0
      %v1955 = vsel %vm1171, %v1656, 0.0
      %v1956 = vsel %vm1172, %v1660, 0.0
      %v1957 = vsel %vm1173, %v1664, 0.0
      %v1958 = vsel %vm1174, %v1668, 0.0
      %v1959 = vsel %vm1175, %v1672, 0.0
      %v1960 = vsel %vm1176, %v1676, 0.0
      %v1961 = vsel %vm1177, %v1680, 0.0
      %v1962 = vsel %vm1178, %v1684, 0.0
      %v1963 = vsel %vm1179, %v1688, 0.0
      %v1964 = vsel %vm1180, %v1692, 0.0
      %v1965 = vsel %vm1181, %v1696, 0.0
      %v1966 = vsel %vm1182, %v1700, 0.0
      %v1967 = vsel %vm1183, %v1704, 0.0
      %v1968 = vsel %vm1184, %v1708, 0.0
      %v1969 = vsel %vm1185, %v1712, 0.0
      %v1970 = vsel %vm1186, %v1716, 0.0
      %v1971 = vsel %vm1187, %v1720, 0.0
      %v1972 = vsel %vm1188, %v1724, 0.0
      %v1973 = vsel %vm1189, %v1728, 0.0
      %v1974 = vsel %vm1190, %v1732, 0.0
      %v1975 = vsel %vm1191, %v1736, 0.0
      %v1976 = vsel %vm1192, %v1740, 0.0
      %v1977 = vsel %vm1193, %v1744, 0.0
      %v1978 = vsel %vm1194, %v1748, 0.0
      %v1979 = vsel %vm1195, %v1752, 0.0
      %v1980 = vsel %vm1196, %v1756, 0.0
      %v1981 = vsel %vm1197, %v1760, 0.0
      %v1982 = vsel %vm1198, %v1764, 0.0
      %v1983 = vsel %vm1199, %v1768, 0.0
      %v1984 = vsel %vm1200, %v1772, 0.0
      %v1985 = vsel %vm1201, %v1776, 0.0
      %v1986 = vsel %vm1202, %v1780, 0.0
      %v1987 = vsel %vm1203, %v1784, 0.0
      %v1988 = vsel %vm1204, %v1788, 0.0
      %v1989 = vsel %vm1205, %v1792, 0.0
      %v1990 = vsel %vm1206, %v1796, 0.0
      %v1991 = vsel %vm1207, %v1800, 0.0
      %v1992 = vsel %vm1208, %v1804, 0.0
      %v1993 = vsel %vm1209, %v1808, 0.0
      %v1994 = vsel %vm1210, %v1812, 0.0
      %v1995 = vsel %vm1211, %v1816, 0.0
      %v1996 = vsel %vm1212, %v1820, 0.0
      %v1997 = vsel %vm1213, %v1824, 0.0
      %v1998 = vsel %vm1214, %v1828, 0.0
      %v1999 = vsel %vm1215, %v1832, 0.0
      %v2000 = vsel %vm1216, %v1836, 0.0
      %v2001 = vsel %vm1217, %v1840, 0.0
      %v2002 = vsel %vm1218, %v1844, 0.0
      %v2003 = vsel %vm1219, %v1848, 0.0
      %v2004 = vsel %vm1220, %v1852, 0.0
      %v2005 = vsel %vm1221, %v1856, 0.0
      %v2006 = vsel %vm1222, %v1860, 0.0
      %v2007 = vsel %vm1223, %v1864, 0.0
      %v2008 = vsel %vm1224, %v1868, 0.0
      %v2009 = vsel %vm1225, %v1872, 0.0
      %v2010 = vsel %vm1226, %v1876, 0.0
      %v2011 = vsel %vm1227, %v1880, 0.0
      %v2012 = vsel %vm1228, %v1884, 0.0
      %2013 = vadd.xlane.f32.xlu0 %v1949
      %v2014 = vpop.xlane.xlu0 %2013
      %2015 = vadd.xlane.f32.xlu0 %v1950
      %v2016 = vpop.xlane.xlu0 %2015
      %2017 = vadd.xlane.f32.xlu0 %v1951
      %v2018 = vpop.xlane.xlu0 %2017
      %2019 = vadd.xlane.f32.xlu0 %v1952
      %v2020 = vpop.xlane.xlu0 %2019
      %2021 = vadd.xlane.f32.xlu0 %v1953
      %v2022 = vpop.xlane.xlu0 %2021
      %2023 = vadd.xlane.f32.xlu0 %v1954
      %v2024 = vpop.xlane.xlu0 %2023
      %2025 = vadd.xlane.f32.xlu0 %v1955
      %v2026 = vpop.xlane.xlu0 %2025
      %2027 = vadd.xlane.f32.xlu0 %v1956
      %v2028 = vpop.xlane.xlu0 %2027
      %2029 = vadd.xlane.f32.xlu0 %v1957
      %v2030 = vpop.xlane.xlu0 %2029
      %2031 = vadd.xlane.f32.xlu0 %v1958
      %v2032 = vpop.xlane.xlu0 %2031
      %2033 = vadd.xlane.f32.xlu0 %v1959
      %v2034 = vpop.xlane.xlu0 %2033
      %2035 = vadd.xlane.f32.xlu0 %v1960
      %v2036 = vpop.xlane.xlu0 %2035
      %2037 = vadd.xlane.f32.xlu0 %v1961
      %v2038 = vpop.xlane.xlu0 %2037
      %2039 = vadd.xlane.f32.xlu0 %v1962
      %v2040 = vpop.xlane.xlu0 %2039
      %2041 = vadd.xlane.f32.xlu0 %v1963
      %v2042 = vpop.xlane.xlu0 %2041
      %2043 = vadd.xlane.f32.xlu0 %v1964
      %v2044 = vpop.xlane.xlu0 %2043
      %2045 = vadd.xlane.f32.xlu0 %v1965
      %v2046 = vpop.xlane.xlu0 %2045
      %2047 = vadd.xlane.f32.xlu0 %v1966
      %v2048 = vpop.xlane.xlu0 %2047
      %2049 = vadd.xlane.f32.xlu0 %v1967
      %v2050 = vpop.xlane.xlu0 %2049
      %2051 = vadd.xlane.f32.xlu0 %v1968
      %v2052 = vpop.xlane.xlu0 %2051
      %2053 = vadd.xlane.f32.xlu0 %v1969
      %v2054 = vpop.xlane.xlu0 %2053
      %2055 = vadd.xlane.f32.xlu0 %v1970
      %v2056 = vpop.xlane.xlu0 %2055
      %2057 = vadd.xlane.f32.xlu0 %v1971
      %v2058 = vpop.xlane.xlu0 %2057
      %2059 = vadd.xlane.f32.xlu0 %v1972
      %v2060 = vpop.xlane.xlu0 %2059
      %2061 = vadd.xlane.f32.xlu0 %v1973
      %v2062 = vpop.xlane.xlu0 %2061
      %2063 = vadd.xlane.f32.xlu0 %v1974
      %v2064 = vpop.xlane.xlu0 %2063
      %2065 = vadd.xlane.f32.xlu0 %v1975
      %v2066 = vpop.xlane.xlu0 %2065
      %2067 = vadd.xlane.f32.xlu0 %v1976
      %v2068 = vpop.xlane.xlu0 %2067
      %2069 = vadd.xlane.f32.xlu0 %v1977
      %v2070 = vpop.xlane.xlu0 %2069
      %2071 = vadd.xlane.f32.xlu0 %v1978
      %v2072 = vpop.xlane.xlu0 %2071
      %2073 = vadd.xlane.f32.xlu0 %v1979
      %v2074 = vpop.xlane.xlu0 %2073
      %2075 = vadd.xlane.f32.xlu0 %v1980
      %v2076 = vpop.xlane.xlu0 %2075
      %2077 = vadd.xlane.f32.xlu0 %v1981
      %v2078 = vpop.xlane.xlu0 %2077
      %2079 = vadd.xlane.f32.xlu0 %v1982
      %v2080 = vpop.xlane.xlu0 %2079
      %2081 = vadd.xlane.f32.xlu0 %v1983
      %v2082 = vpop.xlane.xlu0 %2081
      %2083 = vadd.xlane.f32.xlu0 %v1984
      %v2084 = vpop.xlane.xlu0 %2083
      %2085 = vadd.xlane.f32.xlu0 %v1985
      %v2086 = vpop.xlane.xlu0 %2085
      %2087 = vadd.xlane.f32.xlu0 %v1986
      %v2088 = vpop.xlane.xlu0 %2087
      %2089 = vadd.xlane.f32.xlu0 %v1987
      %v2090 = vpop.xlane.xlu0 %2089
      %2091 = vadd.xlane.f32.xlu0 %v1988
      %v2092 = vpop.xlane.xlu0 %2091
      %2093 = vadd.xlane.f32.xlu0 %v1989
      %v2094 = vpop.xlane.xlu0 %2093
      %2095 = vadd.xlane.f32.xlu0 %v1990
      %v2096 = vpop.xlane.xlu0 %2095
      %2097 = vadd.xlane.f32.xlu0 %v1991
      %v2098 = vpop.xlane.xlu0 %2097
      %2099 = vadd.xlane.f32.xlu0 %v1992
      %v2100 = vpop.xlane.xlu0 %2099
      %2101 = vadd.xlane.f32.xlu0 %v1993
      %v2102 = vpop.xlane.xlu0 %2101
      %2103 = vadd.xlane.f32.xlu0 %v1994
      %v2104 = vpop.xlane.xlu0 %2103
      %2105 = vadd.xlane.f32.xlu0 %v1995
      %v2106 = vpop.xlane.xlu0 %2105
      %2107 = vadd.xlane.f32.xlu0 %v1996
      %v2108 = vpop.xlane.xlu0 %2107
      %2109 = vadd.xlane.f32.xlu0 %v1997
      %v2110 = vpop.xlane.xlu0 %2109
      %2111 = vadd.xlane.f32.xlu0 %v1998
      %v2112 = vpop.xlane.xlu0 %2111
      %2113 = vadd.xlane.f32.xlu0 %v1999
      %v2114 = vpop.xlane.xlu0 %2113
      %2115 = vadd.xlane.f32.xlu0 %v2000
      %v2116 = vpop.xlane.xlu0 %2115
      %2117 = vadd.xlane.f32.xlu0 %v2001
      %v2118 = vpop.xlane.xlu0 %2117
      %2119 = vadd.xlane.f32.xlu0 %v2002
      %v2120 = vpop.xlane.xlu0 %2119
      %2121 = vadd.xlane.f32.xlu0 %v2003
      %v2122 = vpop.xlane.xlu0 %2121
      %2123 = vadd.xlane.f32.xlu0 %v2004
      %v2124 = vpop.xlane.xlu0 %2123
      %2125 = vadd.xlane.f32.xlu0 %v2005
      %v2126 = vpop.xlane.xlu0 %2125
      %2127 = vadd.xlane.f32.xlu0 %v2006
      %v2128 = vpop.xlane.xlu0 %2127
      %2129 = vadd.xlane.f32.xlu0 %v2007
      %v2130 = vpop.xlane.xlu0 %2129
      %2131 = vadd.xlane.f32.xlu0 %v2008
      %v2132 = vpop.xlane.xlu0 %2131
      %2133 = vadd.xlane.f32.xlu0 %v2009
      %v2134 = vpop.xlane.xlu0 %2133
      %2135 = vadd.xlane.f32.xlu0 %v2010
      %v2136 = vpop.xlane.xlu0 %2135
      %2137 = vadd.xlane.f32.xlu0 %v2011
      %v2138 = vpop.xlane.xlu0 %2137
      %2139 = vadd.xlane.f32.xlu0 %v2012
      %v2140 = vpop.xlane.xlu0 %2139
      %v2141 = vld [vmem:[%s394] sm:$0xff]
      %v2142 = vld [vmem:[%s394 + $0x8] sm:$0xff]
      %v2143 = vld [vmem:[%s394 + $0x10] sm:$0xff]
      %v2144 = vld [vmem:[%s394 + $0x18] sm:$0xff]
      %v2145 = vld [vmem:[%s394 + $0x20] sm:$0xff]
      %v2146 = vld [vmem:[%s394 + $0x28] sm:$0xff]
      %v2147 = vld [vmem:[%s394 + $0x30] sm:$0xff]
      %v2148 = vld [vmem:[%s394 + $0x38] sm:$0xff]
      %v2149 = vld [vmem:[%s400] sm:$0xff]
      %v2150 = vld [vmem:[%s400 + $0x8] sm:$0xff]
      %v2151 = vld [vmem:[%s400 + $0x10] sm:$0xff]
      %v2152 = vld [vmem:[%s400 + $0x18] sm:$0xff]
      %v2153 = vld [vmem:[%s400 + $0x20] sm:$0xff]
      %v2154 = vld [vmem:[%s400 + $0x28] sm:$0xff]
      %v2155 = vld [vmem:[%s400 + $0x30] sm:$0xff]
      %v2156 = vld [vmem:[%s400 + $0x38] sm:$0xff]
      %v2157 = vmax.f32 %v2014, 0.0
      %v2158 = vmax.f32 %v2016, 0.0
      %v2159 = vmax.f32 %v2018, 0.0
      %v2160 = vmax.f32 %v2020, 0.0
      %v2161 = vmax.f32 %v2022, 0.0
      %v2162 = vmax.f32 %v2024, 0.0
      %v2163 = vmax.f32 %v2026, 0.0
      %v2164 = vmax.f32 %v2028, 0.0
      %v2165 = vmax.f32 %v2030, 0.0
      %v2166 = vmax.f32 %v2032, 0.0
      %v2167 = vmax.f32 %v2034, 0.0
      %v2168 = vmax.f32 %v2036, 0.0
      %v2169 = vmax.f32 %v2038, 0.0
      %v2170 = vmax.f32 %v2040, 0.0
      %v2171 = vmax.f32 %v2042, 0.0
      %v2172 = vmax.f32 %v2044, 0.0
      %v2173 = vmax.f32 %v2046, 0.0
      %v2174 = vmax.f32 %v2048, 0.0
      %v2175 = vmax.f32 %v2050, 0.0
      %v2176 = vmax.f32 %v2052, 0.0
      %v2177 = vmax.f32 %v2054, 0.0
      %v2178 = vmax.f32 %v2056, 0.0
      %v2179 = vmax.f32 %v2058, 0.0
      %v2180 = vmax.f32 %v2060, 0.0
      %v2181 = vmax.f32 %v2062, 0.0
      %v2182 = vmax.f32 %v2064, 0.0
      %v2183 = vmax.f32 %v2066, 0.0
      %v2184 = vmax.f32 %v2068, 0.0
      %v2185 = vmax.f32 %v2070, 0.0
      %v2186 = vmax.f32 %v2072, 0.0
      %v2187 = vmax.f32 %v2074, 0.0
      %v2188 = vmax.f32 %v2076, 0.0
      %v2189 = vmax.f32 %v2078, 0.0
      %v2190 = vmax.f32 %v2080, 0.0
      %v2191 = vmax.f32 %v2082, 0.0
      %v2192 = vmax.f32 %v2084, 0.0
      %v2193 = vmax.f32 %v2086, 0.0
      %v2194 = vmax.f32 %v2088, 0.0
      %v2195 = vmax.f32 %v2090, 0.0
      %v2196 = vmax.f32 %v2092, 0.0
      %v2197 = vmax.f32 %v2094, 0.0
      %v2198 = vmax.f32 %v2096, 0.0
      %v2199 = vmax.f32 %v2098, 0.0
      %v2200 = vmax.f32 %v2100, 0.0
      %v2201 = vmax.f32 %v2102, 0.0
      %v2202 = vmax.f32 %v2104, 0.0
      %v2203 = vmax.f32 %v2106, 0.0
      %v2204 = vmax.f32 %v2108, 0.0
      %v2205 = vmax.f32 %v2110, 0.0
      %v2206 = vmax.f32 %v2112, 0.0
      %v2207 = vmax.f32 %v2114, 0.0
      %v2208 = vmax.f32 %v2116, 0.0
      %v2209 = vmax.f32 %v2118, 0.0
      %v2210 = vmax.f32 %v2120, 0.0
      %v2211 = vmax.f32 %v2122, 0.0
      %v2212 = vmax.f32 %v2124, 0.0
      %v2213 = vmax.f32 %v2126, 0.0
      %v2214 = vmax.f32 %v2128, 0.0
      %v2215 = vmax.f32 %v2130, 0.0
      %v2216 = vmax.f32 %v2132, 0.0
      %v2217 = vmax.f32 %v2134, 0.0
      %v2218 = vmax.f32 %v2136, 0.0
      %v2219 = vmax.f32 %v2138, 0.0
      %v2220 = vmax.f32 %v2140, 0.0
      %v2229 = vlaneseq
      %v2230 = vshrl.u32 %v2229, 7
      %v2231 = vsub.s32 0, %v2230
      %v2232 = vrot.slane %v2141, %v2231
      %2234 = vbcast.lane.b32.xlu0 %v2232, 256
      %v2235 = vpop.permute.xlu0 %2234
      %v2236 = vlaneseq
      %v2237 = vshrl.u32 %v2236, 7
      %v2238 = vsub.s32 1, %v2237
      %v2239 = vrot.slane %v2141, %v2238
      %2241 = vbcast.lane.b32.xlu0 %v2239, 256
      %v2242 = vpop.permute.xlu0 %2241
      %v2243 = vlaneseq
      %v2244 = vshrl.u32 %v2243, 7
      %v2245 = vsub.s32 2, %v2244
      %v2246 = vrot.slane %v2141, %v2245
      %2248 = vbcast.lane.b32.xlu0 %v2246, 256
      %v2249 = vpop.permute.xlu0 %2248
      %v2250 = vlaneseq
      %v2251 = vshrl.u32 %v2250, 7
      %v2252 = vsub.s32 3, %v2251
      %v2253 = vrot.slane %v2141, %v2252
      %2255 = vbcast.lane.b32.xlu0 %v2253, 256
      %v2256 = vpop.permute.xlu0 %2255
      %v2257 = vlaneseq
      %v2258 = vshrl.u32 %v2257, 7
      %v2259 = vsub.s32 4, %v2258
      %v2260 = vrot.slane %v2141, %v2259
      %2262 = vbcast.lane.b32.xlu0 %v2260, 256
      %v2263 = vpop.permute.xlu0 %2262
      %v2264 = vlaneseq
      %v2265 = vshrl.u32 %v2264, 7
      %v2266 = vsub.s32 5, %v2265
      %v2267 = vrot.slane %v2141, %v2266
      %2269 = vbcast.lane.b32.xlu0 %v2267, 256
      %v2270 = vpop.permute.xlu0 %2269
      %v2271 = vlaneseq
      %v2272 = vshrl.u32 %v2271, 7
      %v2273 = vsub.s32 6, %v2272
      %v2274 = vrot.slane %v2141, %v2273
      %2276 = vbcast.lane.b32.xlu0 %v2274, 256
      %v2277 = vpop.permute.xlu0 %2276
      %v2278 = vlaneseq
      %v2279 = vshrl.u32 %v2278, 7
      %v2280 = vsub.s32 7, %v2279
      %v2281 = vrot.slane %v2141, %v2280
      %2283 = vbcast.lane.b32.xlu0 %v2281, 256
      %v2284 = vpop.permute.xlu0 %2283
      %v2285 = vlaneseq
      %v2286 = vshrl.u32 %v2285, 7
      %v2287 = vsub.s32 0, %v2286
      %v2288 = vrot.slane %v2142, %v2287
      %2290 = vbcast.lane.b32.xlu0 %v2288, 256
      %v2291 = vpop.permute.xlu0 %2290
      %v2292 = vlaneseq
      %v2293 = vshrl.u32 %v2292, 7
      %v2294 = vsub.s32 1, %v2293
      %v2295 = vrot.slane %v2142, %v2294
      %2297 = vbcast.lane.b32.xlu0 %v2295, 256
      %v2298 = vpop.permute.xlu0 %2297
      %v2299 = vlaneseq
      %v2300 = vshrl.u32 %v2299, 7
      %v2301 = vsub.s32 2, %v2300
      %v2302 = vrot.slane %v2142, %v2301
      %2304 = vbcast.lane.b32.xlu0 %v2302, 256
      %v2305 = vpop.permute.xlu0 %2304
      %v2306 = vlaneseq
      %v2307 = vshrl.u32 %v2306, 7
      %v2308 = vsub.s32 3, %v2307
      %v2309 = vrot.slane %v2142, %v2308
      %2311 = vbcast.lane.b32.xlu0 %v2309, 256
      %v2312 = vpop.permute.xlu0 %2311
      %v2313 = vlaneseq
      %v2314 = vshrl.u32 %v2313, 7
      %v2315 = vsub.s32 4, %v2314
      %v2316 = vrot.slane %v2142, %v2315
      %2318 = vbcast.lane.b32.xlu0 %v2316, 256
      %v2319 = vpop.permute.xlu0 %2318
      %v2320 = vlaneseq
      %v2321 = vshrl.u32 %v2320, 7
      %v2322 = vsub.s32 5, %v2321
      %v2323 = vrot.slane %v2142, %v2322
      %2325 = vbcast.lane.b32.xlu0 %v2323, 256
      %v2326 = vpop.permute.xlu0 %2325
      %v2327 = vlaneseq
      %v2328 = vshrl.u32 %v2327, 7
      %v2329 = vsub.s32 6, %v2328
      %v2330 = vrot.slane %v2142, %v2329
      %2332 = vbcast.lane.b32.xlu0 %v2330, 256
      %v2333 = vpop.permute.xlu0 %2332
      %v2334 = vlaneseq
      %v2335 = vshrl.u32 %v2334, 7
      %v2336 = vsub.s32 7, %v2335
      %v2337 = vrot.slane %v2142, %v2336
      %2339 = vbcast.lane.b32.xlu0 %v2337, 256
      %v2340 = vpop.permute.xlu0 %2339
      %v2341 = vlaneseq
      %v2342 = vshrl.u32 %v2341, 7
      %v2343 = vsub.s32 0, %v2342
      %v2344 = vrot.slane %v2143, %v2343
      %2346 = vbcast.lane.b32.xlu0 %v2344, 256
      %v2347 = vpop.permute.xlu0 %2346
      %v2348 = vlaneseq
      %v2349 = vshrl.u32 %v2348, 7
      %v2350 = vsub.s32 1, %v2349
      %v2351 = vrot.slane %v2143, %v2350
      %2353 = vbcast.lane.b32.xlu0 %v2351, 256
      %v2354 = vpop.permute.xlu0 %2353
      %v2355 = vlaneseq
      %v2356 = vshrl.u32 %v2355, 7
      %v2357 = vsub.s32 2, %v2356
      %v2358 = vrot.slane %v2143, %v2357
      %2360 = vbcast.lane.b32.xlu0 %v2358, 256
      %v2361 = vpop.permute.xlu0 %2360
      %v2362 = vlaneseq
      %v2363 = vshrl.u32 %v2362, 7
      %v2364 = vsub.s32 3, %v2363
      %v2365 = vrot.slane %v2143, %v2364
      %2367 = vbcast.lane.b32.xlu0 %v2365, 256
      %v2368 = vpop.permute.xlu0 %2367
      %v2369 = vlaneseq
      %v2370 = vshrl.u32 %v2369, 7
      %v2371 = vsub.s32 4, %v2370
      %v2372 = vrot.slane %v2143, %v2371
      %2374 = vbcast.lane.b32.xlu0 %v2372, 256
      %v2375 = vpop.permute.xlu0 %2374
      %v2376 = vlaneseq
      %v2377 = vshrl.u32 %v2376, 7
      %v2378 = vsub.s32 5, %v2377
      %v2379 = vrot.slane %v2143, %v2378
      %2381 = vbcast.lane.b32.xlu0 %v2379, 256
      %v2382 = vpop.permute.xlu0 %2381
      %v2383 = vlaneseq
      %v2384 = vshrl.u32 %v2383, 7
      %v2385 = vsub.s32 6, %v2384
      %v2386 = vrot.slane %v2143, %v2385
      %2388 = vbcast.lane.b32.xlu0 %v2386, 256
      %v2389 = vpop.permute.xlu0 %2388
      %v2390 = vlaneseq
      %v2391 = vshrl.u32 %v2390, 7
      %v2392 = vsub.s32 7, %v2391
      %v2393 = vrot.slane %v2143, %v2392
      %2395 = vbcast.lane.b32.xlu0 %v2393, 256
      %v2396 = vpop.permute.xlu0 %2395
      %v2397 = vlaneseq
      %v2398 = vshrl.u32 %v2397, 7
      %v2399 = vsub.s32 0, %v2398
      %v2400 = vrot.slane %v2144, %v2399
      %2402 = vbcast.lane.b32.xlu0 %v2400, 256
      %v2403 = vpop.permute.xlu0 %2402
      %v2404 = vlaneseq
      %v2405 = vshrl.u32 %v2404, 7
      %v2406 = vsub.s32 1, %v2405
      %v2407 = vrot.slane %v2144, %v2406
      %2409 = vbcast.lane.b32.xlu0 %v2407, 256
      %v2410 = vpop.permute.xlu0 %2409
      %v2411 = vlaneseq
      %v2412 = vshrl.u32 %v2411, 7
      %v2413 = vsub.s32 2, %v2412
      %v2414 = vrot.slane %v2144, %v2413
      %2416 = vbcast.lane.b32.xlu0 %v2414, 256
      %v2417 = vpop.permute.xlu0 %2416
      %v2418 = vlaneseq
      %v2419 = vshrl.u32 %v2418, 7
      %v2420 = vsub.s32 3, %v2419
      %v2421 = vrot.slane %v2144, %v2420
      %2423 = vbcast.lane.b32.xlu0 %v2421, 256
      %v2424 = vpop.permute.xlu0 %2423
      %v2425 = vlaneseq
      %v2426 = vshrl.u32 %v2425, 7
      %v2427 = vsub.s32 4, %v2426
      %v2428 = vrot.slane %v2144, %v2427
      %2430 = vbcast.lane.b32.xlu0 %v2428, 256
      %v2431 = vpop.permute.xlu0 %2430
      %v2432 = vlaneseq
      %v2433 = vshrl.u32 %v2432, 7
      %v2434 = vsub.s32 5, %v2433
      %v2435 = vrot.slane %v2144, %v2434
      %2437 = vbcast.lane.b32.xlu0 %v2435, 256
      %v2438 = vpop.permute.xlu0 %2437
      %v2439 = vlaneseq
      %v2440 = vshrl.u32 %v2439, 7
      %v2441 = vsub.s32 6, %v2440
      %v2442 = vrot.slane %v2144, %v2441
      %2444 = vbcast.lane.b32.xlu0 %v2442, 256
      %v2445 = vpop.permute.xlu0 %2444
      %v2446 = vlaneseq
      %v2447 = vshrl.u32 %v2446, 7
      %v2448 = vsub.s32 7, %v2447
      %v2449 = vrot.slane %v2144, %v2448
      %2451 = vbcast.lane.b32.xlu0 %v2449, 256
      %v2452 = vpop.permute.xlu0 %2451
      %v2453 = vlaneseq
      %v2454 = vshrl.u32 %v2453, 7
      %v2455 = vsub.s32 0, %v2454
      %v2456 = vrot.slane %v2145, %v2455
      %2458 = vbcast.lane.b32.xlu0 %v2456, 256
      %v2459 = vpop.permute.xlu0 %2458
      %v2460 = vlaneseq
      %v2461 = vshrl.u32 %v2460, 7
      %v2462 = vsub.s32 1, %v2461
      %v2463 = vrot.slane %v2145, %v2462
      %2465 = vbcast.lane.b32.xlu0 %v2463, 256
      %v2466 = vpop.permute.xlu0 %2465
      %v2467 = vlaneseq
      %v2468 = vshrl.u32 %v2467, 7
      %v2469 = vsub.s32 2, %v2468
      %v2470 = vrot.slane %v2145, %v2469
      %2472 = vbcast.lane.b32.xlu0 %v2470, 256
      %v2473 = vpop.permute.xlu0 %2472
      %v2474 = vlaneseq
      %v2475 = vshrl.u32 %v2474, 7
      %v2476 = vsub.s32 3, %v2475
      %v2477 = vrot.slane %v2145, %v2476
      %2479 = vbcast.lane.b32.xlu0 %v2477, 256
      %v2480 = vpop.permute.xlu0 %2479
      %v2481 = vlaneseq
      %v2482 = vshrl.u32 %v2481, 7
      %v2483 = vsub.s32 4, %v2482
      %v2484 = vrot.slane %v2145, %v2483
      %2486 = vbcast.lane.b32.xlu0 %v2484, 256
      %v2487 = vpop.permute.xlu0 %2486
      %v2488 = vlaneseq
      %v2489 = vshrl.u32 %v2488, 7
      %v2490 = vsub.s32 5, %v2489
      %v2491 = vrot.slane %v2145, %v2490
      %2493 = vbcast.lane.b32.xlu0 %v2491, 256
      %v2494 = vpop.permute.xlu0 %2493
      %v2495 = vlaneseq
      %v2496 = vshrl.u32 %v2495, 7
      %v2497 = vsub.s32 6, %v2496
      %v2498 = vrot.slane %v2145, %v2497
      %2500 = vbcast.lane.b32.xlu0 %v2498, 256
      %v2501 = vpop.permute.xlu0 %2500
      %v2502 = vlaneseq
      %v2503 = vshrl.u32 %v2502, 7
      %v2504 = vsub.s32 7, %v2503
      %v2505 = vrot.slane %v2145, %v2504
      %2507 = vbcast.lane.b32.xlu0 %v2505, 256
      %v2508 = vpop.permute.xlu0 %2507
      %v2509 = vlaneseq
      %v2510 = vshrl.u32 %v2509, 7
      %v2511 = vsub.s32 0, %v2510
      %v2512 = vrot.slane %v2146, %v2511
      %2514 = vbcast.lane.b32.xlu0 %v2512, 256
      %v2515 = vpop.permute.xlu0 %2514
      %v2516 = vlaneseq
      %v2517 = vshrl.u32 %v2516, 7
      %v2518 = vsub.s32 1, %v2517
      %v2519 = vrot.slane %v2146, %v2518
      %2521 = vbcast.lane.b32.xlu0 %v2519, 256
      %v2522 = vpop.permute.xlu0 %2521
      %v2523 = vlaneseq
      %v2524 = vshrl.u32 %v2523, 7
      %v2525 = vsub.s32 2, %v2524
      %v2526 = vrot.slane %v2146, %v2525
      %2528 = vbcast.lane.b32.xlu0 %v2526, 256
      %v2529 = vpop.permute.xlu0 %2528
      %v2530 = vlaneseq
      %v2531 = vshrl.u32 %v2530, 7
      %v2532 = vsub.s32 3, %v2531
      %v2533 = vrot.slane %v2146, %v2532
      %2535 = vbcast.lane.b32.xlu0 %v2533, 256
      %v2536 = vpop.permute.xlu0 %2535
      %v2537 = vlaneseq
      %v2538 = vshrl.u32 %v2537, 7
      %v2539 = vsub.s32 4, %v2538
      %v2540 = vrot.slane %v2146, %v2539
      %2542 = vbcast.lane.b32.xlu0 %v2540, 256
      %v2543 = vpop.permute.xlu0 %2542
      %v2544 = vlaneseq
      %v2545 = vshrl.u32 %v2544, 7
      %v2546 = vsub.s32 5, %v2545
      %v2547 = vrot.slane %v2146, %v2546
      %2549 = vbcast.lane.b32.xlu0 %v2547, 256
      %v2550 = vpop.permute.xlu0 %2549
      %v2551 = vlaneseq
      %v2552 = vshrl.u32 %v2551, 7
      %v2553 = vsub.s32 6, %v2552
      %v2554 = vrot.slane %v2146, %v2553
      %2556 = vbcast.lane.b32.xlu0 %v2554, 256
      %v2557 = vpop.permute.xlu0 %2556
      %v2558 = vlaneseq
      %v2559 = vshrl.u32 %v2558, 7
      %v2560 = vsub.s32 7, %v2559
      %v2561 = vrot.slane %v2146, %v2560
      %2563 = vbcast.lane.b32.xlu0 %v2561, 256
      %v2564 = vpop.permute.xlu0 %2563
      %v2565 = vlaneseq
      %v2566 = vshrl.u32 %v2565, 7
      %v2567 = vsub.s32 0, %v2566
      %v2568 = vrot.slane %v2147, %v2567
      %2570 = vbcast.lane.b32.xlu0 %v2568, 256
      %v2571 = vpop.permute.xlu0 %2570
      %v2572 = vlaneseq
      %v2573 = vshrl.u32 %v2572, 7
      %v2574 = vsub.s32 1, %v2573
      %v2575 = vrot.slane %v2147, %v2574
      %2577 = vbcast.lane.b32.xlu0 %v2575, 256
      %v2578 = vpop.permute.xlu0 %2577
      %v2579 = vlaneseq
      %v2580 = vshrl.u32 %v2579, 7
      %v2581 = vsub.s32 2, %v2580
      %v2582 = vrot.slane %v2147, %v2581
      %2584 = vbcast.lane.b32.xlu0 %v2582, 256
      %v2585 = vpop.permute.xlu0 %2584
      %v2586 = vlaneseq
      %v2587 = vshrl.u32 %v2586, 7
      %v2588 = vsub.s32 3, %v2587
      %v2589 = vrot.slane %v2147, %v2588
      %2591 = vbcast.lane.b32.xlu0 %v2589, 256
      %v2592 = vpop.permute.xlu0 %2591
      %v2593 = vlaneseq
      %v2594 = vshrl.u32 %v2593, 7
      %v2595 = vsub.s32 4, %v2594
      %v2596 = vrot.slane %v2147, %v2595
      %2598 = vbcast.lane.b32.xlu0 %v2596, 256
      %v2599 = vpop.permute.xlu0 %2598
      %v2600 = vlaneseq
      %v2601 = vshrl.u32 %v2600, 7
      %v2602 = vsub.s32 5, %v2601
      %v2603 = vrot.slane %v2147, %v2602
      %2605 = vbcast.lane.b32.xlu0 %v2603, 256
      %v2606 = vpop.permute.xlu0 %2605
      %v2607 = vlaneseq
      %v2608 = vshrl.u32 %v2607, 7
      %v2609 = vsub.s32 6, %v2608
      %v2610 = vrot.slane %v2147, %v2609
      %2612 = vbcast.lane.b32.xlu0 %v2610, 256
      %v2613 = vpop.permute.xlu0 %2612
      %v2614 = vlaneseq
      %v2615 = vshrl.u32 %v2614, 7
      %v2616 = vsub.s32 7, %v2615
      %v2617 = vrot.slane %v2147, %v2616
      %2619 = vbcast.lane.b32.xlu0 %v2617, 256
      %v2620 = vpop.permute.xlu0 %2619
      %v2621 = vlaneseq
      %v2622 = vshrl.u32 %v2621, 7
      %v2623 = vsub.s32 0, %v2622
      %v2624 = vrot.slane %v2148, %v2623
      %2626 = vbcast.lane.b32.xlu0 %v2624, 256
      %v2627 = vpop.permute.xlu0 %2626
      %v2628 = vlaneseq
      %v2629 = vshrl.u32 %v2628, 7
      %v2630 = vsub.s32 1, %v2629
      %v2631 = vrot.slane %v2148, %v2630
      %2633 = vbcast.lane.b32.xlu0 %v2631, 256
      %v2634 = vpop.permute.xlu0 %2633
      %v2635 = vlaneseq
      %v2636 = vshrl.u32 %v2635, 7
      %v2637 = vsub.s32 2, %v2636
      %v2638 = vrot.slane %v2148, %v2637
      %2640 = vbcast.lane.b32.xlu0 %v2638, 256
      %v2641 = vpop.permute.xlu0 %2640
      %v2642 = vlaneseq
      %v2643 = vshrl.u32 %v2642, 7
      %v2644 = vsub.s32 3, %v2643
      %v2645 = vrot.slane %v2148, %v2644
      %2647 = vbcast.lane.b32.xlu0 %v2645, 256
      %v2648 = vpop.permute.xlu0 %2647
      %v2649 = vlaneseq
      %v2650 = vshrl.u32 %v2649, 7
      %v2651 = vsub.s32 4, %v2650
      %v2652 = vrot.slane %v2148, %v2651
      %2654 = vbcast.lane.b32.xlu0 %v2652, 256
      %v2655 = vpop.permute.xlu0 %2654
      %v2656 = vlaneseq
      %v2657 = vshrl.u32 %v2656, 7
      %v2658 = vsub.s32 5, %v2657
      %v2659 = vrot.slane %v2148, %v2658
      %2661 = vbcast.lane.b32.xlu0 %v2659, 256
      %v2662 = vpop.permute.xlu0 %2661
      %v2663 = vlaneseq
      %v2664 = vshrl.u32 %v2663, 7
      %v2665 = vsub.s32 6, %v2664
      %v2666 = vrot.slane %v2148, %v2665
      %2668 = vbcast.lane.b32.xlu0 %v2666, 256
      %v2669 = vpop.permute.xlu0 %2668
      %v2670 = vlaneseq
      %v2671 = vshrl.u32 %v2670, 7
      %v2672 = vsub.s32 7, %v2671
      %v2673 = vrot.slane %v2148, %v2672
      %2675 = vbcast.lane.b32.xlu0 %v2673, 256
      %v2676 = vpop.permute.xlu0 %2675
      %v2741 = vmul.f32 %v2014, %v2235
      %v2742 = vmul.f32 %v2016, %v2242
      %v2743 = vmul.f32 %v2018, %v2249
      %v2744 = vmul.f32 %v2020, %v2256
      %v2745 = vmul.f32 %v2022, %v2263
      %v2746 = vmul.f32 %v2024, %v2270
      %v2747 = vmul.f32 %v2026, %v2277
      %v2748 = vmul.f32 %v2028, %v2284
      %v2749 = vmul.f32 %v2030, %v2291
      %v2750 = vmul.f32 %v2032, %v2298
      %v2751 = vmul.f32 %v2034, %v2305
      %v2752 = vmul.f32 %v2036, %v2312
      %v2753 = vmul.f32 %v2038, %v2319
      %v2754 = vmul.f32 %v2040, %v2326
      %v2755 = vmul.f32 %v2042, %v2333
      %v2756 = vmul.f32 %v2044, %v2340
      %v2757 = vmul.f32 %v2046, %v2347
      %v2758 = vmul.f32 %v2048, %v2354
      %v2759 = vmul.f32 %v2050, %v2361
      %v2760 = vmul.f32 %v2052, %v2368
      %v2761 = vmul.f32 %v2054, %v2375
      %v2762 = vmul.f32 %v2056, %v2382
      %v2763 = vmul.f32 %v2058, %v2389
      %v2764 = vmul.f32 %v2060, %v2396
      %v2765 = vmul.f32 %v2062, %v2403
      %v2766 = vmul.f32 %v2064, %v2410
      %v2767 = vmul.f32 %v2066, %v2417
      %v2768 = vmul.f32 %v2068, %v2424
      %v2769 = vmul.f32 %v2070, %v2431
      %v2770 = vmul.f32 %v2072, %v2438
      %v2771 = vmul.f32 %v2074, %v2445
      %v2772 = vmul.f32 %v2076, %v2452
      %v2773 = vmul.f32 %v2078, %v2459
      %v2774 = vmul.f32 %v2080, %v2466
      %v2775 = vmul.f32 %v2082, %v2473
      %v2776 = vmul.f32 %v2084, %v2480
      %v2777 = vmul.f32 %v2086, %v2487
      %v2778 = vmul.f32 %v2088, %v2494
      %v2779 = vmul.f32 %v2090, %v2501
      %v2780 = vmul.f32 %v2092, %v2508
      %v2781 = vmul.f32 %v2094, %v2515
      %v2782 = vmul.f32 %v2096, %v2522
      %v2783 = vmul.f32 %v2098, %v2529
      %v2784 = vmul.f32 %v2100, %v2536
      %v2785 = vmul.f32 %v2102, %v2543
      %v2786 = vmul.f32 %v2104, %v2550
      %v2787 = vmul.f32 %v2106, %v2557
      %v2788 = vmul.f32 %v2108, %v2564
      %v2789 = vmul.f32 %v2110, %v2571
      %v2790 = vmul.f32 %v2112, %v2578
      %v2791 = vmul.f32 %v2114, %v2585
      %v2792 = vmul.f32 %v2116, %v2592
      %v2793 = vmul.f32 %v2118, %v2599
      %v2794 = vmul.f32 %v2120, %v2606
      %v2795 = vmul.f32 %v2122, %v2613
      %v2796 = vmul.f32 %v2124, %v2620
      %v2797 = vmul.f32 %v2126, %v2627
      %v2798 = vmul.f32 %v2128, %v2634
      %v2799 = vmul.f32 %v2130, %v2641
      %v2800 = vmul.f32 %v2132, %v2648
      %v2801 = vmul.f32 %v2134, %v2655
      %v2802 = vmul.f32 %v2136, %v2662
      %v2803 = vmul.f32 %v2138, %v2669
      %v2804 = vmul.f32 %v2140, %v2676
      %v2805 = vsub.f32 %v2157, %v2741
      %v2806 = vsub.f32 %v2158, %v2742
      %v2807 = vsub.f32 %v2159, %v2743
      %v2808 = vsub.f32 %v2160, %v2744
      %v2809 = vsub.f32 %v2161, %v2745
      %v2810 = vsub.f32 %v2162, %v2746
      %v2811 = vsub.f32 %v2163, %v2747
      %v2812 = vsub.f32 %v2164, %v2748
      %v2813 = vsub.f32 %v2165, %v2749
      %v2814 = vsub.f32 %v2166, %v2750
      %v2815 = vsub.f32 %v2167, %v2751
      %v2816 = vsub.f32 %v2168, %v2752
      %v2817 = vsub.f32 %v2169, %v2753
      %v2818 = vsub.f32 %v2170, %v2754
      %v2819 = vsub.f32 %v2171, %v2755
      %v2820 = vsub.f32 %v2172, %v2756
      %v2821 = vsub.f32 %v2173, %v2757
      %v2822 = vsub.f32 %v2174, %v2758
      %v2823 = vsub.f32 %v2175, %v2759
      %v2824 = vsub.f32 %v2176, %v2760
      %v2825 = vsub.f32 %v2177, %v2761
      %v2826 = vsub.f32 %v2178, %v2762
      %v2827 = vsub.f32 %v2179, %v2763
      %v2828 = vsub.f32 %v2180, %v2764
      %v2829 = vsub.f32 %v2181, %v2765
      %v2830 = vsub.f32 %v2182, %v2766
      %v2831 = vsub.f32 %v2183, %v2767
      %v2832 = vsub.f32 %v2184, %v2768
      %v2833 = vsub.f32 %v2185, %v2769
      %v2834 = vsub.f32 %v2186, %v2770
      %v2835 = vsub.f32 %v2187, %v2771
      %v2836 = vsub.f32 %v2188, %v2772
      %v2837 = vsub.f32 %v2189, %v2773
      %v2838 = vsub.f32 %v2190, %v2774
      %v2839 = vsub.f32 %v2191, %v2775
      %v2840 = vsub.f32 %v2192, %v2776
      %v2841 = vsub.f32 %v2193, %v2777
      %v2842 = vsub.f32 %v2194, %v2778
      %v2843 = vsub.f32 %v2195, %v2779
      %v2844 = vsub.f32 %v2196, %v2780
      %v2845 = vsub.f32 %v2197, %v2781
      %v2846 = vsub.f32 %v2198, %v2782
      %v2847 = vsub.f32 %v2199, %v2783
      %v2848 = vsub.f32 %v2200, %v2784
      %v2849 = vsub.f32 %v2201, %v2785
      %v2850 = vsub.f32 %v2202, %v2786
      %v2851 = vsub.f32 %v2203, %v2787
      %v2852 = vsub.f32 %v2204, %v2788
      %v2853 = vsub.f32 %v2205, %v2789
      %v2854 = vsub.f32 %v2206, %v2790
      %v2855 = vsub.f32 %v2207, %v2791
      %v2856 = vsub.f32 %v2208, %v2792
      %v2857 = vsub.f32 %v2209, %v2793
      %v2858 = vsub.f32 %v2210, %v2794
      %v2859 = vsub.f32 %v2211, %v2795
      %v2860 = vsub.f32 %v2212, %v2796
      %v2861 = vsub.f32 %v2213, %v2797
      %v2862 = vsub.f32 %v2214, %v2798
      %v2863 = vsub.f32 %v2215, %v2799
      %v2864 = vsub.f32 %v2216, %v2800
      %v2865 = vsub.f32 %v2217, %v2801
      %v2866 = vsub.f32 %v2218, %v2802
      %v2867 = vsub.f32 %v2219, %v2803
      %v2868 = vsub.f32 %v2220, %v2804
      %v2869 = vand.u32 2147483647, %v2014
      %v2870 = vand.u32 2147483647, %v2016
      %v2871 = vand.u32 2147483647, %v2018
      %v2872 = vand.u32 2147483647, %v2020
      %v2873 = vand.u32 2147483647, %v2022
      %v2874 = vand.u32 2147483647, %v2024
      %v2875 = vand.u32 2147483647, %v2026
      %v2876 = vand.u32 2147483647, %v2028
      %v2877 = vand.u32 2147483647, %v2030
      %v2878 = vand.u32 2147483647, %v2032
      %v2879 = vand.u32 2147483647, %v2034
      %v2880 = vand.u32 2147483647, %v2036
      %v2881 = vand.u32 2147483647, %v2038
      %v2882 = vand.u32 2147483647, %v2040
      %v2883 = vand.u32 2147483647, %v2042
      %v2884 = vand.u32 2147483647, %v2044
      %v2885 = vand.u32 2147483647, %v2046
      %v2886 = vand.u32 2147483647, %v2048
      %v2887 = vand.u32 2147483647, %v2050
      %v2888 = vand.u32 2147483647, %v2052
      %v2889 = vand.u32 2147483647, %v2054
      %v2890 = vand.u32 2147483647, %v2056
      %v2891 = vand.u32 2147483647, %v2058
      %v2892 = vand.u32 2147483647, %v2060
      %v2893 = vand.u32 2147483647, %v2062
      %v2894 = vand.u32 2147483647, %v2064
      %v2895 = vand.u32 2147483647, %v2066
      %v2896 = vand.u32 2147483647, %v2068
      %v2897 = vand.u32 2147483647, %v2070
      %v2898 = vand.u32 2147483647, %v2072
      %v2899 = vand.u32 2147483647, %v2074
      %v2900 = vand.u32 2147483647, %v2076
      %v2901 = vand.u32 2147483647, %v2078
      %v2902 = vand.u32 2147483647, %v2080
      %v2903 = vand.u32 2147483647, %v2082
      %v2904 = vand.u32 2147483647, %v2084
      %v2905 = vand.u32 2147483647, %v2086
      %v2906 = vand.u32 2147483647, %v2088
      %v2907 = vand.u32 2147483647, %v2090
      %v2908 = vand.u32 2147483647, %v2092
      %v2909 = vand.u32 2147483647, %v2094
      %v2910 = vand.u32 2147483647, %v2096
      %v2911 = vand.u32 2147483647, %v2098
      %v2912 = vand.u32 2147483647, %v2100
      %v2913 = vand.u32 2147483647, %v2102
      %v2914 = vand.u32 2147483647, %v2104
      %v2915 = vand.u32 2147483647, %v2106
      %v2916 = vand.u32 2147483647, %v2108
      %v2917 = vand.u32 2147483647, %v2110
      %v2918 = vand.u32 2147483647, %v2112
      %v2919 = vand.u32 2147483647, %v2114
      %v2920 = vand.u32 2147483647, %v2116
      %v2921 = vand.u32 2147483647, %v2118
      %v2922 = vand.u32 2147483647, %v2120
      %v2923 = vand.u32 2147483647, %v2122
      %v2924 = vand.u32 2147483647, %v2124
      %v2925 = vand.u32 2147483647, %v2126
      %v2926 = vand.u32 2147483647, %v2128
      %v2927 = vand.u32 2147483647, %v2130
      %v2928 = vand.u32 2147483647, %v2132
      %v2929 = vand.u32 2147483647, %v2134
      %v2930 = vand.u32 2147483647, %v2136
      %v2931 = vand.u32 2147483647, %v2138
      %v2932 = vand.u32 2147483647, %v2140
      %v2933 = vsub.f32 0.0, %v2869
      %v2934 = vsub.f32 0.0, %v2870
      %v2935 = vsub.f32 0.0, %v2871
      %v2936 = vsub.f32 0.0, %v2872
      %v2937 = vsub.f32 0.0, %v2873
      %v2938 = vsub.f32 0.0, %v2874
      %v2939 = vsub.f32 0.0, %v2875
      %v2940 = vsub.f32 0.0, %v2876
      %v2941 = vsub.f32 0.0, %v2877
      %v2942 = vsub.f32 0.0, %v2878
      %v2943 = vsub.f32 0.0, %v2879
      %v2944 = vsub.f32 0.0, %v2880
      %v2945 = vsub.f32 0.0, %v2881
      %v2946 = vsub.f32 0.0, %v2882
      %v2947 = vsub.f32 0.0, %v2883
      %v2948 = vsub.f32 0.0, %v2884
      %v2949 = vsub.f32 0.0, %v2885
      %v2950 = vsub.f32 0.0, %v2886
      %v2951 = vsub.f32 0.0, %v2887
      %v2952 = vsub.f32 0.0, %v2888
      %v2953 = vsub.f32 0.0, %v2889
      %v2954 = vsub.f32 0.0, %v2890
      %v2955 = vsub.f32 0.0, %v2891
      %v2956 = vsub.f32 0.0, %v2892
      %v2957 = vsub.f32 0.0, %v2893
      %v2958 = vsub.f32 0.0, %v2894
      %v2959 = vsub.f32 0.0, %v2895
      %v2960 = vsub.f32 0.0, %v2896
      %v2961 = vsub.f32 0.0, %v2897
      %v2962 = vsub.f32 0.0, %v2898
      %v2963 = vsub.f32 0.0, %v2899
      %v2964 = vsub.f32 0.0, %v2900
      %v2965 = vsub.f32 0.0, %v2901
      %v2966 = vsub.f32 0.0, %v2902
      %v2967 = vsub.f32 0.0, %v2903
      %v2968 = vsub.f32 0.0, %v2904
      %v2969 = vsub.f32 0.0, %v2905
      %v2970 = vsub.f32 0.0, %v2906
      %v2971 = vsub.f32 0.0, %v2907
      %v2972 = vsub.f32 0.0, %v2908
      %v2973 = vsub.f32 0.0, %v2909
      %v2974 = vsub.f32 0.0, %v2910
      %v2975 = vsub.f32 0.0, %v2911
      %v2976 = vsub.f32 0.0, %v2912
      %v2977 = vsub.f32 0.0, %v2913
      %v2978 = vsub.f32 0.0, %v2914
      %v2979 = vsub.f32 0.0, %v2915
      %v2980 = vsub.f32 0.0, %v2916
      %v2981 = vsub.f32 0.0, %v2917
      %v2982 = vsub.f32 0.0, %v2918
      %v2983 = vsub.f32 0.0, %v2919
      %v2984 = vsub.f32 0.0, %v2920
      %v2985 = vsub.f32 0.0, %v2921
      %v2986 = vsub.f32 0.0, %v2922
      %v2987 = vsub.f32 0.0, %v2923
      %v2988 = vsub.f32 0.0, %v2924
      %v2989 = vsub.f32 0.0, %v2925
      %v2990 = vsub.f32 0.0, %v2926
      %v2991 = vsub.f32 0.0, %v2927
      %v2992 = vsub.f32 0.0, %v2928
      %v2993 = vsub.f32 0.0, %v2929
      %v2994 = vsub.f32 0.0, %v2930
      %v2995 = vsub.f32 0.0, %v2931
      %v2996 = vsub.f32 0.0, %v2932
      %v2997 = vmul.f32 %v2933, 1.442695
      %v2998 = vpow.pop %v2997
      %v2999 = vmul.f32 %v2934, 1.442695
      %v3000 = vpow.pop %v2999
      %v3001 = vmul.f32 %v2935, 1.442695
      %v3002 = vpow.pop %v3001
      %v3003 = vmul.f32 %v2936, 1.442695
      %v3004 = vpow.pop %v3003
      %v3005 = vmul.f32 %v2937, 1.442695
      %v3006 = vpow.pop %v3005
      %v3007 = vmul.f32 %v2938, 1.442695
      %v3008 = vpow.pop %v3007
      %v3009 = vmul.f32 %v2939, 1.442695
      %v3010 = vpow.pop %v3009
      %v3011 = vmul.f32 %v2940, 1.442695
      %v3012 = vpow.pop %v3011
      %v3013 = vmul.f32 %v2941, 1.442695
      %v3014 = vpow.pop %v3013
      %v3015 = vmul.f32 %v2942, 1.442695
      %v3016 = vpow.pop %v3015
      %v3017 = vmul.f32 %v2943, 1.442695
      %v3018 = vpow.pop %v3017
      %v3019 = vmul.f32 %v2944, 1.442695
      %v3020 = vpow.pop %v3019
      %v3021 = vmul.f32 %v2945, 1.442695
      %v3022 = vpow.pop %v3021
      %v3023 = vmul.f32 %v2946, 1.442695
      %v3024 = vpow.pop %v3023
      %v3025 = vmul.f32 %v2947, 1.442695
      %v3026 = vpow.pop %v3025
      %v3027 = vmul.f32 %v2948, 1.442695
      %v3028 = vpow.pop %v3027
      %v3029 = vmul.f32 %v2949, 1.442695
      %v3030 = vpow.pop %v3029
      %v3031 = vmul.f32 %v2950, 1.442695
      %v3032 = vpow.pop %v3031
      %v3033 = vmul.f32 %v2951, 1.442695
      %v3034 = vpow.pop %v3033
      %v3035 = vmul.f32 %v2952, 1.442695
      %v3036 = vpow.pop %v3035
      %v3037 = vmul.f32 %v2953, 1.442695
      %v3038 = vpow.pop %v3037
      %v3039 = vmul.f32 %v2954, 1.442695
      %v3040 = vpow.pop %v3039
      %v3041 = vmul.f32 %v2955, 1.442695
      %v3042 = vpow.pop %v3041
      %v3043 = vmul.f32 %v2956, 1.442695
      %v3044 = vpow.pop %v3043
      %v3045 = vmul.f32 %v2957, 1.442695
      %v3046 = vpow.pop %v3045
      %v3047 = vmul.f32 %v2958, 1.442695
      %v3048 = vpow.pop %v3047
      %v3049 = vmul.f32 %v2959, 1.442695
      %v3050 = vpow.pop %v3049
      %v3051 = vmul.f32 %v2960, 1.442695
      %v3052 = vpow.pop %v3051
      %v3053 = vmul.f32 %v2961, 1.442695
      %v3054 = vpow.pop %v3053
      %v3055 = vmul.f32 %v2962, 1.442695
      %v3056 = vpow.pop %v3055
      %v3057 = vmul.f32 %v2963, 1.442695
      %v3058 = vpow.pop %v3057
      %v3059 = vmul.f32 %v2964, 1.442695
      %v3060 = vpow.pop %v3059
      %v3061 = vmul.f32 %v2965, 1.442695
      %v3062 = vpow.pop %v3061
      %v3063 = vmul.f32 %v2966, 1.442695
      %v3064 = vpow.pop %v3063
      %v3065 = vmul.f32 %v2967, 1.442695
      %v3066 = vpow.pop %v3065
      %v3067 = vmul.f32 %v2968, 1.442695
      %v3068 = vpow.pop %v3067
      %v3069 = vmul.f32 %v2969, 1.442695
      %v3070 = vpow.pop %v3069
      %v3071 = vmul.f32 %v2970, 1.442695
      %v3072 = vpow.pop %v3071
      %v3073 = vmul.f32 %v2971, 1.442695
      %v3074 = vpow.pop %v3073
      %v3075 = vmul.f32 %v2972, 1.442695
      %v3076 = vpow.pop %v3075
      %v3077 = vmul.f32 %v2973, 1.442695
      %v3078 = vpow.pop %v3077
      %v3079 = vmul.f32 %v2974, 1.442695
      %v3080 = vpow.pop %v3079
      %v3081 = vmul.f32 %v2975, 1.442695
      %v3082 = vpow.pop %v3081
      %v3083 = vmul.f32 %v2976, 1.442695
      %v3084 = vpow.pop %v3083
      %v3085 = vmul.f32 %v2977, 1.442695
      %v3086 = vpow.pop %v3085
      %v3087 = vmul.f32 %v2978, 1.442695
      %v3088 = vpow.pop %v3087
      %v3089 = vmul.f32 %v2979, 1.442695
      %v3090 = vpow.pop %v3089
      %v3091 = vmul.f32 %v2980, 1.442695
      %v3092 = vpow.pop %v3091
      %v3093 = vmul.f32 %v2981, 1.442695
      %v3094 = vpow.pop %v3093
      %v3095 = vmul.f32 %v2982, 1.442695
      %v3096 = vpow.pop %v3095
      %v3097 = vmul.f32 %v2983, 1.442695
      %v3098 = vpow.pop %v3097
      %v3099 = vmul.f32 %v2984, 1.442695
      %v3100 = vpow.pop %v3099
      %v3101 = vmul.f32 %v2985, 1.442695
      %v3102 = vpow.pop %v3101
      %v3103 = vmul.f32 %v2986, 1.442695
      %v3104 = vpow.pop %v3103
      %v3105 = vmul.f32 %v2987, 1.442695
      %v3106 = vpow.pop %v3105
      %v3107 = vmul.f32 %v2988, 1.442695
      %v3108 = vpow.pop %v3107
      %v3109 = vmul.f32 %v2989, 1.442695
      %v3110 = vpow.pop %v3109
      %v3111 = vmul.f32 %v2990, 1.442695
      %v3112 = vpow.pop %v3111
      %v3113 = vmul.f32 %v2991, 1.442695
      %v3114 = vpow.pop %v3113
      %v3115 = vmul.f32 %v2992, 1.442695
      %v3116 = vpow.pop %v3115
      %v3117 = vmul.f32 %v2993, 1.442695
      %v3118 = vpow.pop %v3117
      %v3119 = vmul.f32 %v2994, 1.442695
      %v3120 = vpow.pop %v3119
      %v3121 = vmul.f32 %v2995, 1.442695
      %v3122 = vpow.pop %v3121
      %v3123 = vmul.f32 %v2996, 1.442695
      %v3124 = vpow.pop %v3123
      %v3125 = vadd.f32 %v2998, 1.0
      %v3126 = vadd.f32 %v3000, 1.0
      %v3127 = vadd.f32 %v3002, 1.0
      %v3128 = vadd.f32 %v3004, 1.0
      %v3129 = vadd.f32 %v3006, 1.0
      %v3130 = vadd.f32 %v3008, 1.0
      %v3131 = vadd.f32 %v3010, 1.0
      %v3132 = vadd.f32 %v3012, 1.0
      %v3133 = vadd.f32 %v3014, 1.0
      %v3134 = vadd.f32 %v3016, 1.0
      %v3135 = vadd.f32 %v3018, 1.0
      %v3136 = vadd.f32 %v3020, 1.0
      %v3137 = vadd.f32 %v3022, 1.0
      %v3138 = vadd.f32 %v3024, 1.0
      %v3139 = vadd.f32 %v3026, 1.0
      %v3140 = vadd.f32 %v3028, 1.0
      %v3141 = vadd.f32 %v3030, 1.0
      %v3142 = vadd.f32 %v3032, 1.0
      %v3143 = vadd.f32 %v3034, 1.0
      %v3144 = vadd.f32 %v3036, 1.0
      %v3145 = vadd.f32 %v3038, 1.0
      %v3146 = vadd.f32 %v3040, 1.0
      %v3147 = vadd.f32 %v3042, 1.0
      %v3148 = vadd.f32 %v3044, 1.0
      %v3149 = vadd.f32 %v3046, 1.0
      %v3150 = vadd.f32 %v3048, 1.0
      %v3151 = vadd.f32 %v3050, 1.0
      %v3152 = vadd.f32 %v3052, 1.0
      %v3153 = vadd.f32 %v3054, 1.0
      %v3154 = vadd.f32 %v3056, 1.0
      %v3155 = vadd.f32 %v3058, 1.0
      %v3156 = vadd.f32 %v3060, 1.0
      %v3157 = vadd.f32 %v3062, 1.0
      %v3158 = vadd.f32 %v3064, 1.0
      %v3159 = vadd.f32 %v3066, 1.0
      %v3160 = vadd.f32 %v3068, 1.0
      %v3161 = vadd.f32 %v3070, 1.0
      %v3162 = vadd.f32 %v3072, 1.0
      %v3163 = vadd.f32 %v3074, 1.0
      %v3164 = vadd.f32 %v3076, 1.0
      %v3165 = vadd.f32 %v3078, 1.0
      %v3166 = vadd.f32 %v3080, 1.0
      %v3167 = vadd.f32 %v3082, 1.0
      %v3168 = vadd.f32 %v3084, 1.0
      %v3169 = vadd.f32 %v3086, 1.0
      %v3170 = vadd.f32 %v3088, 1.0
      %v3171 = vadd.f32 %v3090, 1.0
      %v3172 = vadd.f32 %v3092, 1.0
      %v3173 = vadd.f32 %v3094, 1.0
      %v3174 = vadd.f32 %v3096, 1.0
      %v3175 = vadd.f32 %v3098, 1.0
      %v3176 = vadd.f32 %v3100, 1.0
      %v3177 = vadd.f32 %v3102, 1.0
      %v3178 = vadd.f32 %v3104, 1.0
      %v3179 = vadd.f32 %v3106, 1.0
      %v3180 = vadd.f32 %v3108, 1.0
      %v3181 = vadd.f32 %v3110, 1.0
      %v3182 = vadd.f32 %v3112, 1.0
      %v3183 = vadd.f32 %v3114, 1.0
      %v3184 = vadd.f32 %v3116, 1.0
      %v3185 = vadd.f32 %v3118, 1.0
      %v3186 = vadd.f32 %v3120, 1.0
      %v3187 = vadd.f32 %v3122, 1.0
      %v3188 = vadd.f32 %v3124, 1.0
      %v3189 = vlog2.pop %v3125
      %v3190 = vmul.f32 %v3189, 0.6931472
      %v3191 = vlog2.pop %v3126
      %v3192 = vmul.f32 %v3191, 0.6931472
      %v3193 = vlog2.pop %v3127
      %v3194 = vmul.f32 %v3193, 0.6931472
      %v3195 = vlog2.pop %v3128
      %v3196 = vmul.f32 %v3195, 0.6931472
      %v3197 = vlog2.pop %v3129
      %v3198 = vmul.f32 %v3197, 0.6931472
      %v3199 = vlog2.pop %v3130
      %v3200 = vmul.f32 %v3199, 0.6931472
      %v3201 = vlog2.pop %v3131
      %v3202 = vmul.f32 %v3201, 0.6931472
      %v3203 = vlog2.pop %v3132
      %v3204 = vmul.f32 %v3203, 0.6931472
      %v3205 = vlog2.pop %v3133
      %v3206 = vmul.f32 %v3205, 0.6931472
      %v3207 = vlog2.pop %v3134
      %v3208 = vmul.f32 %v3207, 0.6931472
      %v3209 = vlog2.pop %v3135
      %v3210 = vmul.f32 %v3209, 0.6931472
      %v3211 = vlog2.pop %v3136
      %v3212 = vmul.f32 %v3211, 0.6931472
      %v3213 = vlog2.pop %v3137
      %v3214 = vmul.f32 %v3213, 0.6931472
      %v3215 = vlog2.pop %v3138
      %v3216 = vmul.f32 %v3215, 0.6931472
      %v3217 = vlog2.pop %v3139
      %v3218 = vmul.f32 %v3217, 0.6931472
      %v3219 = vlog2.pop %v3140
      %v3220 = vmul.f32 %v3219, 0.6931472
      %v3221 = vlog2.pop %v3141
      %v3222 = vmul.f32 %v3221, 0.6931472
      %v3223 = vlog2.pop %v3142
      %v3224 = vmul.f32 %v3223, 0.6931472
      %v3225 = vlog2.pop %v3143
      %v3226 = vmul.f32 %v3225, 0.6931472
      %v3227 = vlog2.pop %v3144
      %v3228 = vmul.f32 %v3227, 0.6931472
      %v3229 = vlog2.pop %v3145
      %v3230 = vmul.f32 %v3229, 0.6931472
      %v3231 = vlog2.pop %v3146
      %v3232 = vmul.f32 %v3231, 0.6931472
      %v3233 = vlog2.pop %v3147
      %v3234 = vmul.f32 %v3233, 0.6931472
      %v3235 = vlog2.pop %v3148
      %v3236 = vmul.f32 %v3235, 0.6931472
      %v3237 = vlog2.pop %v3149
      %v3238 = vmul.f32 %v3237, 0.6931472
      %v3239 = vlog2.pop %v3150
      %v3240 = vmul.f32 %v3239, 0.6931472
      %v3241 = vlog2.pop %v3151
      %v3242 = vmul.f32 %v3241, 0.6931472
      %v3243 = vlog2.pop %v3152
      %v3244 = vmul.f32 %v3243, 0.6931472
      %v3245 = vlog2.pop %v3153
      %v3246 = vmul.f32 %v3245, 0.6931472
      %v3247 = vlog2.pop %v3154
      %v3248 = vmul.f32 %v3247, 0.6931472
      %v3249 = vlog2.pop %v3155
      %v3250 = vmul.f32 %v3249, 0.6931472
      %v3251 = vlog2.pop %v3156
      %v3252 = vmul.f32 %v3251, 0.6931472
      %v3253 = vlog2.pop %v3157
      %v3254 = vmul.f32 %v3253, 0.6931472
      %v3255 = vlog2.pop %v3158
      %v3256 = vmul.f32 %v3255, 0.6931472
      %v3257 = vlog2.pop %v3159
      %v3258 = vmul.f32 %v3257, 0.6931472
      %v3259 = vlog2.pop %v3160
      %v3260 = vmul.f32 %v3259, 0.6931472
      %v3261 = vlog2.pop %v3161
      %v3262 = vmul.f32 %v3261, 0.6931472
      %v3263 = vlog2.pop %v3162
      %v3264 = vmul.f32 %v3263, 0.6931472
      %v3265 = vlog2.pop %v3163
      %v3266 = vmul.f32 %v3265, 0.6931472
      %v3267 = vlog2.pop %v3164
      %v3268 = vmul.f32 %v3267, 0.6931472
      %v3269 = vlog2.pop %v3165
      %v3270 = vmul.f32 %v3269, 0.6931472
      %v3271 = vlog2.pop %v3166
      %v3272 = vmul.f32 %v3271, 0.6931472
      %v3273 = vlog2.pop %v3167
      %v3274 = vmul.f32 %v3273, 0.6931472
      %v3275 = vlog2.pop %v3168
      %v3276 = vmul.f32 %v3275, 0.6931472
      %v3277 = vlog2.pop %v3169
      %v3278 = vmul.f32 %v3277, 0.6931472
      %v3279 = vlog2.pop %v3170
      %v3280 = vmul.f32 %v3279, 0.6931472
      %v3281 = vlog2.pop %v3171
      %v3282 = vmul.f32 %v3281, 0.6931472
      %v3283 = vlog2.pop %v3172
      %v3284 = vmul.f32 %v3283, 0.6931472
      %v3285 = vlog2.pop %v3173
      %v3286 = vmul.f32 %v3285, 0.6931472
      %v3287 = vlog2.pop %v3174
      %v3288 = vmul.f32 %v3287, 0.6931472
      %v3289 = vlog2.pop %v3175
      %v3290 = vmul.f32 %v3289, 0.6931472
      %v3291 = vlog2.pop %v3176
      %v3292 = vmul.f32 %v3291, 0.6931472
      %v3293 = vlog2.pop %v3177
      %v3294 = vmul.f32 %v3293, 0.6931472
      %v3295 = vlog2.pop %v3178
      %v3296 = vmul.f32 %v3295, 0.6931472
      %v3297 = vlog2.pop %v3179
      %v3298 = vmul.f32 %v3297, 0.6931472
      %v3299 = vlog2.pop %v3180
      %v3300 = vmul.f32 %v3299, 0.6931472
      %v3301 = vlog2.pop %v3181
      %v3302 = vmul.f32 %v3301, 0.6931472
      %v3303 = vlog2.pop %v3182
      %v3304 = vmul.f32 %v3303, 0.6931472
      %v3305 = vlog2.pop %v3183
      %v3306 = vmul.f32 %v3305, 0.6931472
      %v3307 = vlog2.pop %v3184
      %v3308 = vmul.f32 %v3307, 0.6931472
      %v3309 = vlog2.pop %v3185
      %v3310 = vmul.f32 %v3309, 0.6931472
      %v3311 = vlog2.pop %v3186
      %v3312 = vmul.f32 %v3311, 0.6931472
      %v3313 = vlog2.pop %v3187
      %v3314 = vmul.f32 %v3313, 0.6931472
      %v3315 = vlog2.pop %v3188
      %v3316 = vmul.f32 %v3315, 0.6931472
      %v3317 = vadd.f32 %v2805, %v3190
      %v3318 = vadd.f32 %v2806, %v3192
      %v3319 = vadd.f32 %v2807, %v3194
      %v3320 = vadd.f32 %v2808, %v3196
      %v3321 = vadd.f32 %v2809, %v3198
      %v3322 = vadd.f32 %v2810, %v3200
      %v3323 = vadd.f32 %v2811, %v3202
      %v3324 = vadd.f32 %v2812, %v3204
      %v3325 = vadd.f32 %v2813, %v3206
      %v3326 = vadd.f32 %v2814, %v3208
      %v3327 = vadd.f32 %v2815, %v3210
      %v3328 = vadd.f32 %v2816, %v3212
      %v3329 = vadd.f32 %v2817, %v3214
      %v3330 = vadd.f32 %v2818, %v3216
      %v3331 = vadd.f32 %v2819, %v3218
      %v3332 = vadd.f32 %v2820, %v3220
      %v3333 = vadd.f32 %v2821, %v3222
      %v3334 = vadd.f32 %v2822, %v3224
      %v3335 = vadd.f32 %v2823, %v3226
      %v3336 = vadd.f32 %v2824, %v3228
      %v3337 = vadd.f32 %v2825, %v3230
      %v3338 = vadd.f32 %v2826, %v3232
      %v3339 = vadd.f32 %v2827, %v3234
      %v3340 = vadd.f32 %v2828, %v3236
      %v3341 = vadd.f32 %v2829, %v3238
      %v3342 = vadd.f32 %v2830, %v3240
      %v3343 = vadd.f32 %v2831, %v3242
      %v3344 = vadd.f32 %v2832, %v3244
      %v3345 = vadd.f32 %v2833, %v3246
      %v3346 = vadd.f32 %v2834, %v3248
      %v3347 = vadd.f32 %v2835, %v3250
      %v3348 = vadd.f32 %v2836, %v3252
      %v3349 = vadd.f32 %v2837, %v3254
      %v3350 = vadd.f32 %v2838, %v3256
      %v3351 = vadd.f32 %v2839, %v3258
      %v3352 = vadd.f32 %v2840, %v3260
      %v3353 = vadd.f32 %v2841, %v3262
      %v3354 = vadd.f32 %v2842, %v3264
      %v3355 = vadd.f32 %v2843, %v3266
      %v3356 = vadd.f32 %v2844, %v3268
      %v3357 = vadd.f32 %v2845, %v3270
      %v3358 = vadd.f32 %v2846, %v3272
      %v3359 = vadd.f32 %v2847, %v3274
      %v3360 = vadd.f32 %v2848, %v3276
      %v3361 = vadd.f32 %v2849, %v3278
      %v3362 = vadd.f32 %v2850, %v3280
      %v3363 = vadd.f32 %v2851, %v3282
      %v3364 = vadd.f32 %v2852, %v3284
      %v3365 = vadd.f32 %v2853, %v3286
      %v3366 = vadd.f32 %v2854, %v3288
      %v3367 = vadd.f32 %v2855, %v3290
      %v3368 = vadd.f32 %v2856, %v3292
      %v3369 = vadd.f32 %v2857, %v3294
      %v3370 = vadd.f32 %v2858, %v3296
      %v3371 = vadd.f32 %v2859, %v3298
      %v3372 = vadd.f32 %v2860, %v3300
      %v3373 = vadd.f32 %v2861, %v3302
      %v3374 = vadd.f32 %v2862, %v3304
      %v3375 = vadd.f32 %v2863, %v3306
      %v3376 = vadd.f32 %v2864, %v3308
      %v3377 = vadd.f32 %v2865, %v3310
      %v3378 = vadd.f32 %v2866, %v3312
      %v3379 = vadd.f32 %v2867, %v3314
      %v3380 = vadd.f32 %v2868, %v3316
      %3445 = vset.pattern.permute.xlu0 0
      %3446 = vperm.xlu0 %3445, %v3317
      %v3447 = vpop.permute.xlu0 %3446
      %3448 = vset.pattern.permute.xlu0 0
      %3449 = vperm.xlu0 %3448, %v3318
      %v3450 = vpop.permute.xlu0 %3449
      %3451 = vset.pattern.permute.xlu0 0
      %3452 = vperm.xlu0 %3451, %v3319
      %v3453 = vpop.permute.xlu0 %3452
      %3454 = vset.pattern.permute.xlu0 0
      %3455 = vperm.xlu0 %3454, %v3320
      %v3456 = vpop.permute.xlu0 %3455
      %3457 = vset.pattern.permute.xlu0 0
      %3458 = vperm.xlu0 %3457, %v3321
      %v3459 = vpop.permute.xlu0 %3458
      %3460 = vset.pattern.permute.xlu0 0
      %3461 = vperm.xlu0 %3460, %v3322
      %v3462 = vpop.permute.xlu0 %3461
      %3463 = vset.pattern.permute.xlu0 0
      %3464 = vperm.xlu0 %3463, %v3323
      %v3465 = vpop.permute.xlu0 %3464
      %3466 = vset.pattern.permute.xlu0 0
      %3467 = vperm.xlu0 %3466, %v3324
      %v3468 = vpop.permute.xlu0 %3467
      %3469 = vset.pattern.permute.xlu0 0
      %3470 = vperm.xlu0 %3469, %v3325
      %v3471 = vpop.permute.xlu0 %3470
      %3472 = vset.pattern.permute.xlu0 0
      %3473 = vperm.xlu0 %3472, %v3326
      %v3474 = vpop.permute.xlu0 %3473
      %3475 = vset.pattern.permute.xlu0 0
      %3476 = vperm.xlu0 %3475, %v3327
      %v3477 = vpop.permute.xlu0 %3476
      %3478 = vset.pattern.permute.xlu0 0
      %3479 = vperm.xlu0 %3478, %v3328
      %v3480 = vpop.permute.xlu0 %3479
      %3481 = vset.pattern.permute.xlu0 0
      %3482 = vperm.xlu0 %3481, %v3329
      %v3483 = vpop.permute.xlu0 %3482
      %3484 = vset.pattern.permute.xlu0 0
      %3485 = vperm.xlu0 %3484, %v3330
      %v3486 = vpop.permute.xlu0 %3485
      %3487 = vset.pattern.permute.xlu0 0
      %3488 = vperm.xlu0 %3487, %v3331
      %v3489 = vpop.permute.xlu0 %3488
      %3490 = vset.pattern.permute.xlu0 0
      %3491 = vperm.xlu0 %3490, %v3332
      %v3492 = vpop.permute.xlu0 %3491
      %3493 = vset.pattern.permute.xlu0 0
      %3494 = vperm.xlu0 %3493, %v3333
      %v3495 = vpop.permute.xlu0 %3494
      %3496 = vset.pattern.permute.xlu0 0
      %3497 = vperm.xlu0 %3496, %v3334
      %v3498 = vpop.permute.xlu0 %3497
      %3499 = vset.pattern.permute.xlu0 0
      %3500 = vperm.xlu0 %3499, %v3335
      %v3501 = vpop.permute.xlu0 %3500
      %3502 = vset.pattern.permute.xlu0 0
      %3503 = vperm.xlu0 %3502, %v3336
      %v3504 = vpop.permute.xlu0 %3503
      %3505 = vset.pattern.permute.xlu0 0
      %3506 = vperm.xlu0 %3505, %v3337
      %v3507 = vpop.permute.xlu0 %3506
      %3508 = vset.pattern.permute.xlu0 0
      %3509 = vperm.xlu0 %3508, %v3338
      %v3510 = vpop.permute.xlu0 %3509
      %3511 = vset.pattern.permute.xlu0 0
      %3512 = vperm.xlu0 %3511, %v3339
      %v3513 = vpop.permute.xlu0 %3512
      %3514 = vset.pattern.permute.xlu0 0
      %3515 = vperm.xlu0 %3514, %v3340
      %v3516 = vpop.permute.xlu0 %3515
      %3517 = vset.pattern.permute.xlu0 0
      %3518 = vperm.xlu0 %3517, %v3341
      %v3519 = vpop.permute.xlu0 %3518
      %3520 = vset.pattern.permute.xlu0 0
      %3521 = vperm.xlu0 %3520, %v3342
      %v3522 = vpop.permute.xlu0 %3521
      %3523 = vset.pattern.permute.xlu0 0
      %3524 = vperm.xlu0 %3523, %v3343
      %v3525 = vpop.permute.xlu0 %3524
      %3526 = vset.pattern.permute.xlu0 0
      %3527 = vperm.xlu0 %3526, %v3344
      %v3528 = vpop.permute.xlu0 %3527
      %3529 = vset.pattern.permute.xlu0 0
      %3530 = vperm.xlu0 %3529, %v3345
      %v3531 = vpop.permute.xlu0 %3530
      %3532 = vset.pattern.permute.xlu0 0
      %3533 = vperm.xlu0 %3532, %v3346
      %v3534 = vpop.permute.xlu0 %3533
      %3535 = vset.pattern.permute.xlu0 0
      %3536 = vperm.xlu0 %3535, %v3347
      %v3537 = vpop.permute.xlu0 %3536
      %3538 = vset.pattern.permute.xlu0 0
      %3539 = vperm.xlu0 %3538, %v3348
      %v3540 = vpop.permute.xlu0 %3539
      %3541 = vset.pattern.permute.xlu0 0
      %3542 = vperm.xlu0 %3541, %v3349
      %v3543 = vpop.permute.xlu0 %3542
      %3544 = vset.pattern.permute.xlu0 0
      %3545 = vperm.xlu0 %3544, %v3350
      %v3546 = vpop.permute.xlu0 %3545
      %3547 = vset.pattern.permute.xlu0 0
      %3548 = vperm.xlu0 %3547, %v3351
      %v3549 = vpop.permute.xlu0 %3548
      %3550 = vset.pattern.permute.xlu0 0
      %3551 = vperm.xlu0 %3550, %v3352
      %v3552 = vpop.permute.xlu0 %3551
      %3553 = vset.pattern.permute.xlu0 0
      %3554 = vperm.xlu0 %3553, %v3353
      %v3555 = vpop.permute.xlu0 %3554
      %3556 = vset.pattern.permute.xlu0 0
      %3557 = vperm.xlu0 %3556, %v3354
      %v3558 = vpop.permute.xlu0 %3557
      %3559 = vset.pattern.permute.xlu0 0
      %3560 = vperm.xlu0 %3559, %v3355
      %v3561 = vpop.permute.xlu0 %3560
      %3562 = vset.pattern.permute.xlu0 0
      %3563 = vperm.xlu0 %3562, %v3356
      %v3564 = vpop.permute.xlu0 %3563
      %3565 = vset.pattern.permute.xlu0 0
      %3566 = vperm.xlu0 %3565, %v3357
      %v3567 = vpop.permute.xlu0 %3566
      %3568 = vset.pattern.permute.xlu0 0
      %3569 = vperm.xlu0 %3568, %v3358
      %v3570 = vpop.permute.xlu0 %3569
      %3571 = vset.pattern.permute.xlu0 0
      %3572 = vperm.xlu0 %3571, %v3359
      %v3573 = vpop.permute.xlu0 %3572
      %3574 = vset.pattern.permute.xlu0 0
      %3575 = vperm.xlu0 %3574, %v3360
      %v3576 = vpop.permute.xlu0 %3575
      %3577 = vset.pattern.permute.xlu0 0
      %3578 = vperm.xlu0 %3577, %v3361
      %v3579 = vpop.permute.xlu0 %3578
      %3580 = vset.pattern.permute.xlu0 0
      %3581 = vperm.xlu0 %3580, %v3362
      %v3582 = vpop.permute.xlu0 %3581
      %3583 = vset.pattern.permute.xlu0 0
      %3584 = vperm.xlu0 %3583, %v3363
      %v3585 = vpop.permute.xlu0 %3584
      %3586 = vset.pattern.permute.xlu0 0
      %3587 = vperm.xlu0 %3586, %v3364
      %v3588 = vpop.permute.xlu0 %3587
      %3589 = vset.pattern.permute.xlu0 0
      %3590 = vperm.xlu0 %3589, %v3365
      %v3591 = vpop.permute.xlu0 %3590
      %3592 = vset.pattern.permute.xlu0 0
      %3593 = vperm.xlu0 %3592, %v3366
      %v3594 = vpop.permute.xlu0 %3593
      %3595 = vset.pattern.permute.xlu0 0
      %3596 = vperm.xlu0 %3595, %v3367
      %v3597 = vpop.permute.xlu0 %3596
      %3598 = vset.pattern.permute.xlu0 0
      %3599 = vperm.xlu0 %3598, %v3368
      %v3600 = vpop.permute.xlu0 %3599
      %3601 = vset.pattern.permute.xlu0 0
      %3602 = vperm.xlu0 %3601, %v3369
      %v3603 = vpop.permute.xlu0 %3602
      %3604 = vset.pattern.permute.xlu0 0
      %3605 = vperm.xlu0 %3604, %v3370
      %v3606 = vpop.permute.xlu0 %3605
      %3607 = vset.pattern.permute.xlu0 0
      %3608 = vperm.xlu0 %3607, %v3371
      %v3609 = vpop.permute.xlu0 %3608
      %3610 = vset.pattern.permute.xlu0 0
      %3611 = vperm.xlu0 %3610, %v3372
      %v3612 = vpop.permute.xlu0 %3611
      %3613 = vset.pattern.permute.xlu0 0
      %3614 = vperm.xlu0 %3613, %v3373
      %v3615 = vpop.permute.xlu0 %3614
      %3616 = vset.pattern.permute.xlu0 0
      %3617 = vperm.xlu0 %3616, %v3374
      %v3618 = vpop.permute.xlu0 %3617
      %3619 = vset.pattern.permute.xlu0 0
      %3620 = vperm.xlu0 %3619, %v3375
      %v3621 = vpop.permute.xlu0 %3620
      %3622 = vset.pattern.permute.xlu0 0
      %3623 = vperm.xlu0 %3622, %v3376
      %v3624 = vpop.permute.xlu0 %3623
      %3625 = vset.pattern.permute.xlu0 0
      %3626 = vperm.xlu0 %3625, %v3377
      %v3627 = vpop.permute.xlu0 %3626
      %3628 = vset.pattern.permute.xlu0 0
      %3629 = vperm.xlu0 %3628, %v3378
      %v3630 = vpop.permute.xlu0 %3629
      %3631 = vset.pattern.permute.xlu0 0
      %3632 = vperm.xlu0 %3631, %v3379
      %v3633 = vpop.permute.xlu0 %3632
      %3634 = vset.pattern.permute.xlu0 0
      %3635 = vperm.xlu0 %3634, %v3380
      %v3636 = vpop.permute.xlu0 %3635
      %v3637 = vlaneseq
      %v3638 = vshrl.u32 %v3637, 7
      %v3639 = vsub.s32 %v716, %v3638
      %v3640 = vrot.slane %v3447, %v3639
      %v3641 = vlaneseq
      %v3642 = vshrl.u32 %v3641, 7
      %v3643 = vsub.s32 %v716, %v3642
      %v3644 = vrot.slane %v3450, %v3643
      %v3645 = vlaneseq
      %v3646 = vshrl.u32 %v3645, 7
      %v3647 = vsub.s32 %v716, %v3646
      %v3648 = vrot.slane %v3453, %v3647
      %v3649 = vlaneseq
      %v3650 = vshrl.u32 %v3649, 7
      %v3651 = vsub.s32 %v716, %v3650
      %v3652 = vrot.slane %v3456, %v3651
      %v3653 = vlaneseq
      %v3654 = vshrl.u32 %v3653, 7
      %v3655 = vsub.s32 %v716, %v3654
      %v3656 = vrot.slane %v3459, %v3655
      %v3657 = vlaneseq
      %v3658 = vshrl.u32 %v3657, 7
      %v3659 = vsub.s32 %v716, %v3658
      %v3660 = vrot.slane %v3462, %v3659
      %v3661 = vlaneseq
      %v3662 = vshrl.u32 %v3661, 7
      %v3663 = vsub.s32 %v716, %v3662
      %v3664 = vrot.slane %v3465, %v3663
      %v3665 = vlaneseq
      %v3666 = vshrl.u32 %v3665, 7
      %v3667 = vsub.s32 %v716, %v3666
      %v3668 = vrot.slane %v3468, %v3667
      %v3669 = vlaneseq
      %v3670 = vshrl.u32 %v3669, 7
      %v3671 = vsub.s32 %v716, %v3670
      %v3672 = vrot.slane %v3471, %v3671
      %v3673 = vlaneseq
      %v3674 = vshrl.u32 %v3673, 7
      %v3675 = vsub.s32 %v716, %v3674
      %v3676 = vrot.slane %v3474, %v3675
      %v3677 = vlaneseq
      %v3678 = vshrl.u32 %v3677, 7
      %v3679 = vsub.s32 %v716, %v3678
      %v3680 = vrot.slane %v3477, %v3679
      %v3681 = vlaneseq
      %v3682 = vshrl.u32 %v3681, 7
      %v3683 = vsub.s32 %v716, %v3682
      %v3684 = vrot.slane %v3480, %v3683
      %v3685 = vlaneseq
      %v3686 = vshrl.u32 %v3685, 7
      %v3687 = vsub.s32 %v716, %v3686
      %v3688 = vrot.slane %v3483, %v3687
      %v3689 = vlaneseq
      %v3690 = vshrl.u32 %v3689, 7
      %v3691 = vsub.s32 %v716, %v3690
      %v3692 = vrot.slane %v3486, %v3691
      %v3693 = vlaneseq
      %v3694 = vshrl.u32 %v3693, 7
      %v3695 = vsub.s32 %v716, %v3694
      %v3696 = vrot.slane %v3489, %v3695
      %v3697 = vlaneseq
      %v3698 = vshrl.u32 %v3697, 7
      %v3699 = vsub.s32 %v716, %v3698
      %v3700 = vrot.slane %v3492, %v3699
      %v3701 = vlaneseq
      %v3702 = vshrl.u32 %v3701, 7
      %v3703 = vsub.s32 %v716, %v3702
      %v3704 = vrot.slane %v3495, %v3703
      %v3705 = vlaneseq
      %v3706 = vshrl.u32 %v3705, 7
      %v3707 = vsub.s32 %v716, %v3706
      %v3708 = vrot.slane %v3498, %v3707
      %v3709 = vlaneseq
      %v3710 = vshrl.u32 %v3709, 7
      %v3711 = vsub.s32 %v716, %v3710
      %v3712 = vrot.slane %v3501, %v3711
      %v3713 = vlaneseq
      %v3714 = vshrl.u32 %v3713, 7
      %v3715 = vsub.s32 %v716, %v3714
      %v3716 = vrot.slane %v3504, %v3715
      %v3717 = vlaneseq
      %v3718 = vshrl.u32 %v3717, 7
      %v3719 = vsub.s32 %v716, %v3718
      %v3720 = vrot.slane %v3507, %v3719
      %v3721 = vlaneseq
      %v3722 = vshrl.u32 %v3721, 7
      %v3723 = vsub.s32 %v716, %v3722
      %v3724 = vrot.slane %v3510, %v3723
      %v3725 = vlaneseq
      %v3726 = vshrl.u32 %v3725, 7
      %v3727 = vsub.s32 %v716, %v3726
      %v3728 = vrot.slane %v3513, %v3727
      %v3729 = vlaneseq
      %v3730 = vshrl.u32 %v3729, 7
      %v3731 = vsub.s32 %v716, %v3730
      %v3732 = vrot.slane %v3516, %v3731
      %v3733 = vlaneseq
      %v3734 = vshrl.u32 %v3733, 7
      %v3735 = vsub.s32 %v716, %v3734
      %v3736 = vrot.slane %v3519, %v3735
      %v3737 = vlaneseq
      %v3738 = vshrl.u32 %v3737, 7
      %v3739 = vsub.s32 %v716, %v3738
      %v3740 = vrot.slane %v3522, %v3739
      %v3741 = vlaneseq
      %v3742 = vshrl.u32 %v3741, 7
      %v3743 = vsub.s32 %v716, %v3742
      %v3744 = vrot.slane %v3525, %v3743
      %v3745 = vlaneseq
      %v3746 = vshrl.u32 %v3745, 7
      %v3747 = vsub.s32 %v716, %v3746
      %v3748 = vrot.slane %v3528, %v3747
      %v3749 = vlaneseq
      %v3750 = vshrl.u32 %v3749, 7
      %v3751 = vsub.s32 %v716, %v3750
      %v3752 = vrot.slane %v3531, %v3751
      %v3753 = vlaneseq
      %v3754 = vshrl.u32 %v3753, 7
      %v3755 = vsub.s32 %v716, %v3754
      %v3756 = vrot.slane %v3534, %v3755
      %v3757 = vlaneseq
      %v3758 = vshrl.u32 %v3757, 7
      %v3759 = vsub.s32 %v716, %v3758
      %v3760 = vrot.slane %v3537, %v3759
      %v3761 = vlaneseq
      %v3762 = vshrl.u32 %v3761, 7
      %v3763 = vsub.s32 %v716, %v3762
      %v3764 = vrot.slane %v3540, %v3763
      %v3765 = vlaneseq
      %v3766 = vshrl.u32 %v3765, 7
      %v3767 = vsub.s32 %v716, %v3766
      %v3768 = vrot.slane %v3543, %v3767
      %v3769 = vlaneseq
      %v3770 = vshrl.u32 %v3769, 7
      %v3771 = vsub.s32 %v716, %v3770
      %v3772 = vrot.slane %v3546, %v3771
      %v3773 = vlaneseq
      %v3774 = vshrl.u32 %v3773, 7
      %v3775 = vsub.s32 %v716, %v3774
      %v3776 = vrot.slane %v3549, %v3775
      %v3777 = vlaneseq
      %v3778 = vshrl.u32 %v3777, 7
      %v3779 = vsub.s32 %v716, %v3778
      %v3780 = vrot.slane %v3552, %v3779
      %v3781 = vlaneseq
      %v3782 = vshrl.u32 %v3781, 7
      %v3783 = vsub.s32 %v716, %v3782
      %v3784 = vrot.slane %v3555, %v3783
      %v3785 = vlaneseq
      %v3786 = vshrl.u32 %v3785, 7
      %v3787 = vsub.s32 %v716, %v3786
      %v3788 = vrot.slane %v3558, %v3787
      %v3789 = vlaneseq
      %v3790 = vshrl.u32 %v3789, 7
      %v3791 = vsub.s32 %v716, %v3790
      %v3792 = vrot.slane %v3561, %v3791
      %v3793 = vlaneseq
      %v3794 = vshrl.u32 %v3793, 7
      %v3795 = vsub.s32 %v716, %v3794
      %v3796 = vrot.slane %v3564, %v3795
      %v3797 = vlaneseq
      %v3798 = vshrl.u32 %v3797, 7
      %v3799 = vsub.s32 %v716, %v3798
      %v3800 = vrot.slane %v3567, %v3799
      %v3801 = vlaneseq
      %v3802 = vshrl.u32 %v3801, 7
      %v3803 = vsub.s32 %v716, %v3802
      %v3804 = vrot.slane %v3570, %v3803
      %v3805 = vlaneseq
      %v3806 = vshrl.u32 %v3805, 7
      %v3807 = vsub.s32 %v716, %v3806
      %v3808 = vrot.slane %v3573, %v3807
      %v3809 = vlaneseq
      %v3810 = vshrl.u32 %v3809, 7
      %v3811 = vsub.s32 %v716, %v3810
      %v3812 = vrot.slane %v3576, %v3811
      %v3813 = vlaneseq
      %v3814 = vshrl.u32 %v3813, 7
      %v3815 = vsub.s32 %v716, %v3814
      %v3816 = vrot.slane %v3579, %v3815
      %v3817 = vlaneseq
      %v3818 = vshrl.u32 %v3817, 7
      %v3819 = vsub.s32 %v716, %v3818
      %v3820 = vrot.slane %v3582, %v3819
      %v3821 = vlaneseq
      %v3822 = vshrl.u32 %v3821, 7
      %v3823 = vsub.s32 %v716, %v3822
      %v3824 = vrot.slane %v3585, %v3823
      %v3825 = vlaneseq
      %v3826 = vshrl.u32 %v3825, 7
      %v3827 = vsub.s32 %v716, %v3826
      %v3828 = vrot.slane %v3588, %v3827
      %v3829 = vlaneseq
      %v3830 = vshrl.u32 %v3829, 7
      %v3831 = vsub.s32 %v716, %v3830
      %v3832 = vrot.slane %v3591, %v3831
      %v3833 = vlaneseq
      %v3834 = vshrl.u32 %v3833, 7
      %v3835 = vsub.s32 %v716, %v3834
      %v3836 = vrot.slane %v3594, %v3835
      %v3837 = vlaneseq
      %v3838 = vshrl.u32 %v3837, 7
      %v3839 = vsub.s32 %v716, %v3838
      %v3840 = vrot.slane %v3597, %v3839
      %v3841 = vlaneseq
      %v3842 = vshrl.u32 %v3841, 7
      %v3843 = vsub.s32 %v716, %v3842
      %v3844 = vrot.slane %v3600, %v3843
      %v3845 = vlaneseq
      %v3846 = vshrl.u32 %v3845, 7
      %v3847 = vsub.s32 %v716, %v3846
      %v3848 = vrot.slane %v3603, %v3847
      %v3849 = vlaneseq
      %v3850 = vshrl.u32 %v3849, 7
      %v3851 = vsub.s32 %v716, %v3850
      %v3852 = vrot.slane %v3606, %v3851
      %v3853 = vlaneseq
      %v3854 = vshrl.u32 %v3853, 7
      %v3855 = vsub.s32 %v716, %v3854
      %v3856 = vrot.slane %v3609, %v3855
      %v3857 = vlaneseq
      %v3858 = vshrl.u32 %v3857, 7
      %v3859 = vsub.s32 %v716, %v3858
      %v3860 = vrot.slane %v3612, %v3859
      %v3861 = vlaneseq
      %v3862 = vshrl.u32 %v3861, 7
      %v3863 = vsub.s32 %v716, %v3862
      %v3864 = vrot.slane %v3615, %v3863
      %v3865 = vlaneseq
      %v3866 = vshrl.u32 %v3865, 7
      %v3867 = vsub.s32 %v716, %v3866
      %v3868 = vrot.slane %v3618, %v3867
      %v3869 = vlaneseq
      %v3870 = vshrl.u32 %v3869, 7
      %v3871 = vsub.s32 %v716, %v3870
      %v3872 = vrot.slane %v3621, %v3871
      %v3873 = vlaneseq
      %v3874 = vshrl.u32 %v3873, 7
      %v3875 = vsub.s32 %v716, %v3874
      %v3876 = vrot.slane %v3624, %v3875
      %v3877 = vlaneseq
      %v3878 = vshrl.u32 %v3877, 7
      %v3879 = vsub.s32 %v716, %v3878
      %v3880 = vrot.slane %v3627, %v3879
      %v3881 = vlaneseq
      %v3882 = vshrl.u32 %v3881, 7
      %v3883 = vsub.s32 %v716, %v3882
      %v3884 = vrot.slane %v3630, %v3883
      %v3885 = vlaneseq
      %v3886 = vshrl.u32 %v3885, 7
      %v3887 = vsub.s32 %v716, %v3886
      %v3888 = vrot.slane %v3633, %v3887
      %v3889 = vlaneseq
      %v3890 = vshrl.u32 %v3889, 7
      %v3891 = vsub.s32 %v716, %v3890
      %v3892 = vrot.slane %v3636, %v3891
      %vm3893 = vcmask 1041409
      %v3894 = vsel %vm3893, %v3644, %v3640
      %vm3895 = vcmask 1042434
      %v3896 = vsel %vm3895, %v3648, %v3894
      %vm3897 = vcmask 1043459
      %v3898 = vsel %vm3897, %v3652, %v3896
      %vm3899 = vcmask 1044484
      %v3900 = vsel %vm3899, %v3656, %v3898
      %vm3901 = vcmask 1045509
      %v3902 = vsel %vm3901, %v3660, %v3900
      %vm3903 = vcmask 1046534
      %v3904 = vsel %vm3903, %v3664, %v3902
      %vm3905 = vcmask 1047559
      %v3906 = vsel %vm3905, %v3668, %v3904
      %v3907 = vsel %vm3893, %v3676, %v3672
      %v3908 = vsel %vm3895, %v3680, %v3907
      %v3909 = vsel %vm3897, %v3684, %v3908
      %v3910 = vsel %vm3899, %v3688, %v3909
      %v3911 = vsel %vm3901, %v3692, %v3910
      %v3912 = vsel %vm3903, %v3696, %v3911
      %v3913 = vsel %vm3905, %v3700, %v3912
      %v3914 = vsel %vm3893, %v3708, %v3704
      %v3915 = vsel %vm3895, %v3712, %v3914
      %v3916 = vsel %vm3897, %v3716, %v3915
      %v3917 = vsel %vm3899, %v3720, %v3916
      %v3918 = vsel %vm3901, %v3724, %v3917
      %v3919 = vsel %vm3903, %v3728, %v3918
      %v3920 = vsel %vm3905, %v3732, %v3919
      %v3921 = vsel %vm3893, %v3740, %v3736
      %v3922 = vsel %vm3895, %v3744, %v3921
      %v3923 = vsel %vm3897, %v3748, %v3922
      %v3924 = vsel %vm3899, %v3752, %v3923
      %v3925 = vsel %vm3901, %v3756, %v3924
      %v3926 = vsel %vm3903, %v3760, %v3925
      %v3927 = vsel %vm3905, %v3764, %v3926
      %v3928 = vsel %vm3893, %v3772, %v3768
      %v3929 = vsel %vm3895, %v3776, %v3928
      %v3930 = vsel %vm3897, %v3780, %v3929
      %v3931 = vsel %vm3899, %v3784, %v3930
      %v3932 = vsel %vm3901, %v3788, %v3931
      %v3933 = vsel %vm3903, %v3792, %v3932
      %v3934 = vsel %vm3905, %v3796, %v3933
      %v3935 = vsel %vm3893, %v3804, %v3800
      %v3936 = vsel %vm3895, %v3808, %v3935
      %v3937 = vsel %vm3897, %v3812, %v3936
      %v3938 = vsel %vm3899, %v3816, %v3937
      %v3939 = vsel %vm3901, %v3820, %v3938
      %v3940 = vsel %vm3903, %v3824, %v3939
      %v3941 = vsel %vm3905, %v3828, %v3940
      %v3942 = vsel %vm3893, %v3836, %v3832
      %v3943 = vsel %vm3895, %v3840, %v3942
      %v3944 = vsel %vm3897, %v3844, %v3943
      %v3945 = vsel %vm3899, %v3848, %v3944
      %v3946 = vsel %vm3901, %v3852, %v3945
      %v3947 = vsel %vm3903, %v3856, %v3946
      %v3948 = vsel %vm3905, %v3860, %v3947
      %v3949 = vsel %vm3893, %v3868, %v3864
      %v3950 = vsel %vm3895, %v3872, %v3949
      %v3951 = vsel %vm3897, %v3876, %v3950
      %v3952 = vsel %vm3899, %v3880, %v3951
      %v3953 = vsel %vm3901, %v3884, %v3952
      %v3954 = vsel %vm3903, %v3888, %v3953
      %v3955 = vsel %vm3905, %v3892, %v3954
      %v3964 = vmul.f32 %v2149, %v3906
      %v3965 = vmul.f32 %v2150, %v3913
      %v3966 = vmul.f32 %v2151, %v3920
      %v3967 = vmul.f32 %v2152, %v3927
      %v3968 = vmul.f32 %v2153, %v3934
      %v3969 = vmul.f32 %v2154, %v3941
      %v3970 = vmul.f32 %v2155, %v3948
      %v3971 = vmul.f32 %v2156, %v3955
      %vm3972 = vcmask 64512
      %v3973 = vsel %vm3972, %v3964, 0.0
      %v3974 = vsel %vm3972, %v3965, 0.0
      %v3975 = vadd.f32 %v3973, %v3974
      %v3976 = vsel %vm3972, %v3966, 0.0
      %v3977 = vadd.f32 %v3975, %v3976
      %v3978 = vsel %vm3972, %v3967, 0.0
      %v3979 = vadd.f32 %v3977, %v3978
      %v3980 = vsel %vm3972, %v3968, 0.0
      %v3981 = vadd.f32 %v3979, %v3980
      %v3982 = vsel %vm3972, %v3969, 0.0
      %v3983 = vadd.f32 %v3981, %v3982
      %v3984 = vsel %vm3972, %v3970, 0.0
      %v3985 = vadd.f32 %v3983, %v3984
      %v3986 = vsel %vm3972, %v3971, 0.0
      %v3987 = vadd.f32 %v3985, %v3986
      %3988 = vadd.xlane.f32.xlu0 %v3987
      %v3989 = vpop.xlane.xlu0 %3988
      %v3990 = vrot.slane %v3989, 4
      %v3991 = vadd.f32 %v3989, %v3990
      %v3992 = vrot.slane %v3991, 2
      %v3993 = vadd.f32 %v3991, %v3992
      %v3994 = vrot.slane %v3993, 1
      %v3995 = vadd.f32 %v3993, %v3994
      %s3996 = vtos %v3995
      %v3997 = vstv %s3996
      %vm3998 = vcmask 0
      %3999 = vst.msk [vmem:[%s404] sm:$0x1] %vm3998, %v3997
      %v4000 = vxor.u32 %v2014, 2147483648
      %v4001 = vxor.u32 %v2016, 2147483648
      %v4002 = vxor.u32 %v2018, 2147483648
      %v4003 = vxor.u32 %v2020, 2147483648
      %v4004 = vxor.u32 %v2022, 2147483648
      %v4005 = vxor.u32 %v2024, 2147483648
      %v4006 = vxor.u32 %v2026, 2147483648
      %v4007 = vxor.u32 %v2028, 2147483648
      %v4008 = vxor.u32 %v2030, 2147483648
      %v4009 = vxor.u32 %v2032, 2147483648
      %v4010 = vxor.u32 %v2034, 2147483648
      %v4011 = vxor.u32 %v2036, 2147483648
      %v4012 = vxor.u32 %v2038, 2147483648
      %v4013 = vxor.u32 %v2040, 2147483648
      %v4014 = vxor.u32 %v2042, 2147483648
      %v4015 = vxor.u32 %v2044, 2147483648
      %v4016 = vxor.u32 %v2046, 2147483648
      %v4017 = vxor.u32 %v2048, 2147483648
      %v4018 = vxor.u32 %v2050, 2147483648
      %v4019 = vxor.u32 %v2052, 2147483648
      %v4020 = vxor.u32 %v2054, 2147483648
      %v4021 = vxor.u32 %v2056, 2147483648
      %v4022 = vxor.u32 %v2058, 2147483648
      %v4023 = vxor.u32 %v2060, 2147483648
      %v4024 = vxor.u32 %v2062, 2147483648
      %v4025 = vxor.u32 %v2064, 2147483648
      %v4026 = vxor.u32 %v2066, 2147483648
      %v4027 = vxor.u32 %v2068, 2147483648
      %v4028 = vxor.u32 %v2070, 2147483648
      %v4029 = vxor.u32 %v2072, 2147483648
      %v4030 = vxor.u32 %v2074, 2147483648
      %v4031 = vxor.u32 %v2076, 2147483648
      %v4032 = vxor.u32 %v2078, 2147483648
      %v4033 = vxor.u32 %v2080, 2147483648
      %v4034 = vxor.u32 %v2082, 2147483648
      %v4035 = vxor.u32 %v2084, 2147483648
      %v4036 = vxor.u32 %v2086, 2147483648
      %v4037 = vxor.u32 %v2088, 2147483648
      %v4038 = vxor.u32 %v2090, 2147483648
      %v4039 = vxor.u32 %v2092, 2147483648
      %v4040 = vxor.u32 %v2094, 2147483648
      %v4041 = vxor.u32 %v2096, 2147483648
      %v4042 = vxor.u32 %v2098, 2147483648
      %v4043 = vxor.u32 %v2100, 2147483648
      %v4044 = vxor.u32 %v2102, 2147483648
      %v4045 = vxor.u32 %v2104, 2147483648
      %v4046 = vxor.u32 %v2106, 2147483648
      %v4047 = vxor.u32 %v2108, 2147483648
      %v4048 = vxor.u32 %v2110, 2147483648
      %v4049 = vxor.u32 %v2112, 2147483648
      %v4050 = vxor.u32 %v2114, 2147483648
      %v4051 = vxor.u32 %v2116, 2147483648
      %v4052 = vxor.u32 %v2118, 2147483648
      %v4053 = vxor.u32 %v2120, 2147483648
      %v4054 = vxor.u32 %v2122, 2147483648
      %v4055 = vxor.u32 %v2124, 2147483648
      %v4056 = vxor.u32 %v2126, 2147483648
      %v4057 = vxor.u32 %v2128, 2147483648
      %v4058 = vxor.u32 %v2130, 2147483648
      %v4059 = vxor.u32 %v2132, 2147483648
      %v4060 = vxor.u32 %v2134, 2147483648
      %v4061 = vxor.u32 %v2136, 2147483648
      %v4062 = vxor.u32 %v2138, 2147483648
      %v4063 = vxor.u32 %v2140, 2147483648
      %v4064 = vmul.f32 %v4000, 1.442695
      %v4065 = vpow.pop %v4064
      %v4066 = vmul.f32 %v4001, 1.442695
      %v4067 = vpow.pop %v4066
      %v4068 = vmul.f32 %v4002, 1.442695
      %v4069 = vpow.pop %v4068
      %v4070 = vmul.f32 %v4003, 1.442695
      %v4071 = vpow.pop %v4070
      %v4072 = vmul.f32 %v4004, 1.442695
      %v4073 = vpow.pop %v4072
      %v4074 = vmul.f32 %v4005, 1.442695
      %v4075 = vpow.pop %v4074
      %v4076 = vmul.f32 %v4006, 1.442695
      %v4077 = vpow.pop %v4076
      %v4078 = vmul.f32 %v4007, 1.442695
      %v4079 = vpow.pop %v4078
      %v4080 = vmul.f32 %v4008, 1.442695
      %v4081 = vpow.pop %v4080
      %v4082 = vmul.f32 %v4009, 1.442695
      %v4083 = vpow.pop %v4082
      %v4084 = vmul.f32 %v4010, 1.442695
      %v4085 = vpow.pop %v4084
      %v4086 = vmul.f32 %v4011, 1.442695
      %v4087 = vpow.pop %v4086
      %v4088 = vmul.f32 %v4012, 1.442695
      %v4089 = vpow.pop %v4088
      %v4090 = vmul.f32 %v4013, 1.442695
      %v4091 = vpow.pop %v4090
      %v4092 = vmul.f32 %v4014, 1.442695
      %v4093 = vpow.pop %v4092
      %v4094 = vmul.f32 %v4015, 1.442695
      %v4095 = vpow.pop %v4094
      %v4096 = vmul.f32 %v4016, 1.442695
      %v4097 = vpow.pop %v4096
      %v4098 = vmul.f32 %v4017, 1.442695
      %v4099 = vpow.pop %v4098
      %v4100 = vmul.f32 %v4018, 1.442695
      %v4101 = vpow.pop %v4100
      %v4102 = vmul.f32 %v4019, 1.442695
      %v4103 = vpow.pop %v4102
      %v4104 = vmul.f32 %v4020, 1.442695
      %v4105 = vpow.pop %v4104
      %v4106 = vmul.f32 %v4021, 1.442695
      %v4107 = vpow.pop %v4106
      %v4108 = vmul.f32 %v4022, 1.442695
      %v4109 = vpow.pop %v4108
      %v4110 = vmul.f32 %v4023, 1.442695
      %v4111 = vpow.pop %v4110
      %v4112 = vmul.f32 %v4024, 1.442695
      %v4113 = vpow.pop %v4112
      %v4114 = vmul.f32 %v4025, 1.442695
      %v4115 = vpow.pop %v4114
      %v4116 = vmul.f32 %v4026, 1.442695
      %v4117 = vpow.pop %v4116
      %v4118 = vmul.f32 %v4027, 1.442695
      %v4119 = vpow.pop %v4118
      %v4120 = vmul.f32 %v4028, 1.442695
      %v4121 = vpow.pop %v4120
      %v4122 = vmul.f32 %v4029, 1.442695
      %v4123 = vpow.pop %v4122
      %v4124 = vmul.f32 %v4030, 1.442695
      %v4125 = vpow.pop %v4124
      %v4126 = vmul.f32 %v4031, 1.442695
      %v4127 = vpow.pop %v4126
      %v4128 = vmul.f32 %v4032, 1.442695
      %v4129 = vpow.pop %v4128
      %v4130 = vmul.f32 %v4033, 1.442695
      %v4131 = vpow.pop %v4130
      %v4132 = vmul.f32 %v4034, 1.442695
      %v4133 = vpow.pop %v4132
      %v4134 = vmul.f32 %v4035, 1.442695
      %v4135 = vpow.pop %v4134
      %v4136 = vmul.f32 %v4036, 1.442695
      %v4137 = vpow.pop %v4136
      %v4138 = vmul.f32 %v4037, 1.442695
      %v4139 = vpow.pop %v4138
      %v4140 = vmul.f32 %v4038, 1.442695
      %v4141 = vpow.pop %v4140
      %v4142 = vmul.f32 %v4039, 1.442695
      %v4143 = vpow.pop %v4142
      %v4144 = vmul.f32 %v4040, 1.442695
      %v4145 = vpow.pop %v4144
      %v4146 = vmul.f32 %v4041, 1.442695
      %v4147 = vpow.pop %v4146
      %v4148 = vmul.f32 %v4042, 1.442695
      %v4149 = vpow.pop %v4148
      %v4150 = vmul.f32 %v4043, 1.442695
      %v4151 = vpow.pop %v4150
      %v4152 = vmul.f32 %v4044, 1.442695
      %v4153 = vpow.pop %v4152
      %v4154 = vmul.f32 %v4045, 1.442695
      %v4155 = vpow.pop %v4154
      %v4156 = vmul.f32 %v4046, 1.442695
      %v4157 = vpow.pop %v4156
      %v4158 = vmul.f32 %v4047, 1.442695
      %v4159 = vpow.pop %v4158
      %v4160 = vmul.f32 %v4048, 1.442695
      %v4161 = vpow.pop %v4160
      %v4162 = vmul.f32 %v4049, 1.442695
      %v4163 = vpow.pop %v4162
      %v4164 = vmul.f32 %v4050, 1.442695
      %v4165 = vpow.pop %v4164
      %v4166 = vmul.f32 %v4051, 1.442695
      %v4167 = vpow.pop %v4166
      %v4168 = vmul.f32 %v4052, 1.442695
      %v4169 = vpow.pop %v4168
      %v4170 = vmul.f32 %v4053, 1.442695
      %v4171 = vpow.pop %v4170
      %v4172 = vmul.f32 %v4054, 1.442695
      %v4173 = vpow.pop %v4172
      %v4174 = vmul.f32 %v4055, 1.442695
      %v4175 = vpow.pop %v4174
      %v4176 = vmul.f32 %v4056, 1.442695
      %v4177 = vpow.pop %v4176
      %v4178 = vmul.f32 %v4057, 1.442695
      %v4179 = vpow.pop %v4178
      %v4180 = vmul.f32 %v4058, 1.442695
      %v4181 = vpow.pop %v4180
      %v4182 = vmul.f32 %v4059, 1.442695
      %v4183 = vpow.pop %v4182
      %v4184 = vmul.f32 %v4060, 1.442695
      %v4185 = vpow.pop %v4184
      %v4186 = vmul.f32 %v4061, 1.442695
      %v4187 = vpow.pop %v4186
      %v4188 = vmul.f32 %v4062, 1.442695
      %v4189 = vpow.pop %v4188
      %v4190 = vmul.f32 %v4063, 1.442695
      %v4191 = vpow.pop %v4190
      %v4192 = vadd.f32 %v4065, 1.0
      %v4193 = vadd.f32 %v4067, 1.0
      %v4194 = vadd.f32 %v4069, 1.0
      %v4195 = vadd.f32 %v4071, 1.0
      %v4196 = vadd.f32 %v4073, 1.0
      %v4197 = vadd.f32 %v4075, 1.0
      %v4198 = vadd.f32 %v4077, 1.0
      %v4199 = vadd.f32 %v4079, 1.0
      %v4200 = vadd.f32 %v4081, 1.0
      %v4201 = vadd.f32 %v4083, 1.0
      %v4202 = vadd.f32 %v4085, 1.0
      %v4203 = vadd.f32 %v4087, 1.0
      %v4204 = vadd.f32 %v4089, 1.0
      %v4205 = vadd.f32 %v4091, 1.0
      %v4206 = vadd.f32 %v4093, 1.0
      %v4207 = vadd.f32 %v4095, 1.0
      %v4208 = vadd.f32 %v4097, 1.0
      %v4209 = vadd.f32 %v4099, 1.0
      %v4210 = vadd.f32 %v4101, 1.0
      %v4211 = vadd.f32 %v4103, 1.0
      %v4212 = vadd.f32 %v4105, 1.0
      %v4213 = vadd.f32 %v4107, 1.0
      %v4214 = vadd.f32 %v4109, 1.0
      %v4215 = vadd.f32 %v4111, 1.0
      %v4216 = vadd.f32 %v4113, 1.0
      %v4217 = vadd.f32 %v4115, 1.0
      %v4218 = vadd.f32 %v4117, 1.0
      %v4219 = vadd.f32 %v4119, 1.0
      %v4220 = vadd.f32 %v4121, 1.0
      %v4221 = vadd.f32 %v4123, 1.0
      %v4222 = vadd.f32 %v4125, 1.0
      %v4223 = vadd.f32 %v4127, 1.0
      %v4224 = vadd.f32 %v4129, 1.0
      %v4225 = vadd.f32 %v4131, 1.0
      %v4226 = vadd.f32 %v4133, 1.0
      %v4227 = vadd.f32 %v4135, 1.0
      %v4228 = vadd.f32 %v4137, 1.0
      %v4229 = vadd.f32 %v4139, 1.0
      %v4230 = vadd.f32 %v4141, 1.0
      %v4231 = vadd.f32 %v4143, 1.0
      %v4232 = vadd.f32 %v4145, 1.0
      %v4233 = vadd.f32 %v4147, 1.0
      %v4234 = vadd.f32 %v4149, 1.0
      %v4235 = vadd.f32 %v4151, 1.0
      %v4236 = vadd.f32 %v4153, 1.0
      %v4237 = vadd.f32 %v4155, 1.0
      %v4238 = vadd.f32 %v4157, 1.0
      %v4239 = vadd.f32 %v4159, 1.0
      %v4240 = vadd.f32 %v4161, 1.0
      %v4241 = vadd.f32 %v4163, 1.0
      %v4242 = vadd.f32 %v4165, 1.0
      %v4243 = vadd.f32 %v4167, 1.0
      %v4244 = vadd.f32 %v4169, 1.0
      %v4245 = vadd.f32 %v4171, 1.0
      %v4246 = vadd.f32 %v4173, 1.0
      %v4247 = vadd.f32 %v4175, 1.0
      %v4248 = vadd.f32 %v4177, 1.0
      %v4249 = vadd.f32 %v4179, 1.0
      %v4250 = vadd.f32 %v4181, 1.0
      %v4251 = vadd.f32 %v4183, 1.0
      %v4252 = vadd.f32 %v4185, 1.0
      %v4253 = vadd.f32 %v4187, 1.0
      %v4254 = vadd.f32 %v4189, 1.0
      %v4255 = vadd.f32 %v4191, 1.0
      %v4256 = vrcp.pop %v4192
      %v4257 = vmul.f32 1.0, %v4256
      %v4258 = vrcp.pop %v4193
      %v4259 = vmul.f32 1.0, %v4258
      %v4260 = vrcp.pop %v4194
      %v4261 = vmul.f32 1.0, %v4260
      %v4262 = vrcp.pop %v4195
      %v4263 = vmul.f32 1.0, %v4262
      %v4264 = vrcp.pop %v4196
      %v4265 = vmul.f32 1.0, %v4264
      %v4266 = vrcp.pop %v4197
      %v4267 = vmul.f32 1.0, %v4266
      %v4268 = vrcp.pop %v4198
      %v4269 = vmul.f32 1.0, %v4268
      %v4270 = vrcp.pop %v4199
      %v4271 = vmul.f32 1.0, %v4270
      %v4272 = vrcp.pop %v4200
      %v4273 = vmul.f32 1.0, %v4272
      %v4274 = vrcp.pop %v4201
      %v4275 = vmul.f32 1.0, %v4274
      %v4276 = vrcp.pop %v4202
      %v4277 = vmul.f32 1.0, %v4276
      %v4278 = vrcp.pop %v4203
      %v4279 = vmul.f32 1.0, %v4278
      %v4280 = vrcp.pop %v4204
      %v4281 = vmul.f32 1.0, %v4280
      %v4282 = vrcp.pop %v4205
      %v4283 = vmul.f32 1.0, %v4282
      %v4284 = vrcp.pop %v4206
      %v4285 = vmul.f32 1.0, %v4284
      %v4286 = vrcp.pop %v4207
      %v4287 = vmul.f32 1.0, %v4286
      %v4288 = vrcp.pop %v4208
      %v4289 = vmul.f32 1.0, %v4288
      %v4290 = vrcp.pop %v4209
      %v4291 = vmul.f32 1.0, %v4290
      %v4292 = vrcp.pop %v4210
      %v4293 = vmul.f32 1.0, %v4292
      %v4294 = vrcp.pop %v4211
      %v4295 = vmul.f32 1.0, %v4294
      %v4296 = vrcp.pop %v4212
      %v4297 = vmul.f32 1.0, %v4296
      %v4298 = vrcp.pop %v4213
      %v4299 = vmul.f32 1.0, %v4298
      %v4300 = vrcp.pop %v4214
      %v4301 = vmul.f32 1.0, %v4300
      %v4302 = vrcp.pop %v4215
      %v4303 = vmul.f32 1.0, %v4302
      %v4304 = vrcp.pop %v4216
      %v4305 = vmul.f32 1.0, %v4304
      %v4306 = vrcp.pop %v4217
      %v4307 = vmul.f32 1.0, %v4306
      %v4308 = vrcp.pop %v4218
      %v4309 = vmul.f32 1.0, %v4308
      %v4310 = vrcp.pop %v4219
      %v4311 = vmul.f32 1.0, %v4310
      %v4312 = vrcp.pop %v4220
      %v4313 = vmul.f32 1.0, %v4312
      %v4314 = vrcp.pop %v4221
      %v4315 = vmul.f32 1.0, %v4314
      %v4316 = vrcp.pop %v4222
      %v4317 = vmul.f32 1.0, %v4316
      %v4318 = vrcp.pop %v4223
      %v4319 = vmul.f32 1.0, %v4318
      %v4320 = vrcp.pop %v4224
      %v4321 = vmul.f32 1.0, %v4320
      %v4322 = vrcp.pop %v4225
      %v4323 = vmul.f32 1.0, %v4322
      %v4324 = vrcp.pop %v4226
      %v4325 = vmul.f32 1.0, %v4324
      %v4326 = vrcp.pop %v4227
      %v4327 = vmul.f32 1.0, %v4326
      %v4328 = vrcp.pop %v4228
      %v4329 = vmul.f32 1.0, %v4328
      %v4330 = vrcp.pop %v4229
      %v4331 = vmul.f32 1.0, %v4330
      %v4332 = vrcp.pop %v4230
      %v4333 = vmul.f32 1.0, %v4332
      %v4334 = vrcp.pop %v4231
      %v4335 = vmul.f32 1.0, %v4334
      %v4336 = vrcp.pop %v4232
      %v4337 = vmul.f32 1.0, %v4336
      %v4338 = vrcp.pop %v4233
      %v4339 = vmul.f32 1.0, %v4338
      %v4340 = vrcp.pop %v4234
      %v4341 = vmul.f32 1.0, %v4340
      %v4342 = vrcp.pop %v4235
      %v4343 = vmul.f32 1.0, %v4342
      %v4344 = vrcp.pop %v4236
      %v4345 = vmul.f32 1.0, %v4344
      %v4346 = vrcp.pop %v4237
      %v4347 = vmul.f32 1.0, %v4346
      %v4348 = vrcp.pop %v4238
      %v4349 = vmul.f32 1.0, %v4348
      %v4350 = vrcp.pop %v4239
      %v4351 = vmul.f32 1.0, %v4350
      %v4352 = vrcp.pop %v4240
      %v4353 = vmul.f32 1.0, %v4352
      %v4354 = vrcp.pop %v4241
      %v4355 = vmul.f32 1.0, %v4354
      %v4356 = vrcp.pop %v4242
      %v4357 = vmul.f32 1.0, %v4356
      %v4358 = vrcp.pop %v4243
      %v4359 = vmul.f32 1.0, %v4358
      %v4360 = vrcp.pop %v4244
      %v4361 = vmul.f32 1.0, %v4360
      %v4362 = vrcp.pop %v4245
      %v4363 = vmul.f32 1.0, %v4362
      %v4364 = vrcp.pop %v4246
      %v4365 = vmul.f32 1.0, %v4364
      %v4366 = vrcp.pop %v4247
      %v4367 = vmul.f32 1.0, %v4366
      %v4368 = vrcp.pop %v4248
      %v4369 = vmul.f32 1.0, %v4368
      %v4370 = vrcp.pop %v4249
      %v4371 = vmul.f32 1.0, %v4370
      %v4372 = vrcp.pop %v4250
      %v4373 = vmul.f32 1.0, %v4372
      %v4374 = vrcp.pop %v4251
      %v4375 = vmul.f32 1.0, %v4374
      %v4376 = vrcp.pop %v4252
      %v4377 = vmul.f32 1.0, %v4376
      %v4378 = vrcp.pop %v4253
      %v4379 = vmul.f32 1.0, %v4378
      %v4380 = vrcp.pop %v4254
      %v4381 = vmul.f32 1.0, %v4380
      %v4382 = vrcp.pop %v4255
      %v4383 = vmul.f32 1.0, %v4382
      %v4448 = vlaneseq
      %v4449 = vshrl.u32 %v4448, 7
      %v4450 = vsub.s32 %v716, %v4449
      %v4451 = vrot.slane %v4257, %v4450
      %v4452 = vlaneseq
      %v4453 = vshrl.u32 %v4452, 7
      %v4454 = vsub.s32 %v716, %v4453
      %v4455 = vrot.slane %v4259, %v4454
      %v4456 = vlaneseq
      %v4457 = vshrl.u32 %v4456, 7
      %v4458 = vsub.s32 %v716, %v4457
      %v4459 = vrot.slane %v4261, %v4458
      %v4460 = vlaneseq
      %v4461 = vshrl.u32 %v4460, 7
      %v4462 = vsub.s32 %v716, %v4461
      %v4463 = vrot.slane %v4263, %v4462
      %v4464 = vlaneseq
      %v4465 = vshrl.u32 %v4464, 7
      %v4466 = vsub.s32 %v716, %v4465
      %v4467 = vrot.slane %v4265, %v4466
      %v4468 = vlaneseq
      %v4469 = vshrl.u32 %v4468, 7
      %v4470 = vsub.s32 %v716, %v4469
      %v4471 = vrot.slane %v4267, %v4470
      %v4472 = vlaneseq
      %v4473 = vshrl.u32 %v4472, 7
      %v4474 = vsub.s32 %v716, %v4473
      %v4475 = vrot.slane %v4269, %v4474
      %v4476 = vlaneseq
      %v4477 = vshrl.u32 %v4476, 7
      %v4478 = vsub.s32 %v716, %v4477
      %v4479 = vrot.slane %v4271, %v4478
      %v4480 = vlaneseq
      %v4481 = vshrl.u32 %v4480, 7
      %v4482 = vsub.s32 %v716, %v4481
      %v4483 = vrot.slane %v4273, %v4482
      %v4484 = vlaneseq
      %v4485 = vshrl.u32 %v4484, 7
      %v4486 = vsub.s32 %v716, %v4485
      %v4487 = vrot.slane %v4275, %v4486
      %v4488 = vlaneseq
      %v4489 = vshrl.u32 %v4488, 7
      %v4490 = vsub.s32 %v716, %v4489
      %v4491 = vrot.slane %v4277, %v4490
      %v4492 = vlaneseq
      %v4493 = vshrl.u32 %v4492, 7
      %v4494 = vsub.s32 %v716, %v4493
      %v4495 = vrot.slane %v4279, %v4494
      %v4496 = vlaneseq
      %v4497 = vshrl.u32 %v4496, 7
      %v4498 = vsub.s32 %v716, %v4497
      %v4499 = vrot.slane %v4281, %v4498
      %v4500 = vlaneseq
      %v4501 = vshrl.u32 %v4500, 7
      %v4502 = vsub.s32 %v716, %v4501
      %v4503 = vrot.slane %v4283, %v4502
      %v4504 = vlaneseq
      %v4505 = vshrl.u32 %v4504, 7
      %v4506 = vsub.s32 %v716, %v4505
      %v4507 = vrot.slane %v4285, %v4506
      %v4508 = vlaneseq
      %v4509 = vshrl.u32 %v4508, 7
      %v4510 = vsub.s32 %v716, %v4509
      %v4511 = vrot.slane %v4287, %v4510
      %v4512 = vlaneseq
      %v4513 = vshrl.u32 %v4512, 7
      %v4514 = vsub.s32 %v716, %v4513
      %v4515 = vrot.slane %v4289, %v4514
      %v4516 = vlaneseq
      %v4517 = vshrl.u32 %v4516, 7
      %v4518 = vsub.s32 %v716, %v4517
      %v4519 = vrot.slane %v4291, %v4518
      %v4520 = vlaneseq
      %v4521 = vshrl.u32 %v4520, 7
      %v4522 = vsub.s32 %v716, %v4521
      %v4523 = vrot.slane %v4293, %v4522
      %v4524 = vlaneseq
      %v4525 = vshrl.u32 %v4524, 7
      %v4526 = vsub.s32 %v716, %v4525
      %v4527 = vrot.slane %v4295, %v4526
      %v4528 = vlaneseq
      %v4529 = vshrl.u32 %v4528, 7
      %v4530 = vsub.s32 %v716, %v4529
      %v4531 = vrot.slane %v4297, %v4530
      %v4532 = vlaneseq
      %v4533 = vshrl.u32 %v4532, 7
      %v4534 = vsub.s32 %v716, %v4533
      %v4535 = vrot.slane %v4299, %v4534
      %v4536 = vlaneseq
      %v4537 = vshrl.u32 %v4536, 7
      %v4538 = vsub.s32 %v716, %v4537
      %v4539 = vrot.slane %v4301, %v4538
      %v4540 = vlaneseq
      %v4541 = vshrl.u32 %v4540, 7
      %v4542 = vsub.s32 %v716, %v4541
      %v4543 = vrot.slane %v4303, %v4542
      %v4544 = vlaneseq
      %v4545 = vshrl.u32 %v4544, 7
      %v4546 = vsub.s32 %v716, %v4545
      %v4547 = vrot.slane %v4305, %v4546
      %v4548 = vlaneseq
      %v4549 = vshrl.u32 %v4548, 7
      %v4550 = vsub.s32 %v716, %v4549
      %v4551 = vrot.slane %v4307, %v4550
      %v4552 = vlaneseq
      %v4553 = vshrl.u32 %v4552, 7
      %v4554 = vsub.s32 %v716, %v4553
      %v4555 = vrot.slane %v4309, %v4554
      %v4556 = vlaneseq
      %v4557 = vshrl.u32 %v4556, 7
      %v4558 = vsub.s32 %v716, %v4557
      %v4559 = vrot.slane %v4311, %v4558
      %v4560 = vlaneseq
      %v4561 = vshrl.u32 %v4560, 7
      %v4562 = vsub.s32 %v716, %v4561
      %v4563 = vrot.slane %v4313, %v4562
      %v4564 = vlaneseq
      %v4565 = vshrl.u32 %v4564, 7
      %v4566 = vsub.s32 %v716, %v4565
      %v4567 = vrot.slane %v4315, %v4566
      %v4568 = vlaneseq
      %v4569 = vshrl.u32 %v4568, 7
      %v4570 = vsub.s32 %v716, %v4569
      %v4571 = vrot.slane %v4317, %v4570
      %v4572 = vlaneseq
      %v4573 = vshrl.u32 %v4572, 7
      %v4574 = vsub.s32 %v716, %v4573
      %v4575 = vrot.slane %v4319, %v4574
      %v4576 = vlaneseq
      %v4577 = vshrl.u32 %v4576, 7
      %v4578 = vsub.s32 %v716, %v4577
      %v4579 = vrot.slane %v4321, %v4578
      %v4580 = vlaneseq
      %v4581 = vshrl.u32 %v4580, 7
      %v4582 = vsub.s32 %v716, %v4581
      %v4583 = vrot.slane %v4323, %v4582
      %v4584 = vlaneseq
      %v4585 = vshrl.u32 %v4584, 7
      %v4586 = vsub.s32 %v716, %v4585
      %v4587 = vrot.slane %v4325, %v4586
      %v4588 = vlaneseq
      %v4589 = vshrl.u32 %v4588, 7
      %v4590 = vsub.s32 %v716, %v4589
      %v4591 = vrot.slane %v4327, %v4590
      %v4592 = vlaneseq
      %v4593 = vshrl.u32 %v4592, 7
      %v4594 = vsub.s32 %v716, %v4593
      %v4595 = vrot.slane %v4329, %v4594
      %v4596 = vlaneseq
      %v4597 = vshrl.u32 %v4596, 7
      %v4598 = vsub.s32 %v716, %v4597
      %v4599 = vrot.slane %v4331, %v4598
      %v4600 = vlaneseq
      %v4601 = vshrl.u32 %v4600, 7
      %v4602 = vsub.s32 %v716, %v4601
      %v4603 = vrot.slane %v4333, %v4602
      %v4604 = vlaneseq
      %v4605 = vshrl.u32 %v4604, 7
      %v4606 = vsub.s32 %v716, %v4605
      %v4607 = vrot.slane %v4335, %v4606
      %v4608 = vlaneseq
      %v4609 = vshrl.u32 %v4608, 7
      %v4610 = vsub.s32 %v716, %v4609
      %v4611 = vrot.slane %v4337, %v4610
      %v4612 = vlaneseq
      %v4613 = vshrl.u32 %v4612, 7
      %v4614 = vsub.s32 %v716, %v4613
      %v4615 = vrot.slane %v4339, %v4614
      %v4616 = vlaneseq
      %v4617 = vshrl.u32 %v4616, 7
      %v4618 = vsub.s32 %v716, %v4617
      %v4619 = vrot.slane %v4341, %v4618
      %v4620 = vlaneseq
      %v4621 = vshrl.u32 %v4620, 7
      %v4622 = vsub.s32 %v716, %v4621
      %v4623 = vrot.slane %v4343, %v4622
      %v4624 = vlaneseq
      %v4625 = vshrl.u32 %v4624, 7
      %v4626 = vsub.s32 %v716, %v4625
      %v4627 = vrot.slane %v4345, %v4626
      %v4628 = vlaneseq
      %v4629 = vshrl.u32 %v4628, 7
      %v4630 = vsub.s32 %v716, %v4629
      %v4631 = vrot.slane %v4347, %v4630
      %v4632 = vlaneseq
      %v4633 = vshrl.u32 %v4632, 7
      %v4634 = vsub.s32 %v716, %v4633
      %v4635 = vrot.slane %v4349, %v4634
      %v4636 = vlaneseq
      %v4637 = vshrl.u32 %v4636, 7
      %v4638 = vsub.s32 %v716, %v4637
      %v4639 = vrot.slane %v4351, %v4638
      %v4640 = vlaneseq
      %v4641 = vshrl.u32 %v4640, 7
      %v4642 = vsub.s32 %v716, %v4641
      %v4643 = vrot.slane %v4353, %v4642
      %v4644 = vlaneseq
      %v4645 = vshrl.u32 %v4644, 7
      %v4646 = vsub.s32 %v716, %v4645
      %v4647 = vrot.slane %v4355, %v4646
      %v4648 = vlaneseq
      %v4649 = vshrl.u32 %v4648, 7
      %v4650 = vsub.s32 %v716, %v4649
      %v4651 = vrot.slane %v4357, %v4650
      %v4652 = vlaneseq
      %v4653 = vshrl.u32 %v4652, 7
      %v4654 = vsub.s32 %v716, %v4653
      %v4655 = vrot.slane %v4359, %v4654
      %v4656 = vlaneseq
      %v4657 = vshrl.u32 %v4656, 7
      %v4658 = vsub.s32 %v716, %v4657
      %v4659 = vrot.slane %v4361, %v4658
      %v4660 = vlaneseq
      %v4661 = vshrl.u32 %v4660, 7
      %v4662 = vsub.s32 %v716, %v4661
      %v4663 = vrot.slane %v4363, %v4662
      %v4664 = vlaneseq
      %v4665 = vshrl.u32 %v4664, 7
      %v4666 = vsub.s32 %v716, %v4665
      %v4667 = vrot.slane %v4365, %v4666
      %v4668 = vlaneseq
      %v4669 = vshrl.u32 %v4668, 7
      %v4670 = vsub.s32 %v716, %v4669
      %v4671 = vrot.slane %v4367, %v4670
      %v4672 = vlaneseq
      %v4673 = vshrl.u32 %v4672, 7
      %v4674 = vsub.s32 %v716, %v4673
      %v4675 = vrot.slane %v4369, %v4674
      %v4676 = vlaneseq
      %v4677 = vshrl.u32 %v4676, 7
      %v4678 = vsub.s32 %v716, %v4677
      %v4679 = vrot.slane %v4371, %v4678
      %v4680 = vlaneseq
      %v4681 = vshrl.u32 %v4680, 7
      %v4682 = vsub.s32 %v716, %v4681
      %v4683 = vrot.slane %v4373, %v4682
      %v4684 = vlaneseq
      %v4685 = vshrl.u32 %v4684, 7
      %v4686 = vsub.s32 %v716, %v4685
      %v4687 = vrot.slane %v4375, %v4686
      %v4688 = vlaneseq
      %v4689 = vshrl.u32 %v4688, 7
      %v4690 = vsub.s32 %v716, %v4689
      %v4691 = vrot.slane %v4377, %v4690
      %v4692 = vlaneseq
      %v4693 = vshrl.u32 %v4692, 7
      %v4694 = vsub.s32 %v716, %v4693
      %v4695 = vrot.slane %v4379, %v4694
      %v4696 = vlaneseq
      %v4697 = vshrl.u32 %v4696, 7
      %v4698 = vsub.s32 %v716, %v4697
      %v4699 = vrot.slane %v4381, %v4698
      %v4700 = vlaneseq
      %v4701 = vshrl.u32 %v4700, 7
      %v4702 = vsub.s32 %v716, %v4701
      %v4703 = vrot.slane %v4383, %v4702
      %v4704 = vsel %vm3893, %v4455, %v4451
      %v4705 = vsel %vm3895, %v4459, %v4704
      %v4706 = vsel %vm3897, %v4463, %v4705
      %v4707 = vsel %vm3899, %v4467, %v4706
      %v4708 = vsel %vm3901, %v4471, %v4707
      %v4709 = vsel %vm3903, %v4475, %v4708
      %v4710 = vsel %vm3905, %v4479, %v4709
      %v4711 = vsel %vm3893, %v4487, %v4483
      %v4712 = vsel %vm3895, %v4491, %v4711
      %v4713 = vsel %vm3897, %v4495, %v4712
      %v4714 = vsel %vm3899, %v4499, %v4713
      %v4715 = vsel %vm3901, %v4503, %v4714
      %v4716 = vsel %vm3903, %v4507, %v4715
      %v4717 = vsel %vm3905, %v4511, %v4716
      %v4718 = vsel %vm3893, %v4519, %v4515
      %v4719 = vsel %vm3895, %v4523, %v4718
      %v4720 = vsel %vm3897, %v4527, %v4719
      %v4721 = vsel %vm3899, %v4531, %v4720
      %v4722 = vsel %vm3901, %v4535, %v4721
      %v4723 = vsel %vm3903, %v4539, %v4722
      %v4724 = vsel %vm3905, %v4543, %v4723
      %v4725 = vsel %vm3893, %v4551, %v4547
      %v4726 = vsel %vm3895, %v4555, %v4725
      %v4727 = vsel %vm3897, %v4559, %v4726
      %v4728 = vsel %vm3899, %v4563, %v4727
      %v4729 = vsel %vm3901, %v4567, %v4728
      %v4730 = vsel %vm3903, %v4571, %v4729
      %v4731 = vsel %vm3905, %v4575, %v4730
      %v4732 = vsel %vm3893, %v4583, %v4579
      %v4733 = vsel %vm3895, %v4587, %v4732
      %v4734 = vsel %vm3897, %v4591, %v4733
      %v4735 = vsel %vm3899, %v4595, %v4734
      %v4736 = vsel %vm3901, %v4599, %v4735
      %v4737 = vsel %vm3903, %v4603, %v4736
      %v4738 = vsel %vm3905, %v4607, %v4737
      %v4739 = vsel %vm3893, %v4615, %v4611
      %v4740 = vsel %vm3895, %v4619, %v4739
      %v4741 = vsel %vm3897, %v4623, %v4740
      %v4742 = vsel %vm3899, %v4627, %v4741
      %v4743 = vsel %vm3901, %v4631, %v4742
      %v4744 = vsel %vm3903, %v4635, %v4743
      %v4745 = vsel %vm3905, %v4639, %v4744
      %v4746 = vsel %vm3893, %v4647, %v4643
      %v4747 = vsel %vm3895, %v4651, %v4746
      %v4748 = vsel %vm3897, %v4655, %v4747
      %v4749 = vsel %vm3899, %v4659, %v4748
      %v4750 = vsel %vm3901, %v4663, %v4749
      %v4751 = vsel %vm3903, %v4667, %v4750
      %v4752 = vsel %vm3905, %v4671, %v4751
      %v4753 = vsel %vm3893, %v4679, %v4675
      %v4754 = vsel %vm3895, %v4683, %v4753
      %v4755 = vsel %vm3897, %v4687, %v4754
      %v4756 = vsel %vm3899, %v4691, %v4755
      %v4757 = vsel %vm3901, %v4695, %v4756
      %v4758 = vsel %vm3903, %v4699, %v4757
      %v4759 = vsel %vm3905, %v4703, %v4758
      %4768 = vst.msk [vmem:[%s409] sm:$0xff] %vm3972, %v4710
      %4769 = vst.msk [vmem:[%s409 + $0x8] sm:$0xff] %vm3972, %v4717
      %4770 = vst.msk [vmem:[%s409 + $0x10] sm:$0xff] %vm3972, %v4724
      %4771 = vst.msk [vmem:[%s409 + $0x18] sm:$0xff] %vm3972, %v4731
      %4772 = vst.msk [vmem:[%s409 + $0x20] sm:$0xff] %vm3972, %v4738
      %4773 = vst.msk [vmem:[%s409 + $0x28] sm:$0xff] %vm3972, %v4745
      %4774 = vst.msk [vmem:[%s409 + $0x30] sm:$0xff] %vm3972, %v4752
      %4775 = vst.msk [vmem:[%s409 + $0x38] sm:$0xff] %vm3972, %v4759
      %p4776 = scmp.lt.s32.totalorder %s21, 1
      %s4777 = scalar_select %p4776, %s21, 1
      %s4778 = scalar_lea.vmem %s8, %s4777
      %s4779 = smul.u32 8, %s21
      %p4780 = scmp.lt.s32.totalorder %s4779, 15
      %s4781 = scalar_select %p4780, %s4779, 15
      %s4782 = smul.addr %s4781, 8
      %s4783 = scalar_lea.vmem %s9, %s4782
      // Predicated region
      $region53: #{tpu_custom_call.1} parent=51 // pred_check
        %p4784 = pneg %p227
      $region54: #{tpu_custom_call.1} parent=51 // pred_check_branch
        %4786 = sbr.rel (%p4784) target = $region56
      $region55: #{tpu_custom_call.1} parent=51 // pred_region
        _
      $region56: #{tpu_custom_call.1} parent=51 // pred_fallthru
        _
      // Predicated region
      $region57: #{tpu_custom_call.1} parent=51 // pred_check
        %p4787 = pneg %p253
      $region58: #{tpu_custom_call.1} parent=51 // pred_check_branch
        %4789 = sbr.rel (%p4787) target = $region60
      $region59: #{tpu_custom_call.1} parent=51 // pred_region
        %s4790 = smul.u32 8, %s21
      $region60: #{tpu_custom_call.1} parent=51 // pred_fallthru
        _
    $region52: #{tpu_custom_call.1} parent=5 // pred_fallthru
      _
    %p4791 = scmp.le.s32.totalorder 2, %s16
    // Predicated region
    $region61: #{tpu_custom_call.1} parent=5 // pred_check
      %p4792 = pneg %p4791
    $region62: #{tpu_custom_call.1} parent=5 // pred_check_branch
      %4794 = sbr.rel (%p4792) target = $region64
    $region63: #{tpu_custom_call.1} parent=5 // pred_region
      %s4795 = ssub.s32 %s16, 2
      // Predicated region
      $region65: #{tpu_custom_call.1} parent=63 // pred_check
        %p4796 = pneg %p233
      $region66: #{tpu_custom_call.1} parent=63 // pred_check_branch
        %4798 = sbr.rel (%p4796) target = $region68
      $region67: #{tpu_custom_call.1} parent=63 // pred_region
        %p4799 = scmp.lt.s32.totalorder %s22, 1
        %s4800 = scalar_select %p4799, %s22, 1
        %s4801 = scalar_lea.vmem %s8, %s4800
      $region68: #{tpu_custom_call.1} parent=63 // pred_fallthru
        _
      // Predicated region
      $region69: #{tpu_custom_call.1} parent=63 // pred_check
        %p4802 = pneg %p259
      $region70: #{tpu_custom_call.1} parent=63 // pred_check_branch
        %4804 = sbr.rel (%p4802) target = $region72
      $region71: #{tpu_custom_call.1} parent=63 // pred_region
        %s4805 = smul.u32 8, %s22
        %p4806 = scmp.lt.s32.totalorder %s4805, 15
        %s4807 = scalar_select %p4806, %s4805, 15
        %s4808 = smul.addr %s4807, 8
        %s4809 = scalar_lea.vmem %s9, %s4808
      $region72: #{tpu_custom_call.1} parent=63 // pred_fallthru
        _
    $region64: #{tpu_custom_call.1} parent=5 // pred_fallthru
      _
  $region6: #{tpu_custom_call.1} parent=0 // loop_footer
    %s20 = sadd.s32 1, %s16
  $region7: #{tpu_custom_call.1} parent=0 // loop_footer_branch
    %15 = sbr.rel target = $region3
  $region8: #{tpu_custom_call.1} parent=0 // loop_exit
    _

</llo_original>
